<compile_context>
chip_gen: v6e
topology: v6e:2x2x1
jax: 0.10.0
libtpu: 0.0.40
codegen_flags: <defaults>
</compile_context>

<pallas_src>
import functools
import math

import jax
import jax.numpy as jnp
from jax.experimental import pallas as pl
from jax.experimental.pallas import tpu as pltpu


# ----------------------------- kernel ---------------------------------------

def _layernorm(x, gamma, beta, eps=1e-5):
    mean = jnp.mean(x, axis=-1, keepdims=True)
    var = jnp.mean((x - mean) ** 2, axis=-1, keepdims=True)
    return (x - mean) * jax.lax.rsqrt(var + eps) * gamma + beta


def encoder_layer_kernel(x_ref,
                         wqkv_ref, bqkv_ref, wo_ref, bo_ref,
                         g1_ref, be1_ref,
                         w1_ref, b1_ref, w2_ref, b2_ref,
                         g2_ref, be2_ref,
                         o_ref,
                         *, nhead, d_k, U, L, B_blk):
    d_model = nhead * d_k
    scale = 1.0 / math.sqrt(d_k)
    NEG = jnp.float32(-1e30)          # large-negative (not -inf): no inf-inf NaN risk
    cdt = wqkv_ref.dtype              # MXU operand dtype (f32 default, bf16 optional)

    # Flatten the batch block: (B_blk, L, d_model) -> (B_blk*L, d_model).
    xf = x_ref[...].reshape(B_blk * L, d_model).astype(jnp.float32)

    # Fused QKV projection: one (B_blk*L, d_model) x (d_model, 3*d_model) matmul.
    qkv = (jnp.dot(xf.astype(cdt), wqkv_ref[...],
                   preferred_element_type=jnp.float32) + bqkv_ref[...])

    # Per-head attention.  Heads are static lane slices of the fused projection;
    # batch is a real batch dim of the einsums.  Each head's context is folded
    # directly into the output projection (acc += ctx_h @ Wo_h), so nothing but
    # the running (B_blk*L, d_model) accumulator stays live across heads.
    attn_out = jnp.zeros((B_blk * L, d_model), jnp.float32)
    for h in range(nhead):
        q_h = (qkv[:, h * d_k:(h + 1) * d_k] * scale).reshape(B_blk, L, d_k)
        k_h = qkv[:, d_model + h * d_k:
                  d_model + (h + 1) * d_k].reshape(B_blk, L, d_k)
        v_h = qkv[:, 2 * d_model + h * d_k:
                  2 * d_model + (h + 1) * d_k].reshape(B_blk, L, d_k)

        s = jnp.einsum('bld,bmd->blm', q_h.astype(cdt), k_h.astype(cdt),
                       preferred_element_type=jnp.float32)        # (B_blk, L, L)

        # ProbSparse top-U keep, O(U*L^2): walk down the distinct row maxima
        # until >= U elements sit at/above the threshold; keep = s >= thr.
        # Matches torch.topk(scores, U)[..., -1] thresholding (ties included).
        if U < L:
            thr = jnp.max(s, axis=-1, keepdims=True)
            for _ in range(U - 1):
                # f32 count is exact for any realistic L (< 2^24).
                n_ge = jnp.sum((s >= thr).astype(jnp.float32),
                               axis=-1, keepdims=True)
                nxt = jnp.max(jnp.where(s < thr, s, NEG), axis=-1, keepdims=True)
                thr = jnp.where(n_ge >= float(U), thr, nxt)
            s = jnp.where(s >= thr, s, NEG)

        m = jnp.max(s, axis=-1, keepdims=True)       # row max always survives masking
        p = jnp.exp(s - m)
        attn = p * pl.reciprocal(jnp.sum(p, axis=-1, keepdims=True), approx=True)

        ctx_h = jnp.einsum('blm,bmd->bld', attn.astype(cdt), v_h.astype(cdt),
                           preferred_element_type=jnp.float32)
        ctx_h = ctx_h.reshape(B_blk * L, d_k)
        attn_out = attn_out + jnp.dot(ctx_h.astype(cdt),
                                      wo_ref[h * d_k:(h + 1) * d_k, :],
                                      preferred_element_type=jnp.float32)

    attn_out = attn_out + bo_ref[...]

    # TODO(synk): dropout layers are identity here (eval/inference semantics).
    x1 = _layernorm(xf + attn_out, g1_ref[...], be1_ref[...])

    h1 = jnp.maximum(
        jnp.dot(x1.astype(cdt), w1_ref[...], preferred_element_type=jnp.float32)
        + b1_ref[...], 0.0)
    ff = (jnp.dot(h1.astype(cdt), w2_ref[...], preferred_element_type=jnp.float32)
          + b2_ref[...])

    y = _layernorm(x1 + ff, g2_ref[...], be2_ref[...])
    # TODO(synk): for v5e, repacking y to a >=128-lane-wide output slab would turn
    # the masked vst.msk stores into full-width vst (lane-merging relayout needed).
    o_ref[...] = y.reshape(B_blk, L, d_model)


# ----------------------------- wrapper ---------------------------------------

def encoder_layer_pallas(x, params, *, nhead, attn_factor,
                         compute_dtype=jnp.float32,
                         vmem_budget_bytes=24 * 1024 * 1024):
    """compute_dtype=jnp.bfloat16 halves MXU/HBM cost of the matmuls on v6e/v7x
    (f32 accumulation kept); compare against an f32 reference with ~2e-2 tol then."""
    B, L, d_model = x.shape
    d_k = d_model // nhead
    dff = params["w1"].shape[1]
    U = min(L, int(attn_factor * math.log(L)) if L > 1 else L)

    # Fused QKV weights / biases; matmul weights cast to the MXU operand dtype.
    wqkv = jnp.concatenate([params["wq"], params["wk"], params["wv"]], axis=1)
    bqkv = jnp.concatenate([params["bq"], params["bk"], params["bv"]], axis=1)
    param_vals = [wqkv.astype(compute_dtype), bqkv,
                  params["wo"].astype(compute_dtype), params["bo"],
                  params["g1"], params["be1"],
                  params["w1"].astype(compute_dtype), params["b1"],
                  params["w2"].astype(compute_dtype), params["b2"],
                  params["g2"], params["be2"]]
    wbytes = sum(int(p.size) * p.dtype.itemsize for p in param_vals)

    # Pick the largest batch block that fits the VMEM budget (double-buffered
    # x/out blocks + f32 intermediates + per-head (L, L) score tile headroom).
    def footprint(bb):
        rows = bb * L
        acts = rows * (2 * d_model + 3 * d_model + d_model + dff) * 4
        scores = bb * L * L * 4 * 4
        return 2 * acts + scores + 2 * wbytes

    B_blk = 1
    for cand in range(B, 0, -1):
        if B % cand == 0 and footprint(cand) <= vmem_budget_bytes:
            B_blk = cand
            break
    grid = (B // B_blk,)
    # TODO(synk): for long sequences where the (L, L) score tile no longer fits
    # VMEM, the attention additionally needs flash-style K/V-block tiling.

    kern = functools.partial(encoder_layer_kernel,
                             nhead=nhead, d_k=d_k, U=U, L=L, B_blk=B_blk)

    def full_spec(shape):
        n = len(shape)
        return pl.BlockSpec(shape, lambda b, n=n: (0,) * n)

    in_specs = [pl.BlockSpec((B_blk, L, d_model), lambda b: (b, 0, 0))]
    in_specs += [full_spec(tuple(p.shape)) for p in param_vals]

    flops = (2 * B * L * d_model * 3 * d_model          # fused QKV
             + 4 * B * nhead * L * L * d_k              # scores + attn@V
             + 2 * B * L * d_model * d_model            # output projection
             + 4 * B * L * d_model * dff                # FFN
             + B * nhead * L * L * (3 * max(U - 1, 0) + 6))
    cost = pl.CostEstimate(
        flops=int(flops),
        transcendentals=int(B * nhead * L * (L + 1) + 4 * B * L),
        bytes_accessed=int(2 * x.size * 4 + wbytes))

    return pl.pallas_call(
        kern,
        out_shape=jax.ShapeDtypeStruct((B, L, d_model), jnp.float32),
        grid_spec=pltpu.PrefetchScalarGridSpec(
            num_scalar_prefetch=0,
            grid=grid,
            in_specs=in_specs,
            out_specs=pl.BlockSpec((B_blk, L, d_model), lambda b: (b, 0, 0)),
        ),
        compiler_params=pltpu.CompilerParams(
            dimension_semantics=("parallel",),
            vmem_limit_bytes=32 * 1024 * 1024),
        cost_estimate=cost,
    )(x, *param_vals)


# ----------------------------- pure-JAX reference ----------------------------

def encoder_layer_ref(x, p, *, nhead, attn_factor):
    B, L, d_model = x.shape
    D = d_model // nhead
    U = min(L, int(attn_factor * math.log(L)) if L > 1 else L)

    def lin(z, w, b):
        return z @ w + b

    def ln(z, g, b, eps=1e-5):
        mu = jnp.mean(z, axis=-1, keepdims=True)
        var = jnp.mean((z - mu) ** 2, axis=-1, keepdims=True)
        return (z - mu) / jnp.sqrt(var + eps) * g + b

    q = lin(x, p["wq"], p["bq"]).reshape(B, L, nhead, D).transpose(0, 2, 1, 3)
    k = lin(x, p["wk"], p["bk"]).reshape(B, L, nhead, D).transpose(0, 2, 1, 3)
    v = lin(x, p["wv"], p["bv"]).reshape(B, L, nhead, D).transpose(0, 2, 1, 3)

    s = jnp.einsum("bhld,bhmd->bhlm", q, k) / math.sqrt(D)
    thr = jax.lax.top_k(s, U)[0][..., -1:]
    s = jnp.where(s < thr, -jnp.inf, s)
    attn = jax.nn.softmax(s, axis=-1)
    ctx = jnp.einsum("bhlm,bhmd->bhld", attn, v).transpose(0, 2, 1, 3).reshape(B, L, d_model)
    attn_out = lin(ctx, p["wo"], p["bo"])

    x1 = ln(x + attn_out, p["g1"], p["be1"])
    ff = lin(jax.nn.relu(lin(x1, p["w1"], p["b1"])), p["w2"], p["b2"])
    return ln(x1 + ff, p["g2"], p["be2"])


# ----------------------------- main -------------------------------------------

if __name__ == "__main__":
    B, L = 2, 16
    d_model, nhead, dim_feedforward = 32, 4, 64
    attn_factor = 1          # U = min(16, int(log(16))) = 2  -> real sparsification

    key = jax.random.PRNGKey(0)
    ks = jax.random.split(key, 16)

    def w(k, shape, scale=0.1):
        return (scale * jax.random.normal(k, shape)).astype(jnp.float32)

    # Weights stored as (in, out); biases / LN params as (1, dim) rows.
    params = {
        "wq": w(ks[0], (d_model, d_model)),  "bq": w(ks[1], (1, d_model)),
        "wk": w(ks[2], (d_model, d_model)),  "bk": w(ks[3], (1, d_model)),
        "wv": w(ks[4], (d_model, d_model)),  "bv": w(ks[5], (1, d_model)),
        "wo": w(ks[6], (d_model, d_model)),  "bo": w(ks[7], (1, d_model)),
        "g1": jnp.ones((1, d_model), jnp.float32),
        "be1": jnp.zeros((1, d_model), jnp.float32),
        "w1": w(ks[8], (d_model, dim_feedforward)),
        "b1": w(ks[9], (1, dim_feedforward)),
        "w2": w(ks[10], (dim_feedforward, d_model)),
        "b2": w(ks[11], (1, d_model)),
        "g2": jnp.ones((1, d_model), jnp.float32),
        "be2": jnp.zeros((1, d_model), jnp.float32),
    }

    x = jax.random.normal(ks[12], (B, L, d_model), dtype=jnp.float32)

    out = encoder_layer_pallas(x, params, nhead=nhead, attn_factor=attn_factor)
    out = jax.block_until_ready(out)

    ref = encoder_layer_ref(x, params, nhead=nhead, attn_factor=attn_factor)
    assert out.shape == (B, L, d_model)
    # Tolerance leaves headroom for the EUP approximate-reciprocal softmax path;
    # structural errors (wrong top-U / head mixing / LN) would be orders larger.
    err = float(jnp.max(jnp.abs(out - ref)))
    assert jnp.allclose(out, ref, atol=5e-3, rtol=5e-3), err

    print("KERNEL_OK")
</pallas_src>

<mosaic_0001>
module attributes {stable_mosaic.version = 11 : i64} {
  func.func @encoder_layer_kernel(%arg0: i32, %arg1: memref<2x16x32xf32, #tpu.memory_space<vmem>>, %arg2: memref<32x96xf32, #tpu.memory_space<vmem>>, %arg3: memref<1x96xf32, #tpu.memory_space<vmem>>, %arg4: memref<32x32xf32, #tpu.memory_space<vmem>>, %arg5: memref<1x32xf32, #tpu.memory_space<vmem>>, %arg6: memref<1x32xf32, #tpu.memory_space<vmem>>, %arg7: memref<1x32xf32, #tpu.memory_space<vmem>>, %arg8: memref<32x64xf32, #tpu.memory_space<vmem>>, %arg9: memref<1x64xf32, #tpu.memory_space<vmem>>, %arg10: memref<64x32xf32, #tpu.memory_space<vmem>>, %arg11: memref<1x32xf32, #tpu.memory_space<vmem>>, %arg12: memref<1x32xf32, #tpu.memory_space<vmem>>, %arg13: memref<1x32xf32, #tpu.memory_space<vmem>>, %arg14: memref<2x16x32xf32, #tpu.memory_space<vmem>>) attributes {dimension_semantics = [#tpu.dimension_semantics<parallel>], iteration_bounds = array<i64: 1>, scalar_prefetch = 0 : i64, scratch_operands = 0 : i64, tpu.core_type = #tpu.core_type<tc>, window_params = [{transform_indices = @transform_0, window_bounds = array<i64: 2, 16, 32>}, {pipeline_mode = #tpu.pipeline_mode<synchronous>, transform_indices = @transform_1, window_bounds = array<i64: 32, 96>}, {pipeline_mode = #tpu.pipeline_mode<synchronous>, transform_indices = @transform_2, window_bounds = array<i64: 1, 96>}, {pipeline_mode = #tpu.pipeline_mode<synchronous>, transform_indices = @transform_3, window_bounds = array<i64: 32, 32>}, {pipeline_mode = #tpu.pipeline_mode<synchronous>, transform_indices = @transform_4, window_bounds = array<i64: 1, 32>}, {pipeline_mode = #tpu.pipeline_mode<synchronous>, transform_indices = @transform_5, window_bounds = array<i64: 1, 32>}, {pipeline_mode = #tpu.pipeline_mode<synchronous>, transform_indices = @transform_6, window_bounds = array<i64: 1, 32>}, {pipeline_mode = #tpu.pipeline_mode<synchronous>, transform_indices = @transform_7, window_bounds = array<i64: 32, 64>}, {pipeline_mode = #tpu.pipeline_mode<synchronous>, transform_indices = @transform_8, window_bounds = array<i64: 1, 64>}, {pipeline_mode = #tpu.pipeline_mode<synchronous>, transform_indices = @transform_9, window_bounds = array<i64: 64, 32>}, {pipeline_mode = #tpu.pipeline_mode<synchronous>, transform_indices = @transform_10, window_bounds = array<i64: 1, 32>}, {pipeline_mode = #tpu.pipeline_mode<synchronous>, transform_indices = @transform_11, window_bounds = array<i64: 1, 32>}, {pipeline_mode = #tpu.pipeline_mode<synchronous>, transform_indices = @transform_12, window_bounds = array<i64: 1, 32>}, {transform_indices = @transform_13, window_bounds = array<i64: 2, 16, 32>}]} {
    %c0 = arith.constant 0 : index
    %c0_0 = arith.constant 0 : index
    %c0_1 = arith.constant 0 : index
    %0 = vector.load %arg1[%c0, %c0_0, %c0_1] : memref<2x16x32xf32, #tpu.memory_space<vmem>>, vector<2x16x32xf32>
    %1 = vector.shape_cast %0 : vector<2x16x32xf32> to vector<32x32xf32>
    %c0_2 = arith.constant 0 : index
    %c0_3 = arith.constant 0 : index
    %2 = vector.load %arg2[%c0_2, %c0_3] : memref<32x96xf32, #tpu.memory_space<vmem>>, vector<32x96xf32>
    %cst = arith.constant dense<0.000000e+00> : vector<32x96xf32>
    %3 = tpu.matmul %1, %2, %cst {dimension_numbers = #tpu.dot_dimension_numbers<[1], [0], [0], [1], [0, 0, 1, 1], [], []>} : vector<32x32xf32>, vector<32x96xf32>, vector<32x96xf32> -> vector<32x96xf32>
    %c0_4 = arith.constant 0 : index
    %c0_5 = arith.constant 0 : index
    %4 = vector.load %arg3[%c0_4, %c0_5] : memref<1x96xf32, #tpu.memory_space<vmem>>, vector<1x96xf32>
    %5 = vector.broadcast %4 : vector<1x96xf32> to vector<32x96xf32>
    %6 = arith.addf %3, %5 : vector<32x96xf32>
    %cst_6 = arith.constant 0.000000e+00 : f32
    %7 = vector.broadcast %cst_6 : f32 to vector<32x32xf32>
    %8 = vector.extract_strided_slice %6 {offsets = [0, 0], sizes = [32, 8], strides = [1, 1]} : vector<32x96xf32> to vector<32x8xf32>
    %cst_7 = arith.constant 0.353553385 : f32
    %9 = vector.broadcast %cst_7 : f32 to vector<32x8xf32>
    %10 = arith.mulf %8, %9 : vector<32x8xf32>
    %11 = vector.shape_cast %10 : vector<32x8xf32> to vector<2x16x8xf32>
    %12 = vector.extract_strided_slice %6 {offsets = [0, 32], sizes = [32, 8], strides = [1, 1]} : vector<32x96xf32> to vector<32x8xf32>
    %13 = vector.shape_cast %12 : vector<32x8xf32> to vector<2x16x8xf32>
    %14 = vector.extract_strided_slice %6 {offsets = [0, 64], sizes = [32, 8], strides = [1, 1]} : vector<32x96xf32> to vector<32x8xf32>
    %15 = vector.shape_cast %14 : vector<32x8xf32> to vector<2x16x8xf32>
    "tpu.trace_start"() <{level = 10 : i32, message = "bld,bmd->blm"}> : () -> ()
    %cst_8 = arith.constant dense<0.000000e+00> : vector<2x16x16xf32>
    %16 = tpu.matmul %11, %13, %cst_8 {dimension_numbers = #tpu.dot_dimension_numbers<[2], [2], [1], [1], [0, 0, 0, 1, 1, 1], [0], [0]>} : vector<2x16x8xf32>, vector<2x16x8xf32>, vector<2x16x16xf32> -> vector<2x16x16xf32>
    "tpu.trace_stop"() : () -> ()
    %cst_9 = arith.constant dense<0xFF800000> : vector<2x16xf32>
    %17 = vector.multi_reduction <maximumf>, %16, %cst_9 [2] : vector<2x16x16xf32> to vector<2x16xf32>
    %18 = vector.shape_cast %17 : vector<2x16xf32> to vector<2x16x1xf32>
    %19 = vector.broadcast %18 : vector<2x16x1xf32> to vector<2x16x16xf32>
    %20 = arith.cmpf oge, %16, %19 : vector<2x16x16xf32>
    %21 = arith.extui %20 : vector<2x16x16xi1> to vector<2x16x16xi32>
    %22 = arith.sitofp %21 : vector<2x16x16xi32> to vector<2x16x16xf32>
    %cst_10 = arith.constant dense<0.000000e+00> : vector<2x16xf32>
    %23 = vector.multi_reduction <add>, %22, %cst_10 [2] : vector<2x16x16xf32> to vector<2x16xf32>
    %24 = vector.shape_cast %23 : vector<2x16xf32> to vector<2x16x1xf32>
    %25 = vector.broadcast %18 : vector<2x16x1xf32> to vector<2x16x16xf32>
    %26 = arith.cmpf olt, %16, %25 : vector<2x16x16xf32>
    %cst_11 = arith.constant -1.000000e+30 : f32
    %27 = vector.broadcast %cst_11 : f32 to vector<2x16x16xf32>
    %28 = arith.select %26, %16, %27 : vector<2x16x16xi1>, vector<2x16x16xf32>
    %cst_12 = arith.constant dense<0xFF800000> : vector<2x16xf32>
    %29 = vector.multi_reduction <maximumf>, %28, %cst_12 [2] : vector<2x16x16xf32> to vector<2x16xf32>
    %30 = vector.shape_cast %29 : vector<2x16xf32> to vector<2x16x1xf32>
    %cst_13 = arith.constant 2.000000e+00 : f32
    %31 = vector.broadcast %cst_13 : f32 to vector<2x16x1xf32>
    %32 = arith.cmpf oge, %24, %31 : vector<2x16x1xf32>
    %33 = arith.select %32, %18, %30 : vector<2x16x1xi1>, vector<2x16x1xf32>
    %34 = vector.broadcast %33 : vector<2x16x1xf32> to vector<2x16x16xf32>
    %35 = arith.cmpf oge, %16, %34 : vector<2x16x16xf32>
    %cst_14 = arith.constant -1.000000e+30 : f32
    %36 = vector.broadcast %cst_14 : f32 to vector<2x16x16xf32>
    %37 = arith.select %35, %16, %36 : vector<2x16x16xi1>, vector<2x16x16xf32>
    %cst_15 = arith.constant dense<0xFF800000> : vector<2x16xf32>
    %38 = vector.multi_reduction <maximumf>, %37, %cst_15 [2] : vector<2x16x16xf32> to vector<2x16xf32>
    %39 = vector.shape_cast %38 : vector<2x16xf32> to vector<2x16x1xf32>
    %40 = vector.broadcast %39 : vector<2x16x1xf32> to vector<2x16x16xf32>
    %41 = arith.subf %37, %40 : vector<2x16x16xf32>
    %42 = math.exp %41 : vector<2x16x16xf32>
    %cst_16 = arith.constant dense<0.000000e+00> : vector<2x16xf32>
    %43 = vector.multi_reduction <add>, %42, %cst_16 [2] : vector<2x16x16xf32> to vector<2x16xf32>
    %44 = vector.shape_cast %43 : vector<2x16xf32> to vector<2x16x1xf32>
    %45 = tpu.reciprocal %44 {approx = true} : vector<2x16x1xf32> -> vector<2x16x1xf32>
    %46 = vector.broadcast %45 : vector<2x16x1xf32> to vector<2x16x16xf32>
    %47 = arith.mulf %42, %46 : vector<2x16x16xf32>
    "tpu.trace_start"() <{level = 10 : i32, message = "blm,bmd->bld"}> : () -> ()
    %cst_17 = arith.constant dense<0.000000e+00> : vector<2x16x8xf32>
    %48 = tpu.matmul %47, %15, %cst_17 {dimension_numbers = #tpu.dot_dimension_numbers<[2], [1], [1], [2], [0, 0, 0, 1, 1, 2], [0], [0]>} : vector<2x16x16xf32>, vector<2x16x8xf32>, vector<2x16x8xf32> -> vector<2x16x8xf32>
    "tpu.trace_stop"() : () -> ()
    %49 = vector.shape_cast %48 : vector<2x16x8xf32> to vector<32x8xf32>
    %c0_18 = arith.constant 0 : index
    %c0_19 = arith.constant 0 : index
    %50 = vector.load %arg4[%c0_18, %c0_19] : memref<32x32xf32, #tpu.memory_space<vmem>>, vector<8x32xf32>
    %cst_20 = arith.constant dense<0.000000e+00> : vector<32x32xf32>
    %51 = tpu.matmul %49, %50, %cst_20 {dimension_numbers = #tpu.dot_dimension_numbers<[1], [0], [0], [1], [0, 0, 1, 1], [], []>} : vector<32x8xf32>, vector<8x32xf32>, vector<32x32xf32> -> vector<32x32xf32>
    %52 = arith.addf %7, %51 : vector<32x32xf32>
    %53 = vector.extract_strided_slice %6 {offsets = [0, 8], sizes = [32, 8], strides = [1, 1]} : vector<32x96xf32> to vector<32x8xf32>
    %cst_21 = arith.constant 0.353553385 : f32
    %54 = vector.broadcast %cst_21 : f32 to vector<32x8xf32>
    %55 = arith.mulf %53, %54 : vector<32x8xf32>
    %56 = vector.shape_cast %55 : vector<32x8xf32> to vector<2x16x8xf32>
    %57 = vector.extract_strided_slice %6 {offsets = [0, 40], sizes = [32, 8], strides = [1, 1]} : vector<32x96xf32> to vector<32x8xf32>
    %58 = vector.shape_cast %57 : vector<32x8xf32> to vector<2x16x8xf32>
    %59 = vector.extract_strided_slice %6 {offsets = [0, 72], sizes = [32, 8], strides = [1, 1]} : vector<32x96xf32> to vector<32x8xf32>
    %60 = vector.shape_cast %59 : vector<32x8xf32> to vector<2x16x8xf32>
    "tpu.trace_start"() <{level = 10 : i32, message = "bld,bmd->blm"}> : () -> ()
    %cst_22 = arith.constant dense<0.000000e+00> : vector<2x16x16xf32>
    %61 = tpu.matmul %56, %58, %cst_22 {dimension_numbers = #tpu.dot_dimension_numbers<[2], [2], [1], [1], [0, 0, 0, 1, 1, 1], [0], [0]>} : vector<2x16x8xf32>, vector<2x16x8xf32>, vector<2x16x16xf32> -> vector<2x16x16xf32>
    "tpu.trace_stop"() : () -> ()
    %cst_23 = arith.constant dense<0xFF800000> : vector<2x16xf32>
    %62 = vector.multi_reduction <maximumf>, %61, %cst_23 [2] : vector<2x16x16xf32> to vector<2x16xf32>
    %63 = vector.shape_cast %62 : vector<2x16xf32> to vector<2x16x1xf32>
    %64 = vector.broadcast %63 : vector<2x16x1xf32> to vector<2x16x16xf32>
    %65 = arith.cmpf oge, %61, %64 : vector<2x16x16xf32>
    %66 = arith.extui %65 : vector<2x16x16xi1> to vector<2x16x16xi32>
    %67 = arith.sitofp %66 : vector<2x16x16xi32> to vector<2x16x16xf32>
    %cst_24 = arith.constant dense<0.000000e+00> : vector<2x16xf32>
    %68 = vector.multi_reduction <add>, %67, %cst_24 [2] : vector<2x16x16xf32> to vector<2x16xf32>
    %69 = vector.shape_cast %68 : vector<2x16xf32> to vector<2x16x1xf32>
    %70 = vector.broadcast %63 : vector<2x16x1xf32> to vector<2x16x16xf32>
    %71 = arith.cmpf olt, %61, %70 : vector<2x16x16xf32>
    %cst_25 = arith.constant -1.000000e+30 : f32
    %72 = vector.broadcast %cst_25 : f32 to vector<2x16x16xf32>
    %73 = arith.select %71, %61, %72 : vector<2x16x16xi1>, vector<2x16x16xf32>
    %cst_26 = arith.constant dense<0xFF800000> : vector<2x16xf32>
    %74 = vector.multi_reduction <maximumf>, %73, %cst_26 [2] : vector<2x16x16xf32> to vector<2x16xf32>
    %75 = vector.shape_cast %74 : vector<2x16xf32> to vector<2x16x1xf32>
    %cst_27 = arith.constant 2.000000e+00 : f32
    %76 = vector.broadcast %cst_27 : f32 to vector<2x16x1xf32>
    %77 = arith.cmpf oge, %69, %76 : vector<2x16x1xf32>
    %78 = arith.select %77, %63, %75 : vector<2x16x1xi1>, vector<2x16x1xf32>
    %79 = vector.broadcast %78 : vector<2x16x1xf32> to vector<2x16x16xf32>
    %80 = arith.cmpf oge, %61, %79 : vector<2x16x16xf32>
    %cst_28 = arith.constant -1.000000e+30 : f32
    %81 = vector.broadcast %cst_28 : f32 to vector<2x16x16xf32>
    %82 = arith.select %80, %61, %81 : vector<2x16x16xi1>, vector<2x16x16xf32>
    %cst_29 = arith.constant dense<0xFF800000> : vector<2x16xf32>
    %83 = vector.multi_reduction <maximumf>, %82, %cst_29 [2] : vector<2x16x16xf32> to vector<2x16xf32>
    %84 = vector.shape_cast %83 : vector<2x16xf32> to vector<2x16x1xf32>
    %85 = vector.broadcast %84 : vector<2x16x1xf32> to vector<2x16x16xf32>
    %86 = arith.subf %82, %85 : vector<2x16x16xf32>
    %87 = math.exp %86 : vector<2x16x16xf32>
    %cst_30 = arith.constant dense<0.000000e+00> : vector<2x16xf32>
    %88 = vector.multi_reduction <add>, %87, %cst_30 [2] : vector<2x16x16xf32> to vector<2x16xf32>
    %89 = vector.shape_cast %88 : vector<2x16xf32> to vector<2x16x1xf32>
    %90 = tpu.reciprocal %89 {approx = true} : vector<2x16x1xf32> -> vector<2x16x1xf32>
    %91 = vector.broadcast %90 : vector<2x16x1xf32> to vector<2x16x16xf32>
    %92 = arith.mulf %87, %91 : vector<2x16x16xf32>
    "tpu.trace_start"() <{level = 10 : i32, message = "blm,bmd->bld"}> : () -> ()
    %cst_31 = arith.constant dense<0.000000e+00> : vector<2x16x8xf32>
    %93 = tpu.matmul %92, %60, %cst_31 {dimension_numbers = #tpu.dot_dimension_numbers<[2], [1], [1], [2], [0, 0, 0, 1, 1, 2], [0], [0]>} : vector<2x16x16xf32>, vector<2x16x8xf32>, vector<2x16x8xf32> -> vector<2x16x8xf32>
    "tpu.trace_stop"() : () -> ()
    %94 = vector.shape_cast %93 : vector<2x16x8xf32> to vector<32x8xf32>
    %c8 = arith.constant 8 : index
    %c0_32 = arith.constant 0 : index
    %95 = vector.load %arg4[%c8, %c0_32] : memref<32x32xf32, #tpu.memory_space<vmem>>, vector<8x32xf32>
    %cst_33 = arith.constant dense<0.000000e+00> : vector<32x32xf32>
    %96 = tpu.matmul %94, %95, %cst_33 {dimension_numbers = #tpu.dot_dimension_numbers<[1], [0], [0], [1], [0, 0, 1, 1], [], []>} : vector<32x8xf32>, vector<8x32xf32>, vector<32x32xf32> -> vector<32x32xf32>
    %97 = arith.addf %52, %96 : vector<32x32xf32>
    %98 = vector.extract_strided_slice %6 {offsets = [0, 16], sizes = [32, 8], strides = [1, 1]} : vector<32x96xf32> to vector<32x8xf32>
    %cst_34 = arith.constant 0.353553385 : f32
    %99 = vector.broadcast %cst_34 : f32 to vector<32x8xf32>
    %100 = arith.mulf %98, %99 : vector<32x8xf32>
    %101 = vector.shape_cast %100 : vector<32x8xf32> to vector<2x16x8xf32>
    %102 = vector.extract_strided_slice %6 {offsets = [0, 48], sizes = [32, 8], strides = [1, 1]} : vector<32x96xf32> to vector<32x8xf32>
    %103 = vector.shape_cast %102 : vector<32x8xf32> to vector<2x16x8xf32>
    %104 = vector.extract_strided_slice %6 {offsets = [0, 80], sizes = [32, 8], strides = [1, 1]} : vector<32x96xf32> to vector<32x8xf32>
    %105 = vector.shape_cast %104 : vector<32x8xf32> to vector<2x16x8xf32>
    "tpu.trace_start"() <{level = 10 : i32, message = "bld,bmd->blm"}> : () -> ()
    %cst_35 = arith.constant dense<0.000000e+00> : vector<2x16x16xf32>
    %106 = tpu.matmul %101, %103, %cst_35 {dimension_numbers = #tpu.dot_dimension_numbers<[2], [2], [1], [1], [0, 0, 0, 1, 1, 1], [0], [0]>} : vector<2x16x8xf32>, vector<2x16x8xf32>, vector<2x16x16xf32> -> vector<2x16x16xf32>
    "tpu.trace_stop"() : () -> ()
    %cst_36 = arith.constant dense<0xFF800000> : vector<2x16xf32>
    %107 = vector.multi_reduction <maximumf>, %106, %cst_36 [2] : vector<2x16x16xf32> to vector<2x16xf32>
    %108 = vector.shape_cast %107 : vector<2x16xf32> to vector<2x16x1xf32>
    %109 = vector.broadcast %108 : vector<2x16x1xf32> to vector<2x16x16xf32>
    %110 = arith.cmpf oge, %106, %109 : vector<2x16x16xf32>
    %111 = arith.extui %110 : vector<2x16x16xi1> to vector<2x16x16xi32>
    %112 = arith.sitofp %111 : vector<2x16x16xi32> to vector<2x16x16xf32>
    %cst_37 = arith.constant dense<0.000000e+00> : vector<2x16xf32>
    %113 = vector.multi_reduction <add>, %112, %cst_37 [2] : vector<2x16x16xf32> to vector<2x16xf32>
    %114 = vector.shape_cast %113 : vector<2x16xf32> to vector<2x16x1xf32>
    %115 = vector.broadcast %108 : vector<2x16x1xf32> to vector<2x16x16xf32>
    %116 = arith.cmpf olt, %106, %115 : vector<2x16x16xf32>
    %cst_38 = arith.constant -1.000000e+30 : f32
    %117 = vector.broadcast %cst_38 : f32 to vector<2x16x16xf32>
    %118 = arith.select %116, %106, %117 : vector<2x16x16xi1>, vector<2x16x16xf32>
    %cst_39 = arith.constant dense<0xFF800000> : vector<2x16xf32>
    %119 = vector.multi_reduction <maximumf>, %118, %cst_39 [2] : vector<2x16x16xf32> to vector<2x16xf32>
    %120 = vector.shape_cast %119 : vector<2x16xf32> to vector<2x16x1xf32>
    %cst_40 = arith.constant 2.000000e+00 : f32
    %121 = vector.broadcast %cst_40 : f32 to vector<2x16x1xf32>
    %122 = arith.cmpf oge, %114, %121 : vector<2x16x1xf32>
    %123 = arith.select %122, %108, %120 : vector<2x16x1xi1>, vector<2x16x1xf32>
    %124 = vector.broadcast %123 : vector<2x16x1xf32> to vector<2x16x16xf32>
    %125 = arith.cmpf oge, %106, %124 : vector<2x16x16xf32>
    %cst_41 = arith.constant -1.000000e+30 : f32
    %126 = vector.broadcast %cst_41 : f32 to vector<2x16x16xf32>
    %127 = arith.select %125, %106, %126 : vector<2x16x16xi1>, vector<2x16x16xf32>
    %cst_42 = arith.constant dense<0xFF800000> : vector<2x16xf32>
    %128 = vector.multi_reduction <maximumf>, %127, %cst_42 [2] : vector<2x16x16xf32> to vector<2x16xf32>
    %129 = vector.shape_cast %128 : vector<2x16xf32> to vector<2x16x1xf32>
    %130 = vector.broadcast %129 : vector<2x16x1xf32> to vector<2x16x16xf32>
    %131 = arith.subf %127, %130 : vector<2x16x16xf32>
    %132 = math.exp %131 : vector<2x16x16xf32>
    %cst_43 = arith.constant dense<0.000000e+00> : vector<2x16xf32>
    %133 = vector.multi_reduction <add>, %132, %cst_43 [2] : vector<2x16x16xf32> to vector<2x16xf32>
    %134 = vector.shape_cast %133 : vector<2x16xf32> to vector<2x16x1xf32>
    %135 = tpu.reciprocal %134 {approx = true} : vector<2x16x1xf32> -> vector<2x16x1xf32>
    %136 = vector.broadcast %135 : vector<2x16x1xf32> to vector<2x16x16xf32>
    %137 = arith.mulf %132, %136 : vector<2x16x16xf32>
    "tpu.trace_start"() <{level = 10 : i32, message = "blm,bmd->bld"}> : () -> ()
    %cst_44 = arith.constant dense<0.000000e+00> : vector<2x16x8xf32>
    %138 = tpu.matmul %137, %105, %cst_44 {dimension_numbers = #tpu.dot_dimension_numbers<[2], [1], [1], [2], [0, 0, 0, 1, 1, 2], [0], [0]>} : vector<2x16x16xf32>, vector<2x16x8xf32>, vector<2x16x8xf32> -> vector<2x16x8xf32>
    "tpu.trace_stop"() : () -> ()
    %139 = vector.shape_cast %138 : vector<2x16x8xf32> to vector<32x8xf32>
    %c16 = arith.constant 16 : index
    %c0_45 = arith.constant 0 : index
    %140 = vector.load %arg4[%c16, %c0_45] : memref<32x32xf32, #tpu.memory_space<vmem>>, vector<8x32xf32>
    %cst_46 = arith.constant dense<0.000000e+00> : vector<32x32xf32>
    %141 = tpu.matmul %139, %140, %cst_46 {dimension_numbers = #tpu.dot_dimension_numbers<[1], [0], [0], [1], [0, 0, 1, 1], [], []>} : vector<32x8xf32>, vector<8x32xf32>, vector<32x32xf32> -> vector<32x32xf32>
    %142 = arith.addf %97, %141 : vector<32x32xf32>
    %143 = vector.extract_strided_slice %6 {offsets = [0, 24], sizes = [32, 8], strides = [1, 1]} : vector<32x96xf32> to vector<32x8xf32>
    %cst_47 = arith.constant 0.353553385 : f32
    %144 = vector.broadcast %cst_47 : f32 to vector<32x8xf32>
    %145 = arith.mulf %143, %144 : vector<32x8xf32>
    %146 = vector.shape_cast %145 : vector<32x8xf32> to vector<2x16x8xf32>
    %147 = vector.extract_strided_slice %6 {offsets = [0, 56], sizes = [32, 8], strides = [1, 1]} : vector<32x96xf32> to vector<32x8xf32>
    %148 = vector.shape_cast %147 : vector<32x8xf32> to vector<2x16x8xf32>
    %149 = vector.extract_strided_slice %6 {offsets = [0, 88], sizes = [32, 8], strides = [1, 1]} : vector<32x96xf32> to vector<32x8xf32>
    %150 = vector.shape_cast %149 : vector<32x8xf32> to vector<2x16x8xf32>
    "tpu.trace_start"() <{level = 10 : i32, message = "bld,bmd->blm"}> : () -> ()
    %cst_48 = arith.constant dense<0.000000e+00> : vector<2x16x16xf32>
    %151 = tpu.matmul %146, %148, %cst_48 {dimension_numbers = #tpu.dot_dimension_numbers<[2], [2], [1], [1], [0, 0, 0, 1, 1, 1], [0], [0]>} : vector<2x16x8xf32>, vector<2x16x8xf32>, vector<2x16x16xf32> -> vector<2x16x16xf32>
    "tpu.trace_stop"() : () -> ()
    %cst_49 = arith.constant dense<0xFF800000> : vector<2x16xf32>
    %152 = vector.multi_reduction <maximumf>, %151, %cst_49 [2] : vector<2x16x16xf32> to vector<2x16xf32>
    %153 = vector.shape_cast %152 : vector<2x16xf32> to vector<2x16x1xf32>
    %154 = vector.broadcast %153 : vector<2x16x1xf32> to vector<2x16x16xf32>
    %155 = arith.cmpf oge, %151, %154 : vector<2x16x16xf32>
    %156 = arith.extui %155 : vector<2x16x16xi1> to vector<2x16x16xi32>
    %157 = arith.sitofp %156 : vector<2x16x16xi32> to vector<2x16x16xf32>
    %cst_50 = arith.constant dense<0.000000e+00> : vector<2x16xf32>
    %158 = vector.multi_reduction <add>, %157, %cst_50 [2] : vector<2x16x16xf32> to vector<2x16xf32>
    %159 = vector.shape_cast %158 : vector<2x16xf32> to vector<2x16x1xf32>
    %160 = vector.broadcast %153 : vector<2x16x1xf32> to vector<2x16x16xf32>
    %161 = arith.cmpf olt, %151, %160 : vector<2x16x16xf32>
    %cst_51 = arith.constant -1.000000e+30 : f32
    %162 = vector.broadcast %cst_51 : f32 to vector<2x16x16xf32>
    %163 = arith.select %161, %151, %162 : vector<2x16x16xi1>, vector<2x16x16xf32>
    %cst_52 = arith.constant dense<0xFF800000> : vector<2x16xf32>
    %164 = vector.multi_reduction <maximumf>, %163, %cst_52 [2] : vector<2x16x16xf32> to vector<2x16xf32>
    %165 = vector.shape_cast %164 : vector<2x16xf32> to vector<2x16x1xf32>
    %cst_53 = arith.constant 2.000000e+00 : f32
    %166 = vector.broadcast %cst_53 : f32 to vector<2x16x1xf32>
    %167 = arith.cmpf oge, %159, %166 : vector<2x16x1xf32>
    %168 = arith.select %167, %153, %165 : vector<2x16x1xi1>, vector<2x16x1xf32>
    %169 = vector.broadcast %168 : vector<2x16x1xf32> to vector<2x16x16xf32>
    %170 = arith.cmpf oge, %151, %169 : vector<2x16x16xf32>
    %cst_54 = arith.constant -1.000000e+30 : f32
    %171 = vector.broadcast %cst_54 : f32 to vector<2x16x16xf32>
    %172 = arith.select %170, %151, %171 : vector<2x16x16xi1>, vector<2x16x16xf32>
    %cst_55 = arith.constant dense<0xFF800000> : vector<2x16xf32>
    %173 = vector.multi_reduction <maximumf>, %172, %cst_55 [2] : vector<2x16x16xf32> to vector<2x16xf32>
    %174 = vector.shape_cast %173 : vector<2x16xf32> to vector<2x16x1xf32>
    %175 = vector.broadcast %174 : vector<2x16x1xf32> to vector<2x16x16xf32>
    %176 = arith.subf %172, %175 : vector<2x16x16xf32>
    %177 = math.exp %176 : vector<2x16x16xf32>
    %cst_56 = arith.constant dense<0.000000e+00> : vector<2x16xf32>
    %178 = vector.multi_reduction <add>, %177, %cst_56 [2] : vector<2x16x16xf32> to vector<2x16xf32>
    %179 = vector.shape_cast %178 : vector<2x16xf32> to vector<2x16x1xf32>
    %180 = tpu.reciprocal %179 {approx = true} : vector<2x16x1xf32> -> vector<2x16x1xf32>
    %181 = vector.broadcast %180 : vector<2x16x1xf32> to vector<2x16x16xf32>
    %182 = arith.mulf %177, %181 : vector<2x16x16xf32>
    "tpu.trace_start"() <{level = 10 : i32, message = "blm,bmd->bld"}> : () -> ()
    %cst_57 = arith.constant dense<0.000000e+00> : vector<2x16x8xf32>
    %183 = tpu.matmul %182, %150, %cst_57 {dimension_numbers = #tpu.dot_dimension_numbers<[2], [1], [1], [2], [0, 0, 0, 1, 1, 2], [0], [0]>} : vector<2x16x16xf32>, vector<2x16x8xf32>, vector<2x16x8xf32> -> vector<2x16x8xf32>
    "tpu.trace_stop"() : () -> ()
    %184 = vector.shape_cast %183 : vector<2x16x8xf32> to vector<32x8xf32>
    %c24 = arith.constant 24 : index
    %c0_58 = arith.constant 0 : index
    %185 = vector.load %arg4[%c24, %c0_58] : memref<32x32xf32, #tpu.memory_space<vmem>>, vector<8x32xf32>
    %cst_59 = arith.constant dense<0.000000e+00> : vector<32x32xf32>
    %186 = tpu.matmul %184, %185, %cst_59 {dimension_numbers = #tpu.dot_dimension_numbers<[1], [0], [0], [1], [0, 0, 1, 1], [], []>} : vector<32x8xf32>, vector<8x32xf32>, vector<32x32xf32> -> vector<32x32xf32>
    %187 = arith.addf %142, %186 : vector<32x32xf32>
    %c0_60 = arith.constant 0 : index
    %c0_61 = arith.constant 0 : index
    %188 = vector.load %arg5[%c0_60, %c0_61] : memref<1x32xf32, #tpu.memory_space<vmem>>, vector<1x32xf32>
    %189 = vector.broadcast %188 : vector<1x32xf32> to vector<32x32xf32>
    %190 = arith.addf %187, %189 : vector<32x32xf32>
    %191 = arith.addf %1, %190 : vector<32x32xf32>
    %c0_62 = arith.constant 0 : index
    %c0_63 = arith.constant 0 : index
    %192 = vector.load %arg6[%c0_62, %c0_63] : memref<1x32xf32, #tpu.memory_space<vmem>>, vector<1x32xf32>
    %c0_64 = arith.constant 0 : index
    %c0_65 = arith.constant 0 : index
    %193 = vector.load %arg7[%c0_64, %c0_65] : memref<1x32xf32, #tpu.memory_space<vmem>>, vector<1x32xf32>
    %cst_66 = arith.constant dense<0.000000e+00> : vector<32xf32>
    %194 = vector.multi_reduction <add>, %191, %cst_66 [1] : vector<32x32xf32> to vector<32xf32>
    %195 = vector.shape_cast %194 : vector<32xf32> to vector<32x1xf32>
    %cst_67 = arith.constant 3.200000e+01 : f32
    %196 = vector.broadcast %cst_67 : f32 to vector<32x1xf32>
    %197 = arith.divf %195, %196 : vector<32x1xf32>
    %198 = vector.broadcast %197 : vector<32x1xf32> to vector<32x32xf32>
    %199 = arith.subf %191, %198 : vector<32x32xf32>
    %200 = arith.mulf %199, %199 : vector<32x32xf32>
    %cst_68 = arith.constant dense<0.000000e+00> : vector<32xf32>
    %201 = vector.multi_reduction <add>, %200, %cst_68 [1] : vector<32x32xf32> to vector<32xf32>
    %202 = vector.shape_cast %201 : vector<32xf32> to vector<32x1xf32>
    %cst_69 = arith.constant 3.200000e+01 : f32
    %203 = vector.broadcast %cst_69 : f32 to vector<32x1xf32>
    %204 = arith.divf %202, %203 : vector<32x1xf32>
    %205 = vector.broadcast %197 : vector<32x1xf32> to vector<32x32xf32>
    %206 = arith.subf %191, %205 : vector<32x32xf32>
    %cst_70 = arith.constant 9.99999974E-6 : f32
    %207 = vector.broadcast %cst_70 : f32 to vector<32x1xf32>
    %208 = arith.addf %204, %207 : vector<32x1xf32>
    %209 = math.rsqrt %208 : vector<32x1xf32>
    %210 = vector.broadcast %209 : vector<32x1xf32> to vector<32x32xf32>
    %211 = arith.mulf %206, %210 : vector<32x32xf32>
    %212 = vector.broadcast %192 : vector<1x32xf32> to vector<32x32xf32>
    %213 = arith.mulf %211, %212 : vector<32x32xf32>
    %214 = vector.broadcast %193 : vector<1x32xf32> to vector<32x32xf32>
    %215 = arith.addf %213, %214 : vector<32x32xf32>
    %c0_71 = arith.constant 0 : index
    %c0_72 = arith.constant 0 : index
    %216 = vector.load %arg8[%c0_71, %c0_72] : memref<32x64xf32, #tpu.memory_space<vmem>>, vector<32x64xf32>
    %cst_73 = arith.constant dense<0.000000e+00> : vector<32x64xf32>
    %217 = tpu.matmul %215, %216, %cst_73 {dimension_numbers = #tpu.dot_dimension_numbers<[1], [0], [0], [1], [0, 0, 1, 1], [], []>} : vector<32x32xf32>, vector<32x64xf32>, vector<32x64xf32> -> vector<32x64xf32>
    %c0_74 = arith.constant 0 : index
    %c0_75 = arith.constant 0 : index
    %218 = vector.load %arg9[%c0_74, %c0_75] : memref<1x64xf32, #tpu.memory_space<vmem>>, vector<1x64xf32>
    %219 = vector.broadcast %218 : vector<1x64xf32> to vector<32x64xf32>
    %220 = arith.addf %217, %219 : vector<32x64xf32>
    %cst_76 = arith.constant 0.000000e+00 : f32
    %221 = vector.broadcast %cst_76 : f32 to vector<32x64xf32>
    %222 = arith.maximumf %220, %221 : vector<32x64xf32>
    %c0_77 = arith.constant 0 : index
    %c0_78 = arith.constant 0 : index
    %223 = vector.load %arg10[%c0_77, %c0_78] : memref<64x32xf32, #tpu.memory_space<vmem>>, vector<64x32xf32>
    %cst_79 = arith.constant dense<0.000000e+00> : vector<32x32xf32>
    %224 = tpu.matmul %222, %223, %cst_79 {dimension_numbers = #tpu.dot_dimension_numbers<[1], [0], [0], [1], [0, 0, 1, 1], [], []>} : vector<32x64xf32>, vector<64x32xf32>, vector<32x32xf32> -> vector<32x32xf32>
    %c0_80 = arith.constant 0 : index
    %c0_81 = arith.constant 0 : index
    %225 = vector.load %arg11[%c0_80, %c0_81] : memref<1x32xf32, #tpu.memory_space<vmem>>, vector<1x32xf32>
    %226 = vector.broadcast %225 : vector<1x32xf32> to vector<32x32xf32>
    %227 = arith.addf %224, %226 : vector<32x32xf32>
    %228 = arith.addf %215, %227 : vector<32x32xf32>
    %c0_82 = arith.constant 0 : index
    %c0_83 = arith.constant 0 : index
    %229 = vector.load %arg12[%c0_82, %c0_83] : memref<1x32xf32, #tpu.memory_space<vmem>>, vector<1x32xf32>
    %c0_84 = arith.constant 0 : index
    %c0_85 = arith.constant 0 : index
    %230 = vector.load %arg13[%c0_84, %c0_85] : memref<1x32xf32, #tpu.memory_space<vmem>>, vector<1x32xf32>
    %cst_86 = arith.constant dense<0.000000e+00> : vector<32xf32>
    %231 = vector.multi_reduction <add>, %228, %cst_86 [1] : vector<32x32xf32> to vector<32xf32>
    %232 = vector.shape_cast %231 : vector<32xf32> to vector<32x1xf32>
    %cst_87 = arith.constant 3.200000e+01 : f32
    %233 = vector.broadcast %cst_87 : f32 to vector<32x1xf32>
    %234 = arith.divf %232, %233 : vector<32x1xf32>
    %235 = vector.broadcast %234 : vector<32x1xf32> to vector<32x32xf32>
    %236 = arith.subf %228, %235 : vector<32x32xf32>
    %237 = arith.mulf %236, %236 : vector<32x32xf32>
    %cst_88 = arith.constant dense<0.000000e+00> : vector<32xf32>
    %238 = vector.multi_reduction <add>, %237, %cst_88 [1] : vector<32x32xf32> to vector<32xf32>
    %239 = vector.shape_cast %238 : vector<32xf32> to vector<32x1xf32>
    %cst_89 = arith.constant 3.200000e+01 : f32
    %240 = vector.broadcast %cst_89 : f32 to vector<32x1xf32>
    %241 = arith.divf %239, %240 : vector<32x1xf32>
    %242 = vector.broadcast %234 : vector<32x1xf32> to vector<32x32xf32>
    %243 = arith.subf %228, %242 : vector<32x32xf32>
    %cst_90 = arith.constant 9.99999974E-6 : f32
    %244 = vector.broadcast %cst_90 : f32 to vector<32x1xf32>
    %245 = arith.addf %241, %244 : vector<32x1xf32>
    %246 = math.rsqrt %245 : vector<32x1xf32>
    %247 = vector.broadcast %246 : vector<32x1xf32> to vector<32x32xf32>
    %248 = arith.mulf %243, %247 : vector<32x32xf32>
    %249 = vector.broadcast %229 : vector<1x32xf32> to vector<32x32xf32>
    %250 = arith.mulf %248, %249 : vector<32x32xf32>
    %251 = vector.broadcast %230 : vector<1x32xf32> to vector<32x32xf32>
    %252 = arith.addf %250, %251 : vector<32x32xf32>
    %253 = vector.shape_cast %252 : vector<32x32xf32> to vector<2x16x32xf32>
    %c0_91 = arith.constant 0 : index
    %c0_92 = arith.constant 0 : index
    %c0_93 = arith.constant 0 : index
    %254 = vector.load %arg14[%c0_91, %c0_92, %c0_93] : memref<2x16x32xf32, #tpu.memory_space<vmem>>, vector<2x16x32xf32>
    tpu.vector_store %arg14[%c0_91, %c0_92, %c0_93], %253 {strides = array<i32>} : memref<2x16x32xf32, #tpu.memory_space<vmem>>, vector<2x16x32xf32>,
    return
  }
  func.func @transform_0(%arg0: i32) -> (i32, i32, i32) {
    %c0_i32 = arith.constant 0 : i32
    %c0_i32_0 = arith.constant 0 : i32
    %c0_i32_1 = arith.constant 0 : i32
    return %arg0, %c0_i32, %c0_i32_0 : i32, i32, i32
  }
  func.func @transform_1(%arg0: i32) -> (i32, i32) {
    %c0_i32 = arith.constant 0 : i32
    %c0_i32_0 = arith.constant 0 : i32
    %c0_i32_1 = arith.constant 0 : i32
    return %c0_i32, %c0_i32_0 : i32, i32
  }
  func.func @transform_2(%arg0: i32) -> (i32, i32) {
    %c0_i32 = arith.constant 0 : i32
    %c0_i32_0 = arith.constant 0 : i32
    %c0_i32_1 = arith.constant 0 : i32
    return %c0_i32, %c0_i32_0 : i32, i32
  }
  func.func @transform_3(%arg0: i32) -> (i32, i32) {
    %c0_i32 = arith.constant 0 : i32
    %c0_i32_0 = arith.constant 0 : i32
    %c0_i32_1 = arith.constant 0 : i32
    return %c0_i32, %c0_i32_0 : i32, i32
  }
  func.func @transform_4(%arg0: i32) -> (i32, i32) {
    %c0_i32 = arith.constant 0 : i32
    %c0_i32_0 = arith.constant 0 : i32
    %c0_i32_1 = arith.constant 0 : i32
    return %c0_i32, %c0_i32_0 : i32, i32
  }
  func.func @transform_5(%arg0: i32) -> (i32, i32) {
    %c0_i32 = arith.constant 0 : i32
    %c0_i32_0 = arith.constant 0 : i32
    %c0_i32_1 = arith.constant 0 : i32
    return %c0_i32, %c0_i32_0 : i32, i32
  }
  func.func @transform_6(%arg0: i32) -> (i32, i32) {
    %c0_i32 = arith.constant 0 : i32
    %c0_i32_0 = arith.constant 0 : i32
    %c0_i32_1 = arith.constant 0 : i32
    return %c0_i32, %c0_i32_0 : i32, i32
  }
  func.func @transform_7(%arg0: i32) -> (i32, i32) {
    %c0_i32 = arith.constant 0 : i32
    %c0_i32_0 = arith.constant 0 : i32
    %c0_i32_1 = arith.constant 0 : i32
    return %c0_i32, %c0_i32_0 : i32, i32
  }
  func.func @transform_8(%arg0: i32) -> (i32, i32) {
    %c0_i32 = arith.constant 0 : i32
    %c0_i32_0 = arith.constant 0 : i32
    %c0_i32_1 = arith.constant 0 : i32
    return %c0_i32, %c0_i32_0 : i32, i32
  }
  func.func @transform_9(%arg0: i32) -> (i32, i32) {
    %c0_i32 = arith.constant 0 : i32
    %c0_i32_0 = arith.constant 0 : i32
    %c0_i32_1 = arith.constant 0 : i32
    return %c0_i32, %c0_i32_0 : i32, i32
  }
  func.func @transform_10(%arg0: i32) -> (i32, i32) {
    %c0_i32 = arith.constant 0 : i32
    %c0_i32_0 = arith.constant 0 : i32
    %c0_i32_1 = arith.constant 0 : i32
    return %c0_i32, %c0_i32_0 : i32, i32
  }
  func.func @transform_11(%arg0: i32) -> (i32, i32) {
    %c0_i32 = arith.constant 0 : i32
    %c0_i32_0 = arith.constant 0 : i32
    %c0_i32_1 = arith.constant 0 : i32
    return %c0_i32, %c0_i32_0 : i32, i32
  }
  func.func @transform_12(%arg0: i32) -> (i32, i32) {
    %c0_i32 = arith.constant 0 : i32
    %c0_i32_0 = arith.constant 0 : i32
    %c0_i32_1 = arith.constant 0 : i32
    return %c0_i32, %c0_i32_0 : i32, i32
  }
  func.func @transform_13(%arg0: i32) -> (i32, i32, i32) {
    %c0_i32 = arith.constant 0 : i32
    %c0_i32_0 = arith.constant 0 : i32
    %c0_i32_1 = arith.constant 0 : i32
    return %arg0, %c0_i32, %c0_i32_0 : i32, i32, i32
  }
}

</mosaic_0001>

<llo_original>
// kernel: tpu_custom_call.1
$region0: #{tpu_custom_call.1}
  #allocation0 [shape = 'u32[]', space=smem, size = 0x4, offset = 0x4, fixed_abs, tag = 'smem constant byte address 0x4 - core index']
  #allocation1 [shape = 'u32[144,128]{1,0:T(1,128)}', space=vmem, size = 0x12000, scoped, tag = 'internal scratch']
  %s0 = inlined_call_operand.vmem [shape: f32[2,16,32], index: 0, kind: input, shape index: {}]
  %s1 = inlined_call_operand.vmem [shape: f32[32,96], index: 1, kind: input, shape index: {}]
  %s2 = inlined_call_operand.vmem [shape: f32[1,96], index: 2, kind: input, shape index: {}]
  %s3 = inlined_call_operand.vmem [shape: f32[32,32], index: 3, kind: input, shape index: {}]
  %s4 = inlined_call_operand.vmem [shape: f32[1,32], index: 4, kind: input, shape index: {}]
  %s5 = inlined_call_operand.vmem [shape: f32[1,32], index: 5, kind: input, shape index: {}]
  %s6 = inlined_call_operand.vmem [shape: f32[1,32], index: 6, kind: input, shape index: {}]
  %s7 = inlined_call_operand.hbm [shape: f32[32,64], index: 7, kind: input, shape index: {}]
  %s8 = inlined_call_operand.vmem [shape: f32[1,64], index: 8, kind: input, shape index: {}]
  %s9 = inlined_call_operand.vmem [shape: f32[64,32], index: 9, kind: input, shape index: {}]
  %s10 = inlined_call_operand.vmem [shape: f32[1,32], index: 10, kind: input, shape index: {}]
  %s11 = inlined_call_operand.vmem [shape: f32[1,32], index: 11, kind: input, shape index: {}]
  %s12 = inlined_call_operand.vmem [shape: f32[1,32], index: 12, kind: input, shape index: {}]
  %s13 = inlined_call_operand.hbm [shape: f32[2,16,32], index: 13, kind: output, shape index: {}]
  %s14 = sld [smem:[#allocation0]]
  $region66: #{tpu_custom_call.1} parent=0
    _
  %s16 = ssub.s32 1, %s14
  %s17 = scalar_select 0, %s16, %s14
  $region1: #{tpu_custom_call.1} parent=0
    #allocation2 [shape = 'u8[16384]{0}', space=vmem, size = 0x4000, scoped, tag = 'input window, operand 7, single buffered']
    #allocation3 [shape = 's32[1]{0}', space=sflag, size = 0x4, scoped, tag = 'scoped memory for tpu_custom_call.1']
    #allocation4 [shape = 's32[1]{0}', space=sflag, size = 0x4, scoped, tag = 'scoped memory for tpu_custom_call.1']
    #allocation5 [shape = 'u8[16384]{0}', space=vmem, size = 0x4000, scoped, tag = 'output window, operand 0, single buffered']
    %18 = vsyncpa [#allocation3], 0
    %19 = vsyncpa [#allocation4], 0
    // Predicated region
    $region2: #{tpu_custom_call.1} parent=1 // pred_check
      _
    $region3: #{tpu_custom_call.1} parent=1 // pred_check_branch
      %21 = sbr.rel (0) target = $region5
    $region4: #{tpu_custom_call.1} parent=1 // pred_region
      _
    $region5: #{tpu_custom_call.1} parent=1 // pred_fallthru
      _
    // Predicated region
    $region6: #{tpu_custom_call.1} parent=1 // pred_check
      _
    $region7: #{tpu_custom_call.1} parent=1 // pred_check_branch
      %23 = sbr.rel (0) target = $region9
    $region8: #{tpu_custom_call.1} parent=1 // pred_region
      _
    $region9: #{tpu_custom_call.1} parent=1 // pred_fallthru
      _
    // Predicated region
    $region10: #{tpu_custom_call.1} parent=1 // pred_check
      _
    $region11: #{tpu_custom_call.1} parent=1 // pred_check_branch
      %25 = sbr.rel (0) target = $region13
    $region12: #{tpu_custom_call.1} parent=1 // pred_region
      _
    $region13: #{tpu_custom_call.1} parent=1 // pred_fallthru
      _
    // Predicated region
    $region14: #{tpu_custom_call.1} parent=1 // pred_check
      _
    $region15: #{tpu_custom_call.1} parent=1 // pred_check_branch
      %27 = sbr.rel (0) target = $region17
    $region16: #{tpu_custom_call.1} parent=1 // pred_region
      _
    $region17: #{tpu_custom_call.1} parent=1 // pred_fallthru
      _
    // Predicated region
    $region18: #{tpu_custom_call.1} parent=1 // pred_check
      _
    $region19: #{tpu_custom_call.1} parent=1 // pred_check_branch
      %29 = sbr.rel (0) target = $region21
    $region20: #{tpu_custom_call.1} parent=1 // pred_region
      _
    $region21: #{tpu_custom_call.1} parent=1 // pred_fallthru
      _
    // Predicated region
    $region22: #{tpu_custom_call.1} parent=1 // pred_check
      _
    $region23: #{tpu_custom_call.1} parent=1 // pred_check_branch
      %31 = sbr.rel (0) target = $region25
    $region24: #{tpu_custom_call.1} parent=1 // pred_region
      _
    $region25: #{tpu_custom_call.1} parent=1 // pred_fallthru
      _
    // Predicated region
    $region26: #{tpu_custom_call.1} parent=1 // pred_check
      _
    $region27: #{tpu_custom_call.1} parent=1 // pred_check_branch
      %33 = sbr.rel (0) target = $region29
    $region28: #{tpu_custom_call.1} parent=1 // pred_region
      _
    $region29: #{tpu_custom_call.1} parent=1 // pred_fallthru
      _
    // Predicated region
    $region30: #{tpu_custom_call.1} parent=1 // pred_check
      _
    $region31: #{tpu_custom_call.1} parent=1 // pred_check_branch
      %35 = sbr.rel (0) target = $region33
    $region32: #{tpu_custom_call.1} parent=1 // pred_region
      %s37 = ssub.s32 512, 512
      %38 = vsyncadd [#allocation3], %s37
      %s39 = sshll.u32 [#allocation2], 4
      %s40 = int_to_ptr.vmem [resolvable:$true] %s39
      %45 = dma.hbm_to_vmem [thread:$0]  %s7, 512, %s40, [#allocation3], 128, 128, 8
    $region33: #{tpu_custom_call.1} parent=1 // pred_fallthru
      _
    // Predicated region
    $region34: #{tpu_custom_call.1} parent=1 // pred_check
      _
    $region35: #{tpu_custom_call.1} parent=1 // pred_check_branch
      %47 = sbr.rel (0) target = $region37
    $region36: #{tpu_custom_call.1} parent=1 // pred_region
      _
    $region37: #{tpu_custom_call.1} parent=1 // pred_fallthru
      _
    // Predicated region
    $region38: #{tpu_custom_call.1} parent=1 // pred_check
      _
    $region39: #{tpu_custom_call.1} parent=1 // pred_check_branch
      %49 = sbr.rel (0) target = $region41
    $region40: #{tpu_custom_call.1} parent=1 // pred_region
      _
    $region41: #{tpu_custom_call.1} parent=1 // pred_fallthru
      _
    // Predicated region
    $region42: #{tpu_custom_call.1} parent=1 // pred_check
      _
    $region43: #{tpu_custom_call.1} parent=1 // pred_check_branch
      %51 = sbr.rel (0) target = $region45
    $region44: #{tpu_custom_call.1} parent=1 // pred_region
      _
    $region45: #{tpu_custom_call.1} parent=1 // pred_fallthru
      _
    // Predicated region
    $region46: #{tpu_custom_call.1} parent=1 // pred_check
      _
    $region47: #{tpu_custom_call.1} parent=1 // pred_check_branch
      %53 = sbr.rel (0) target = $region49
    $region48: #{tpu_custom_call.1} parent=1 // pred_region
      _
    $region49: #{tpu_custom_call.1} parent=1 // pred_fallthru
      _
    // Predicated region
    $region50: #{tpu_custom_call.1} parent=1 // pred_check
      _
    $region51: #{tpu_custom_call.1} parent=1 // pred_check_branch
      %55 = sbr.rel (0) target = $region53
    $region52: #{tpu_custom_call.1} parent=1 // pred_region
      _
    $region53: #{tpu_custom_call.1} parent=1 // pred_fallthru
      _
    // Predicated region
    $region54: #{tpu_custom_call.1} parent=1 // pred_check
      _
    $region55: #{tpu_custom_call.1} parent=1 // pred_check_branch
      %57 = sbr.rel (0) target = $region57
    $region56: #{tpu_custom_call.1} parent=1 // pred_region
      %58 = dma.done [#allocation3], 512
    $region57: #{tpu_custom_call.1} parent=1 // pred_fallthru
      _
    %v59 = vld [vmem:[%s0] sm:$0xff]
    %v60 = vld [vmem:[%s0 + $0x8] sm:$0xff]
    %v61 = vld [vmem:[%s0 + $0x10] sm:$0xff]
    %v62 = vld [vmem:[%s0 + $0x18] sm:$0xff]
    %v63 = vld [vmem:[%s1] sm:$0xff]
    %v64 = vld [vmem:[%s1 + $0x8] sm:$0xff]
    %v65 = vld [vmem:[%s1 + $0x10] sm:$0xff]
    %v66 = vld [vmem:[%s1 + $0x18] sm:$0xff]
    %v67 = vld [vmem:[%s2] sm:$0x1]
    %v69 = vlaneseq
    %v70 = vshrl.u32 %v69, 7
    %v71 = vsub.s32 0, %v70
    %v72 = vrot.slane %v67, %v71
    %vm74 = vcmask 261120
    %v76 = vsel %vm74, %v59, 0
    %v79 = vsel %vm74, %v60, 0
    %v82 = vsel %vm74, %v61, 0
    %v85 = vsel %vm74, %v62, 0
    %87 = vmatprep.subr.mxu0 0.0
    %88 = vmatpush1.msra.mxu0 0.0
    %89 = vmatprep.subr.mxu0 0.0
    %90 = vmatpush1.msra.mxu0 0.0
    %91 = vmatprep.subr.mxu0 0.0
    %92 = vmatpush1.msra.mxu0 0.0
    %93 = vmatprep.subr.mxu0 0.0
    %94 = vmatpush1.msra.mxu0 0.0
    %95 = vmatprep.subr.mxu0 0.0
    %96 = vmatpush1.msra.mxu0 0.0
    %97 = vmatprep.subr.mxu0 0.0
    %98 = vmatpush1.msra.mxu0 0.0
    %99 = vmatprep.subr.mxu0 0.0
    %100 = vmatpush1.msra.mxu0 0.0
    %101 = vmatprep.subr.mxu0 0.0
    %102 = vmatpush1.msra.mxu0 0.0
    %103 = vmatprep.subr.mxu0 0.0
    %104 = vmatpush1.msra.mxu0 0.0
    %105 = vmatprep.subr.mxu0 0.0
    %106 = vmatpush1.msra.mxu0 0.0
    %107 = vmatprep.subr.mxu0 0.0
    %108 = vmatpush1.msra.mxu0 0.0
    %109 = vmatprep.subr.mxu0 0.0
    %110 = vmatpush1.msra.mxu0 0.0
    %111 = vmatprep.subr.mxu0 0.0
    %112 = vmatpush1.msra.mxu0 %v66
    %113 = vmatprep.subr.mxu0 0.0
    %114 = vmatpush1.msra.mxu0 %v65
    %115 = vmatprep.subr.mxu0 0.0
    %116 = vmatpush1.msra.mxu0 %v64
    %117 = vmatprep.subr.mxu0 0.0
    %118 = vmatpush1.msra.mxu0 %v63
    %119 = vmatprep.subr.mxu0 0.0
    %120 = vmatpush2.msra.mxu0 0.0
    %121 = vmatprep.subr.mxu0 0.0
    %122 = vmatpush2.msra.mxu0 0.0
    %123 = vmatprep.subr.mxu0 0.0
    %124 = vmatpush2.msra.mxu0 0.0
    %125 = vmatprep.subr.mxu0 0.0
    %126 = vmatpush2.msra.mxu0 0.0
    %127 = vmatprep.subr.mxu0 0.0
    %128 = vmatpush2.msra.mxu0 0.0
    %129 = vmatprep.subr.mxu0 0.0
    %130 = vmatpush2.msra.mxu0 0.0
    %131 = vmatprep.subr.mxu0 0.0
    %132 = vmatpush2.msra.mxu0 0.0
    %133 = vmatprep.subr.mxu0 0.0
    %134 = vmatpush2.msra.mxu0 0.0
    %135 = vmatprep.subr.mxu0 0.0
    %136 = vmatpush2.msra.mxu0 0.0
    %137 = vmatprep.subr.mxu0 0.0
    %138 = vmatpush2.msra.mxu0 0.0
    %139 = vmatprep.subr.mxu0 0.0
    %140 = vmatpush2.msra.mxu0 0.0
    %141 = vmatprep.subr.mxu0 0.0
    %142 = vmatpush2.msra.mxu0 0.0
    %143 = vmatprep.subr.mxu0 0.0
    %144 = vmatpush2.msra.mxu0 0.0
    %145 = vmatprep.subr.mxu0 0.0
    %146 = vmatpush2.msra.mxu0 0.0
    %147 = vmatprep.subr.mxu0 0.0
    %148 = vmatpush2.msra.mxu0 0.0
    %149 = vmatprep.subr.mxu0 0.0
    %150 = vmatpush2.msra.mxu0 0.0
    %151 = vmatprep.mubr.f32.mxu0 0.0
    %152 = vmatmul.mubr.f32.gmra.mxu0 %v76
    %v153 = vpop.f32.mrf.mxu0
    %v154 = vadd.f32 %v72, %v153
    %v155 = vpop.f32.mrf.mxu0
    %156 = vmatprep.mubr.f32.mxu0 0.0
    %157 = vmatmul.mubr.f32.gmra.mxu0 %v79
    %v158 = vpop.f32.mrf.mxu0
    %v159 = vadd.f32 %v72, %v158
    %v160 = vpop.f32.mrf.mxu0
    %161 = vmatprep.mubr.f32.mxu0 0.0
    %162 = vmatmul.mubr.f32.gmra.mxu0 %v82
    %v163 = vpop.f32.mrf.mxu0
    %v164 = vadd.f32 %v72, %v163
    %v165 = vpop.f32.mrf.mxu0
    %166 = vmatprep.mubr.f32.mxu0 0.0
    %167 = vmatmul.mubr.f32.gmra.mxu0 %v85
    %v168 = vpop.f32.mrf.mxu0
    %v169 = vadd.f32 %v72, %v168
    %v170 = vpop.f32.mrf.mxu0
    %171 = vdwg.mxu0
    %v172 = vmul.f32 %v154, 0.35355338
    %v173 = vmul.f32 %v159, 0.35355338
    %v174 = vmul.f32 %v164, 0.35355338
    %v175 = vmul.f32 %v169, 0.35355338
    %178 = vrot.lane.b32.xlu0 %v154, 96
    %v179 = vpop.permute.xlu0 %178
    %180 = vrot.lane.b32.xlu0 %v159, 96
    %v181 = vpop.permute.xlu0 %180
    %vm182 = vcmask 64512
    %v184 = vsel %vm182, %v172, 0
    %v187 = vsel %vm182, %v173, 0
    %v189 = vsel %vm182, %v179, 0
    %v191 = vsel %vm182, %v181, 0
    %193 = vmatprep.subr.mxu0 0.0
    %194 = vmatpush1.xpose.msra.mxu0 0.0
    %195 = vmatprep.subr.mxu0 0.0
    %196 = vmatpush1.xpose.msra.mxu0 0.0
    %197 = vmatprep.subr.mxu0 0.0
    %198 = vmatpush1.xpose.msra.mxu0 0.0
    %199 = vmatprep.subr.mxu0 0.0
    %200 = vmatpush1.xpose.msra.mxu0 0.0
    %201 = vmatprep.subr.mxu0 0.0
    %202 = vmatpush1.xpose.msra.mxu0 0.0
    %203 = vmatprep.subr.mxu0 0.0
    %204 = vmatpush1.xpose.msra.mxu0 0.0
    %205 = vmatprep.subr.mxu0 0.0
    %206 = vmatpush1.xpose.msra.mxu0 0.0
    %207 = vmatprep.subr.mxu0 0.0
    %208 = vmatpush1.xpose.msra.mxu0 0.0
    %209 = vmatprep.subr.mxu0 0.0
    %210 = vmatpush1.xpose.msra.mxu0 0.0
    %211 = vmatprep.subr.mxu0 0.0
    %212 = vmatpush1.xpose.msra.mxu0 0.0
    %213 = vmatprep.subr.mxu0 0.0
    %214 = vmatpush1.xpose.msra.mxu0 0.0
    %215 = vmatprep.subr.mxu0 0.0
    %216 = vmatpush1.xpose.msra.mxu0 0.0
    %217 = vmatprep.subr.mxu0 0.0
    %218 = vmatpush1.xpose.msra.mxu0 0.0
    %219 = vmatprep.subr.mxu0 0.0
    %220 = vmatpush1.xpose.msra.mxu0 0.0
    %221 = vmatprep.subr.mxu0 0.0
    %222 = vmatpush1.xpose.msra.mxu0 %v191
    %223 = vmatprep.subr.mxu0 0.0
    %224 = vmatpush1.xpose.msra.mxu0 %v189
    %225 = vmatprep.subr.mxu0 0.0
    %226 = vmatpush2.xpose.msra.mxu0 0.0
    %227 = vmatprep.subr.mxu0 0.0
    %228 = vmatpush2.xpose.msra.mxu0 0.0
    %229 = vmatprep.subr.mxu0 0.0
    %230 = vmatpush2.xpose.msra.mxu0 0.0
    %231 = vmatprep.subr.mxu0 0.0
    %232 = vmatpush2.xpose.msra.mxu0 0.0
    %233 = vmatprep.subr.mxu0 0.0
    %234 = vmatpush2.xpose.msra.mxu0 0.0
    %235 = vmatprep.subr.mxu0 0.0
    %236 = vmatpush2.xpose.msra.mxu0 0.0
    %237 = vmatprep.subr.mxu0 0.0
    %238 = vmatpush2.xpose.msra.mxu0 0.0
    %239 = vmatprep.subr.mxu0 0.0
    %240 = vmatpush2.xpose.msra.mxu0 0.0
    %241 = vmatprep.subr.mxu0 0.0
    %242 = vmatpush2.xpose.msra.mxu0 0.0
    %243 = vmatprep.subr.mxu0 0.0
    %244 = vmatpush2.xpose.msra.mxu0 0.0
    %245 = vmatprep.subr.mxu0 0.0
    %246 = vmatpush2.xpose.msra.mxu0 0.0
    %247 = vmatprep.subr.mxu0 0.0
    %248 = vmatpush2.xpose.msra.mxu0 0.0
    %249 = vmatprep.subr.mxu0 0.0
    %250 = vmatpush2.xpose.msra.mxu0 0.0
    %251 = vmatprep.subr.mxu0 0.0
    %252 = vmatpush2.xpose.msra.mxu0 0.0
    %253 = vmatprep.subr.mxu0 0.0
    %254 = vmatpush2.xpose.msra.mxu0 0.0
    %255 = vmatprep.subr.mxu0 0.0
    %256 = vmatpush2.xpose.msra.mxu0 0.0
    %257 = vmatprep.mubr.f32.mxu0 0.0
    %258 = vmatmul.mubr.f32.gmra.mxu0 %v184
    %v259 = vpop.f32.mrf.mxu0
    %v260 = vadd.f32 0.0, %v259
    %v261 = vpop.f32.mrf.mxu0
    %262 = vmatprep.mubr.f32.mxu0 0.0
    %263 = vmatmul.mubr.f32.gmra.mxu0 %v187
    %v264 = vpop.f32.mrf.mxu0
    %v265 = vadd.f32 0.0, %v264
    %v266 = vpop.f32.mrf.mxu0
    %267 = vdwg.mxu0
    %270 = vrot.lane.b32.xlu0 %v164, 96
    %v271 = vpop.permute.xlu0 %270
    %272 = vrot.lane.b32.xlu0 %v169, 96
    %v273 = vpop.permute.xlu0 %272
    %v275 = vsel %vm182, %v174, 0
    %v278 = vsel %vm182, %v175, 0
    %v280 = vsel %vm182, %v271, 0
    %v282 = vsel %vm182, %v273, 0
    %284 = vmatprep.subr.mxu0 0.0
    %285 = vmatpush1.xpose.msra.mxu0 0.0
    %286 = vmatprep.subr.mxu0 0.0
    %287 = vmatpush1.xpose.msra.mxu0 0.0
    %288 = vmatprep.subr.mxu0 0.0
    %289 = vmatpush1.xpose.msra.mxu0 0.0
    %290 = vmatprep.subr.mxu0 0.0
    %291 = vmatpush1.xpose.msra.mxu0 0.0
    %292 = vmatprep.subr.mxu0 0.0
    %293 = vmatpush1.xpose.msra.mxu0 0.0
    %294 = vmatprep.subr.mxu0 0.0
    %295 = vmatpush1.xpose.msra.mxu0 0.0
    %296 = vmatprep.subr.mxu0 0.0
    %297 = vmatpush1.xpose.msra.mxu0 0.0
    %298 = vmatprep.subr.mxu0 0.0
    %299 = vmatpush1.xpose.msra.mxu0 0.0
    %300 = vmatprep.subr.mxu0 0.0
    %301 = vmatpush1.xpose.msra.mxu0 0.0
    %302 = vmatprep.subr.mxu0 0.0
    %303 = vmatpush1.xpose.msra.mxu0 0.0
    %304 = vmatprep.subr.mxu0 0.0
    %305 = vmatpush1.xpose.msra.mxu0 0.0
    %306 = vmatprep.subr.mxu0 0.0
    %307 = vmatpush1.xpose.msra.mxu0 0.0
    %308 = vmatprep.subr.mxu0 0.0
    %309 = vmatpush1.xpose.msra.mxu0 0.0
    %310 = vmatprep.subr.mxu0 0.0
    %311 = vmatpush1.xpose.msra.mxu0 0.0
    %312 = vmatprep.subr.mxu0 0.0
    %313 = vmatpush1.xpose.msra.mxu0 %v282
    %314 = vmatprep.subr.mxu0 0.0
    %315 = vmatpush1.xpose.msra.mxu0 %v280
    %316 = vmatprep.subr.mxu0 0.0
    %317 = vmatpush2.xpose.msra.mxu0 0.0
    %318 = vmatprep.subr.mxu0 0.0
    %319 = vmatpush2.xpose.msra.mxu0 0.0
    %320 = vmatprep.subr.mxu0 0.0
    %321 = vmatpush2.xpose.msra.mxu0 0.0
    %322 = vmatprep.subr.mxu0 0.0
    %323 = vmatpush2.xpose.msra.mxu0 0.0
    %324 = vmatprep.subr.mxu0 0.0
    %325 = vmatpush2.xpose.msra.mxu0 0.0
    %326 = vmatprep.subr.mxu0 0.0
    %327 = vmatpush2.xpose.msra.mxu0 0.0
    %328 = vmatprep.subr.mxu0 0.0
    %329 = vmatpush2.xpose.msra.mxu0 0.0
    %330 = vmatprep.subr.mxu0 0.0
    %331 = vmatpush2.xpose.msra.mxu0 0.0
    %332 = vmatprep.subr.mxu0 0.0
    %333 = vmatpush2.xpose.msra.mxu0 0.0
    %334 = vmatprep.subr.mxu0 0.0
    %335 = vmatpush2.xpose.msra.mxu0 0.0
    %336 = vmatprep.subr.mxu0 0.0
    %337 = vmatpush2.xpose.msra.mxu0 0.0
    %338 = vmatprep.subr.mxu0 0.0
    %339 = vmatpush2.xpose.msra.mxu0 0.0
    %340 = vmatprep.subr.mxu0 0.0
    %341 = vmatpush2.xpose.msra.mxu0 0.0
    %342 = vmatprep.subr.mxu0 0.0
    %343 = vmatpush2.xpose.msra.mxu0 0.0
    %344 = vmatprep.subr.mxu0 0.0
    %345 = vmatpush2.xpose.msra.mxu0 0.0
    %346 = vmatprep.subr.mxu0 0.0
    %347 = vmatpush2.xpose.msra.mxu0 0.0
    %348 = vmatprep.mubr.f32.mxu0 0.0
    %349 = vmatmul.mubr.f32.gmra.mxu0 %v275
    %v350 = vpop.f32.mrf.mxu0
    %v351 = vadd.f32 0.0, %v350
    %v352 = vpop.f32.mrf.mxu0
    %353 = vmatprep.mubr.f32.mxu0 0.0
    %354 = vmatmul.mubr.f32.gmra.mxu0 %v278
    %v355 = vpop.f32.mrf.mxu0
    %v356 = vadd.f32 0.0, %v355
    %v357 = vpop.f32.mrf.mxu0
    %358 = vdwg.mxu0
    %vm359 = vcmask 130048
    %v360 = vsel %vm359, %v260, -inf
    %361 = vmax.xlane.f32.xlu0 %v360
    %v362 = vpop.xlane.xlu0 %361
    %v363 = vsel %vm359, %v265, -inf
    %364 = vmax.xlane.f32.xlu0 %v363
    %v365 = vpop.xlane.xlu0 %364
    %v366 = vsel %vm359, %v351, -inf
    %367 = vmax.xlane.f32.xlu0 %v366
    %v368 = vpop.xlane.xlu0 %367
    %v369 = vsel %vm359, %v356, -inf
    %370 = vmax.xlane.f32.xlu0 %v369
    %v371 = vpop.xlane.xlu0 %370
    %vm372 = vcmp.ge.f32.partialorder %v260, %v362
    %vm373 = vcmp.ge.f32.partialorder %v265, %v365
    %vm374 = vcmp.ge.f32.partialorder %v351, %v368
    %vm375 = vcmp.ge.f32.partialorder %v356, %v371
    %v376 = vsel %vm372, 1, 0
    %v377 = vsel %vm373, 1, 0
    %v378 = vsel %vm374, 1, 0
    %v379 = vsel %vm375, 1, 0
    %v380 = vcvt.s32.f32 %v376
    %v381 = vcvt.s32.f32 %v377
    %v382 = vcvt.s32.f32 %v378
    %v383 = vcvt.s32.f32 %v379
    %v384 = vsel %vm359, %v380, 0.0
    %385 = vadd.xlane.f32.xlu0 %v384
    %v386 = vpop.xlane.xlu0 %385
    %v387 = vsel %vm359, %v381, 0.0
    %388 = vadd.xlane.f32.xlu0 %v387
    %v389 = vpop.xlane.xlu0 %388
    %v390 = vsel %vm359, %v382, 0.0
    %391 = vadd.xlane.f32.xlu0 %v390
    %v392 = vpop.xlane.xlu0 %391
    %v393 = vsel %vm359, %v383, 0.0
    %394 = vadd.xlane.f32.xlu0 %v393
    %v395 = vpop.xlane.xlu0 %394
    %vm396 = vcmp.lt.f32.partialorder %v260, %v362
    %vm397 = vcmp.lt.f32.partialorder %v265, %v365
    %vm398 = vcmp.lt.f32.partialorder %v351, %v368
    %vm399 = vcmp.lt.f32.partialorder %v356, %v371
    %v400 = vsel %vm396, %v260, -1e+30
    %v401 = vsel %vm397, %v265, -1e+30
    %v402 = vsel %vm398, %v351, -1e+30
    %v403 = vsel %vm399, %v356, -1e+30
    %v404 = vsel %vm359, %v400, -inf
    %405 = vmax.xlane.f32.xlu0 %v404
    %v406 = vpop.xlane.xlu0 %405
    %v407 = vsel %vm359, %v401, -inf
    %408 = vmax.xlane.f32.xlu0 %v407
    %v409 = vpop.xlane.xlu0 %408
    %v410 = vsel %vm359, %v402, -inf
    %411 = vmax.xlane.f32.xlu0 %v410
    %v412 = vpop.xlane.xlu0 %411
    %v413 = vsel %vm359, %v403, -inf
    %414 = vmax.xlane.f32.xlu0 %v413
    %v415 = vpop.xlane.xlu0 %414
    %vm416 = vcmp.ge.f32.partialorder %v386, 2.0
    %vm417 = vcmp.ge.f32.partialorder %v389, 2.0
    %vm418 = vcmp.ge.f32.partialorder %v392, 2.0
    %vm419 = vcmp.ge.f32.partialorder %v395, 2.0
    %v420 = vsel %vm416, %v362, %v406
    %v421 = vsel %vm417, %v365, %v409
    %v422 = vsel %vm418, %v368, %v412
    %v423 = vsel %vm419, %v371, %v415
    %vm424 = vcmp.ge.f32.partialorder %v260, %v420
    %vm425 = vcmp.ge.f32.partialorder %v265, %v421
    %vm426 = vcmp.ge.f32.partialorder %v351, %v422
    %vm427 = vcmp.ge.f32.partialorder %v356, %v423
    %v428 = vsel %vm424, %v260, -1e+30
    %v429 = vsel %vm425, %v265, -1e+30
    %v430 = vsel %vm426, %v351, -1e+30
    %v431 = vsel %vm427, %v356, -1e+30
    %v432 = vsel %vm359, %v428, -inf
    %433 = vmax.xlane.f32.xlu0 %v432
    %v434 = vpop.xlane.xlu0 %433
    %v435 = vsel %vm359, %v429, -inf
    %436 = vmax.xlane.f32.xlu0 %v435
    %v437 = vpop.xlane.xlu0 %436
    %v438 = vsel %vm359, %v430, -inf
    %439 = vmax.xlane.f32.xlu0 %v438
    %v440 = vpop.xlane.xlu0 %439
    %v441 = vsel %vm359, %v431, -inf
    %442 = vmax.xlane.f32.xlu0 %v441
    %v443 = vpop.xlane.xlu0 %442
    %v444 = vsub.f32 %v428, %v434
    %v445 = vsub.f32 %v429, %v437
    %v446 = vsub.f32 %v430, %v440
    %v447 = vsub.f32 %v431, %v443
    %v448 = vmul.f32 %v444, 1.442695
    %v449 = vpow.pop %v448
    %v450 = vmul.f32 %v445, 1.442695
    %v451 = vpow.pop %v450
    %v452 = vmul.f32 %v446, 1.442695
    %v453 = vpow.pop %v452
    %v454 = vmul.f32 %v447, 1.442695
    %v455 = vpow.pop %v454
    %v456 = vsel %vm359, %v449, 0.0
    %457 = vadd.xlane.f32.xlu0 %v456
    %v458 = vpop.xlane.xlu0 %457
    %v459 = vsel %vm359, %v451, 0.0
    %460 = vadd.xlane.f32.xlu0 %v459
    %v461 = vpop.xlane.xlu0 %460
    %v462 = vsel %vm359, %v453, 0.0
    %463 = vadd.xlane.f32.xlu0 %v462
    %v464 = vpop.xlane.xlu0 %463
    %v465 = vsel %vm359, %v455, 0.0
    %466 = vadd.xlane.f32.xlu0 %v465
    %v467 = vpop.xlane.xlu0 %466
    %v468 = vrcp.pop %v458
    %v469 = vrcp.pop %v461
    %v470 = vrcp.pop %v464
    %v471 = vrcp.pop %v467
    %v472 = vmul.f32 %v449, %v468
    %v473 = vmul.f32 %v451, %v469
    %v474 = vmul.f32 %v453, %v470
    %v475 = vmul.f32 %v455, %v471
    %476 = vrot.lane.b32.xlu0 %v154, 64
    %v477 = vpop.permute.xlu0 %476
    %478 = vrot.lane.b32.xlu0 %v159, 64
    %v479 = vpop.permute.xlu0 %478
    %v483 = vsel %vm359, %v472, 0
    %v486 = vsel %vm359, %v473, 0
    %488 = vmatprep.subr.mxu0 0.0
    %489 = vmatpush1.msra.mxu0 0.0
    %490 = vmatprep.subr.mxu0 0.0
    %491 = vmatpush1.msra.mxu0 0.0
    %492 = vmatprep.subr.mxu0 0.0
    %493 = vmatpush1.msra.mxu0 0.0
    %494 = vmatprep.subr.mxu0 0.0
    %495 = vmatpush1.msra.mxu0 0.0
    %496 = vmatprep.subr.mxu0 0.0
    %497 = vmatpush1.msra.mxu0 0.0
    %498 = vmatprep.subr.mxu0 0.0
    %499 = vmatpush1.msra.mxu0 0.0
    %500 = vmatprep.subr.mxu0 0.0
    %501 = vmatpush1.msra.mxu0 0.0
    %502 = vmatprep.subr.mxu0 0.0
    %503 = vmatpush1.msra.mxu0 0.0
    %504 = vmatprep.subr.mxu0 0.0
    %505 = vmatpush1.msra.mxu0 0.0
    %506 = vmatprep.subr.mxu0 0.0
    %507 = vmatpush1.msra.mxu0 0.0
    %508 = vmatprep.subr.mxu0 0.0
    %509 = vmatpush1.msra.mxu0 0.0
    %510 = vmatprep.subr.mxu0 0.0
    %511 = vmatpush1.msra.mxu0 0.0
    %512 = vmatprep.subr.mxu0 0.0
    %513 = vmatpush1.msra.mxu0 0.0
    %514 = vmatprep.subr.mxu0 0.0
    %515 = vmatpush1.msra.mxu0 0.0
    %516 = vmatprep.subr.mxu0 0.0
    %517 = vmatpush1.msra.mxu0 %v479
    %518 = vmatprep.subr.mxu0 0.0
    %519 = vmatpush1.msra.mxu0 %v477
    %520 = vmatprep.subr.mxu0 0.0
    %521 = vmatpush2.msra.mxu0 0.0
    %522 = vmatprep.subr.mxu0 0.0
    %523 = vmatpush2.msra.mxu0 0.0
    %524 = vmatprep.subr.mxu0 0.0
    %525 = vmatpush2.msra.mxu0 0.0
    %526 = vmatprep.subr.mxu0 0.0
    %527 = vmatpush2.msra.mxu0 0.0
    %528 = vmatprep.subr.mxu0 0.0
    %529 = vmatpush2.msra.mxu0 0.0
    %530 = vmatprep.subr.mxu0 0.0
    %531 = vmatpush2.msra.mxu0 0.0
    %532 = vmatprep.subr.mxu0 0.0
    %533 = vmatpush2.msra.mxu0 0.0
    %534 = vmatprep.subr.mxu0 0.0
    %535 = vmatpush2.msra.mxu0 0.0
    %536 = vmatprep.subr.mxu0 0.0
    %537 = vmatpush2.msra.mxu0 0.0
    %538 = vmatprep.subr.mxu0 0.0
    %539 = vmatpush2.msra.mxu0 0.0
    %540 = vmatprep.subr.mxu0 0.0
    %541 = vmatpush2.msra.mxu0 0.0
    %542 = vmatprep.subr.mxu0 0.0
    %543 = vmatpush2.msra.mxu0 0.0
    %544 = vmatprep.subr.mxu0 0.0
    %545 = vmatpush2.msra.mxu0 0.0
    %546 = vmatprep.subr.mxu0 0.0
    %547 = vmatpush2.msra.mxu0 0.0
    %548 = vmatprep.subr.mxu0 0.0
    %549 = vmatpush2.msra.mxu0 0.0
    %550 = vmatprep.subr.mxu0 0.0
    %551 = vmatpush2.msra.mxu0 0.0
    %552 = vmatprep.mubr.f32.mxu0 0.0
    %553 = vmatmul.mubr.f32.gmra.mxu0 %v483
    %v554 = vpop.f32.mrf.mxu0
    %v555 = vadd.f32 0.0, %v554
    %v556 = vpop.f32.mrf.mxu0
    %557 = vmatprep.mubr.f32.mxu0 0.0
    %558 = vmatmul.mubr.f32.gmra.mxu0 %v486
    %v559 = vpop.f32.mrf.mxu0
    %v560 = vadd.f32 0.0, %v559
    %v561 = vpop.f32.mrf.mxu0
    %562 = vdwg.mxu0
    %563 = vrot.lane.b32.xlu0 %v164, 64
    %v564 = vpop.permute.xlu0 %563
    %565 = vrot.lane.b32.xlu0 %v169, 64
    %v566 = vpop.permute.xlu0 %565
    %v570 = vsel %vm359, %v474, 0
    %v573 = vsel %vm359, %v475, 0
    %575 = vmatprep.subr.mxu0 0.0
    %576 = vmatpush1.msra.mxu0 0.0
    %577 = vmatprep.subr.mxu0 0.0
    %578 = vmatpush1.msra.mxu0 0.0
    %579 = vmatprep.subr.mxu0 0.0
    %580 = vmatpush1.msra.mxu0 0.0
    %581 = vmatprep.subr.mxu0 0.0
    %582 = vmatpush1.msra.mxu0 0.0
    %583 = vmatprep.subr.mxu0 0.0
    %584 = vmatpush1.msra.mxu0 0.0
    %585 = vmatprep.subr.mxu0 0.0
    %586 = vmatpush1.msra.mxu0 0.0
    %587 = vmatprep.subr.mxu0 0.0
    %588 = vmatpush1.msra.mxu0 0.0
    %589 = vmatprep.subr.mxu0 0.0
    %590 = vmatpush1.msra.mxu0 0.0
    %591 = vmatprep.subr.mxu0 0.0
    %592 = vmatpush1.msra.mxu0 0.0
    %593 = vmatprep.subr.mxu0 0.0
    %594 = vmatpush1.msra.mxu0 0.0
    %595 = vmatprep.subr.mxu0 0.0
    %596 = vmatpush1.msra.mxu0 0.0
    %597 = vmatprep.subr.mxu0 0.0
    %598 = vmatpush1.msra.mxu0 0.0
    %599 = vmatprep.subr.mxu0 0.0
    %600 = vmatpush1.msra.mxu0 0.0
    %601 = vmatprep.subr.mxu0 0.0
    %602 = vmatpush1.msra.mxu0 0.0
    %603 = vmatprep.subr.mxu0 0.0
    %604 = vmatpush1.msra.mxu0 %v566
    %605 = vmatprep.subr.mxu0 0.0
    %606 = vmatpush1.msra.mxu0 %v564
    %607 = vmatprep.subr.mxu0 0.0
    %608 = vmatpush2.msra.mxu0 0.0
    %609 = vmatprep.subr.mxu0 0.0
    %610 = vmatpush2.msra.mxu0 0.0
    %611 = vmatprep.subr.mxu0 0.0
    %612 = vmatpush2.msra.mxu0 0.0
    %613 = vmatprep.subr.mxu0 0.0
    %614 = vmatpush2.msra.mxu0 0.0
    %615 = vmatprep.subr.mxu0 0.0
    %616 = vmatpush2.msra.mxu0 0.0
    %617 = vmatprep.subr.mxu0 0.0
    %618 = vmatpush2.msra.mxu0 0.0
    %619 = vmatprep.subr.mxu0 0.0
    %620 = vmatpush2.msra.mxu0 0.0
    %621 = vmatprep.subr.mxu0 0.0
    %622 = vmatpush2.msra.mxu0 0.0
    %623 = vmatprep.subr.mxu0 0.0
    %624 = vmatpush2.msra.mxu0 0.0
    %625 = vmatprep.subr.mxu0 0.0
    %626 = vmatpush2.msra.mxu0 0.0
    %627 = vmatprep.subr.mxu0 0.0
    %628 = vmatpush2.msra.mxu0 0.0
    %629 = vmatprep.subr.mxu0 0.0
    %630 = vmatpush2.msra.mxu0 0.0
    %631 = vmatprep.subr.mxu0 0.0
    %632 = vmatpush2.msra.mxu0 0.0
    %633 = vmatprep.subr.mxu0 0.0
    %634 = vmatpush2.msra.mxu0 0.0
    %635 = vmatprep.subr.mxu0 0.0
    %636 = vmatpush2.msra.mxu0 0.0
    %637 = vmatprep.subr.mxu0 0.0
    %638 = vmatpush2.msra.mxu0 0.0
    %639 = vmatprep.mubr.f32.mxu0 0.0
    %640 = vmatmul.mubr.f32.gmra.mxu0 %v570
    %v641 = vpop.f32.mrf.mxu0
    %v642 = vadd.f32 0.0, %v641
    %v643 = vpop.f32.mrf.mxu0
    %644 = vmatprep.mubr.f32.mxu0 0.0
    %645 = vmatmul.mubr.f32.gmra.mxu0 %v573
    %v646 = vpop.f32.mrf.mxu0
    %v647 = vadd.f32 0.0, %v646
    %v648 = vpop.f32.mrf.mxu0
    %649 = vdwg.mxu0
    %v650 = vld [vmem:[%s3] sm:$0xff]
    %651 = vrot.lane.b32.xlu0 %v172, 120
    %v652 = vpop.permute.xlu0 %651
    %653 = vrot.lane.b32.xlu0 %v173, 120
    %v654 = vpop.permute.xlu0 %653
    %655 = vrot.lane.b32.xlu0 %v154, 88
    %v656 = vpop.permute.xlu0 %655
    %657 = vrot.lane.b32.xlu0 %v159, 88
    %v658 = vpop.permute.xlu0 %657
    %v659 = vsel %vm182, %v652, 0
    %v661 = vsel %vm182, %v654, 0
    %v663 = vsel %vm182, %v656, 0
    %v665 = vsel %vm182, %v658, 0
    %667 = vmatprep.subr.mxu0 0.0
    %668 = vmatpush1.xpose.msra.mxu0 0.0
    %669 = vmatprep.subr.mxu0 0.0
    %670 = vmatpush1.xpose.msra.mxu0 0.0
    %671 = vmatprep.subr.mxu0 0.0
    %672 = vmatpush1.xpose.msra.mxu0 0.0
    %673 = vmatprep.subr.mxu0 0.0
    %674 = vmatpush1.xpose.msra.mxu0 0.0
    %675 = vmatprep.subr.mxu0 0.0
    %676 = vmatpush1.xpose.msra.mxu0 0.0
    %677 = vmatprep.subr.mxu0 0.0
    %678 = vmatpush1.xpose.msra.mxu0 0.0
    %679 = vmatprep.subr.mxu0 0.0
    %680 = vmatpush1.xpose.msra.mxu0 0.0
    %681 = vmatprep.subr.mxu0 0.0
    %682 = vmatpush1.xpose.msra.mxu0 0.0
    %683 = vmatprep.subr.mxu0 0.0
    %684 = vmatpush1.xpose.msra.mxu0 0.0
    %685 = vmatprep.subr.mxu0 0.0
    %686 = vmatpush1.xpose.msra.mxu0 0.0
    %687 = vmatprep.subr.mxu0 0.0
    %688 = vmatpush1.xpose.msra.mxu0 0.0
    %689 = vmatprep.subr.mxu0 0.0
    %690 = vmatpush1.xpose.msra.mxu0 0.0
    %691 = vmatprep.subr.mxu0 0.0
    %692 = vmatpush1.xpose.msra.mxu0 0.0
    %693 = vmatprep.subr.mxu0 0.0
    %694 = vmatpush1.xpose.msra.mxu0 0.0
    %695 = vmatprep.subr.mxu0 0.0
    %696 = vmatpush1.xpose.msra.mxu0 %v665
    %697 = vmatprep.subr.mxu0 0.0
    %698 = vmatpush1.xpose.msra.mxu0 %v663
    %699 = vmatprep.subr.mxu0 0.0
    %700 = vmatpush2.xpose.msra.mxu0 0.0
    %701 = vmatprep.subr.mxu0 0.0
    %702 = vmatpush2.xpose.msra.mxu0 0.0
    %703 = vmatprep.subr.mxu0 0.0
    %704 = vmatpush2.xpose.msra.mxu0 0.0
    %705 = vmatprep.subr.mxu0 0.0
    %706 = vmatpush2.xpose.msra.mxu0 0.0
    %707 = vmatprep.subr.mxu0 0.0
    %708 = vmatpush2.xpose.msra.mxu0 0.0
    %709 = vmatprep.subr.mxu0 0.0
    %710 = vmatpush2.xpose.msra.mxu0 0.0
    %711 = vmatprep.subr.mxu0 0.0
    %712 = vmatpush2.xpose.msra.mxu0 0.0
    %713 = vmatprep.subr.mxu0 0.0
    %714 = vmatpush2.xpose.msra.mxu0 0.0
    %715 = vmatprep.subr.mxu0 0.0
    %716 = vmatpush2.xpose.msra.mxu0 0.0
    %717 = vmatprep.subr.mxu0 0.0
    %718 = vmatpush2.xpose.msra.mxu0 0.0
    %719 = vmatprep.subr.mxu0 0.0
    %720 = vmatpush2.xpose.msra.mxu0 0.0
    %721 = vmatprep.subr.mxu0 0.0
    %722 = vmatpush2.xpose.msra.mxu0 0.0
    %723 = vmatprep.subr.mxu0 0.0
    %724 = vmatpush2.xpose.msra.mxu0 0.0
    %725 = vmatprep.subr.mxu0 0.0
    %726 = vmatpush2.xpose.msra.mxu0 0.0
    %727 = vmatprep.subr.mxu0 0.0
    %728 = vmatpush2.xpose.msra.mxu0 0.0
    %729 = vmatprep.subr.mxu0 0.0
    %730 = vmatpush2.xpose.msra.mxu0 0.0
    %731 = vmatprep.mubr.f32.mxu0 0.0
    %732 = vmatmul.mubr.f32.gmra.mxu0 %v659
    %v733 = vpop.f32.mrf.mxu0
    %v734 = vadd.f32 0.0, %v733
    %v735 = vpop.f32.mrf.mxu0
    %736 = vmatprep.mubr.f32.mxu0 0.0
    %737 = vmatmul.mubr.f32.gmra.mxu0 %v661
    %v738 = vpop.f32.mrf.mxu0
    %v739 = vadd.f32 0.0, %v738
    %v740 = vpop.f32.mrf.mxu0
    %741 = vdwg.mxu0
    %742 = vrot.lane.b32.xlu0 %v174, 120
    %v743 = vpop.permute.xlu0 %742
    %744 = vrot.lane.b32.xlu0 %v175, 120
    %v745 = vpop.permute.xlu0 %744
    %746 = vrot.lane.b32.xlu0 %v164, 88
    %v747 = vpop.permute.xlu0 %746
    %748 = vrot.lane.b32.xlu0 %v169, 88
    %v749 = vpop.permute.xlu0 %748
    %v750 = vsel %vm182, %v743, 0
    %v752 = vsel %vm182, %v745, 0
    %v754 = vsel %vm182, %v747, 0
    %v756 = vsel %vm182, %v749, 0
    %758 = vmatprep.subr.mxu0 0.0
    %759 = vmatpush1.xpose.msra.mxu0 0.0
    %760 = vmatprep.subr.mxu0 0.0
    %761 = vmatpush1.xpose.msra.mxu0 0.0
    %762 = vmatprep.subr.mxu0 0.0
    %763 = vmatpush1.xpose.msra.mxu0 0.0
    %764 = vmatprep.subr.mxu0 0.0
    %765 = vmatpush1.xpose.msra.mxu0 0.0
    %766 = vmatprep.subr.mxu0 0.0
    %767 = vmatpush1.xpose.msra.mxu0 0.0
    %768 = vmatprep.subr.mxu0 0.0
    %769 = vmatpush1.xpose.msra.mxu0 0.0
    %770 = vmatprep.subr.mxu0 0.0
    %771 = vmatpush1.xpose.msra.mxu0 0.0
    %772 = vmatprep.subr.mxu0 0.0
    %773 = vmatpush1.xpose.msra.mxu0 0.0
    %774 = vmatprep.subr.mxu0 0.0
    %775 = vmatpush1.xpose.msra.mxu0 0.0
    %776 = vmatprep.subr.mxu0 0.0
    %777 = vmatpush1.xpose.msra.mxu0 0.0
    %778 = vmatprep.subr.mxu0 0.0
    %779 = vmatpush1.xpose.msra.mxu0 0.0
    %780 = vmatprep.subr.mxu0 0.0
    %781 = vmatpush1.xpose.msra.mxu0 0.0
    %782 = vmatprep.subr.mxu0 0.0
    %783 = vmatpush1.xpose.msra.mxu0 0.0
    %784 = vmatprep.subr.mxu0 0.0
    %785 = vmatpush1.xpose.msra.mxu0 0.0
    %786 = vmatprep.subr.mxu0 0.0
    %787 = vmatpush1.xpose.msra.mxu0 %v756
    %788 = vmatprep.subr.mxu0 0.0
    %789 = vmatpush1.xpose.msra.mxu0 %v754
    %790 = vmatprep.subr.mxu0 0.0
    %791 = vmatpush2.xpose.msra.mxu0 0.0
    %792 = vmatprep.subr.mxu0 0.0
    %793 = vmatpush2.xpose.msra.mxu0 0.0
    %794 = vmatprep.subr.mxu0 0.0
    %795 = vmatpush2.xpose.msra.mxu0 0.0
    %796 = vmatprep.subr.mxu0 0.0
    %797 = vmatpush2.xpose.msra.mxu0 0.0
    %798 = vmatprep.subr.mxu0 0.0
    %799 = vmatpush2.xpose.msra.mxu0 0.0
    %800 = vmatprep.subr.mxu0 0.0
    %801 = vmatpush2.xpose.msra.mxu0 0.0
    %802 = vmatprep.subr.mxu0 0.0
    %803 = vmatpush2.xpose.msra.mxu0 0.0
    %804 = vmatprep.subr.mxu0 0.0
    %805 = vmatpush2.xpose.msra.mxu0 0.0
    %806 = vmatprep.subr.mxu0 0.0
    %807 = vmatpush2.xpose.msra.mxu0 0.0
    %808 = vmatprep.subr.mxu0 0.0
    %809 = vmatpush2.xpose.msra.mxu0 0.0
    %810 = vmatprep.subr.mxu0 0.0
    %811 = vmatpush2.xpose.msra.mxu0 0.0
    %812 = vmatprep.subr.mxu0 0.0
    %813 = vmatpush2.xpose.msra.mxu0 0.0
    %814 = vmatprep.subr.mxu0 0.0
    %815 = vmatpush2.xpose.msra.mxu0 0.0
    %816 = vmatprep.subr.mxu0 0.0
    %817 = vmatpush2.xpose.msra.mxu0 0.0
    %818 = vmatprep.subr.mxu0 0.0
    %819 = vmatpush2.xpose.msra.mxu0 0.0
    %820 = vmatprep.subr.mxu0 0.0
    %821 = vmatpush2.xpose.msra.mxu0 0.0
    %822 = vmatprep.mubr.f32.mxu0 0.0
    %823 = vmatmul.mubr.f32.gmra.mxu0 %v750
    %v824 = vpop.f32.mrf.mxu0
    %v825 = vadd.f32 0.0, %v824
    %v826 = vpop.f32.mrf.mxu0
    %827 = vmatprep.mubr.f32.mxu0 0.0
    %828 = vmatmul.mubr.f32.gmra.mxu0 %v752
    %v829 = vpop.f32.mrf.mxu0
    %v830 = vadd.f32 0.0, %v829
    %v831 = vpop.f32.mrf.mxu0
    %832 = vdwg.mxu0
    %v833 = vsel %vm359, %v734, -inf
    %834 = vmax.xlane.f32.xlu0 %v833
    %v835 = vpop.xlane.xlu0 %834
    %v836 = vsel %vm359, %v739, -inf
    %837 = vmax.xlane.f32.xlu0 %v836
    %v838 = vpop.xlane.xlu0 %837
    %v839 = vsel %vm359, %v825, -inf
    %840 = vmax.xlane.f32.xlu0 %v839
    %v841 = vpop.xlane.xlu0 %840
    %v842 = vsel %vm359, %v830, -inf
    %843 = vmax.xlane.f32.xlu0 %v842
    %v844 = vpop.xlane.xlu0 %843
    %vm845 = vcmp.ge.f32.partialorder %v734, %v835
    %vm846 = vcmp.ge.f32.partialorder %v739, %v838
    %vm847 = vcmp.ge.f32.partialorder %v825, %v841
    %vm848 = vcmp.ge.f32.partialorder %v830, %v844
    %v849 = vsel %vm845, 1, 0
    %v850 = vsel %vm846, 1, 0
    %v851 = vsel %vm847, 1, 0
    %v852 = vsel %vm848, 1, 0
    %v853 = vcvt.s32.f32 %v849
    %v854 = vcvt.s32.f32 %v850
    %v855 = vcvt.s32.f32 %v851
    %v856 = vcvt.s32.f32 %v852
    %v857 = vsel %vm359, %v853, 0.0
    %858 = vadd.xlane.f32.xlu0 %v857
    %v859 = vpop.xlane.xlu0 %858
    %v860 = vsel %vm359, %v854, 0.0
    %861 = vadd.xlane.f32.xlu0 %v860
    %v862 = vpop.xlane.xlu0 %861
    %v863 = vsel %vm359, %v855, 0.0
    %864 = vadd.xlane.f32.xlu0 %v863
    %v865 = vpop.xlane.xlu0 %864
    %v866 = vsel %vm359, %v856, 0.0
    %867 = vadd.xlane.f32.xlu0 %v866
    %v868 = vpop.xlane.xlu0 %867
    %vm869 = vcmp.lt.f32.partialorder %v734, %v835
    %vm870 = vcmp.lt.f32.partialorder %v739, %v838
    %vm871 = vcmp.lt.f32.partialorder %v825, %v841
    %vm872 = vcmp.lt.f32.partialorder %v830, %v844
    %v873 = vsel %vm869, %v734, -1e+30
    %v874 = vsel %vm870, %v739, -1e+30
    %v875 = vsel %vm871, %v825, -1e+30
    %v876 = vsel %vm872, %v830, -1e+30
    %v877 = vsel %vm359, %v873, -inf
    %878 = vmax.xlane.f32.xlu0 %v877
    %v879 = vpop.xlane.xlu0 %878
    %v880 = vsel %vm359, %v874, -inf
    %881 = vmax.xlane.f32.xlu0 %v880
    %v882 = vpop.xlane.xlu0 %881
    %v883 = vsel %vm359, %v875, -inf
    %884 = vmax.xlane.f32.xlu0 %v883
    %v885 = vpop.xlane.xlu0 %884
    %v886 = vsel %vm359, %v876, -inf
    %887 = vmax.xlane.f32.xlu0 %v886
    %v888 = vpop.xlane.xlu0 %887
    %vm889 = vcmp.ge.f32.partialorder %v859, 2.0
    %vm890 = vcmp.ge.f32.partialorder %v862, 2.0
    %vm891 = vcmp.ge.f32.partialorder %v865, 2.0
    %vm892 = vcmp.ge.f32.partialorder %v868, 2.0
    %v893 = vsel %vm889, %v835, %v879
    %v894 = vsel %vm890, %v838, %v882
    %v895 = vsel %vm891, %v841, %v885
    %v896 = vsel %vm892, %v844, %v888
    %vm897 = vcmp.ge.f32.partialorder %v734, %v893
    %vm898 = vcmp.ge.f32.partialorder %v739, %v894
    %vm899 = vcmp.ge.f32.partialorder %v825, %v895
    %vm900 = vcmp.ge.f32.partialorder %v830, %v896
    %v901 = vsel %vm897, %v734, -1e+30
    %v902 = vsel %vm898, %v739, -1e+30
    %v903 = vsel %vm899, %v825, -1e+30
    %v904 = vsel %vm900, %v830, -1e+30
    %v905 = vsel %vm359, %v901, -inf
    %906 = vmax.xlane.f32.xlu0 %v905
    %v907 = vpop.xlane.xlu0 %906
    %v908 = vsel %vm359, %v902, -inf
    %909 = vmax.xlane.f32.xlu0 %v908
    %v910 = vpop.xlane.xlu0 %909
    %v911 = vsel %vm359, %v903, -inf
    %912 = vmax.xlane.f32.xlu0 %v911
    %v913 = vpop.xlane.xlu0 %912
    %v914 = vsel %vm359, %v904, -inf
    %915 = vmax.xlane.f32.xlu0 %v914
    %v916 = vpop.xlane.xlu0 %915
    %v917 = vsub.f32 %v901, %v907
    %v918 = vsub.f32 %v902, %v910
    %v919 = vsub.f32 %v903, %v913
    %v920 = vsub.f32 %v904, %v916
    %v921 = vmul.f32 %v917, 1.442695
    %v922 = vpow.pop %v921
    %v923 = vmul.f32 %v918, 1.442695
    %v924 = vpow.pop %v923
    %v925 = vmul.f32 %v919, 1.442695
    %v926 = vpow.pop %v925
    %v927 = vmul.f32 %v920, 1.442695
    %v928 = vpow.pop %v927
    %v929 = vsel %vm359, %v922, 0.0
    %930 = vadd.xlane.f32.xlu0 %v929
    %v931 = vpop.xlane.xlu0 %930
    %v932 = vsel %vm359, %v924, 0.0
    %933 = vadd.xlane.f32.xlu0 %v932
    %v934 = vpop.xlane.xlu0 %933
    %v935 = vsel %vm359, %v926, 0.0
    %936 = vadd.xlane.f32.xlu0 %v935
    %v937 = vpop.xlane.xlu0 %936
    %v938 = vsel %vm359, %v928, 0.0
    %939 = vadd.xlane.f32.xlu0 %v938
    %v940 = vpop.xlane.xlu0 %939
    %v941 = vrcp.pop %v931
    %v942 = vrcp.pop %v934
    %v943 = vrcp.pop %v937
    %v944 = vrcp.pop %v940
    %v945 = vmul.f32 %v922, %v941
    %v946 = vmul.f32 %v924, %v942
    %v947 = vmul.f32 %v926, %v943
    %v948 = vmul.f32 %v928, %v944
    %949 = vrot.lane.b32.xlu0 %v154, 56
    %v950 = vpop.permute.xlu0 %949
    %951 = vrot.lane.b32.xlu0 %v159, 56
    %v952 = vpop.permute.xlu0 %951
    %v956 = vsel %vm359, %v945, 0
    %v959 = vsel %vm359, %v946, 0
    %961 = vmatprep.subr.mxu0 0.0
    %962 = vmatpush1.msra.mxu0 0.0
    %963 = vmatprep.subr.mxu0 0.0
    %964 = vmatpush1.msra.mxu0 0.0
    %965 = vmatprep.subr.mxu0 0.0
    %966 = vmatpush1.msra.mxu0 0.0
    %967 = vmatprep.subr.mxu0 0.0
    %968 = vmatpush1.msra.mxu0 0.0
    %969 = vmatprep.subr.mxu0 0.0
    %970 = vmatpush1.msra.mxu0 0.0
    %971 = vmatprep.subr.mxu0 0.0
    %972 = vmatpush1.msra.mxu0 0.0
    %973 = vmatprep.subr.mxu0 0.0
    %974 = vmatpush1.msra.mxu0 0.0
    %975 = vmatprep.subr.mxu0 0.0
    %976 = vmatpush1.msra.mxu0 0.0
    %977 = vmatprep.subr.mxu0 0.0
    %978 = vmatpush1.msra.mxu0 0.0
    %979 = vmatprep.subr.mxu0 0.0
    %980 = vmatpush1.msra.mxu0 0.0
    %981 = vmatprep.subr.mxu0 0.0
    %982 = vmatpush1.msra.mxu0 0.0
    %983 = vmatprep.subr.mxu0 0.0
    %984 = vmatpush1.msra.mxu0 0.0
    %985 = vmatprep.subr.mxu0 0.0
    %986 = vmatpush1.msra.mxu0 0.0
    %987 = vmatprep.subr.mxu0 0.0
    %988 = vmatpush1.msra.mxu0 0.0
    %989 = vmatprep.subr.mxu0 0.0
    %990 = vmatpush1.msra.mxu0 %v952
    %991 = vmatprep.subr.mxu0 0.0
    %992 = vmatpush1.msra.mxu0 %v950
    %993 = vmatprep.subr.mxu0 0.0
    %994 = vmatpush2.msra.mxu0 0.0
    %995 = vmatprep.subr.mxu0 0.0
    %996 = vmatpush2.msra.mxu0 0.0
    %997 = vmatprep.subr.mxu0 0.0
    %998 = vmatpush2.msra.mxu0 0.0
    %999 = vmatprep.subr.mxu0 0.0
    %1000 = vmatpush2.msra.mxu0 0.0
    %1001 = vmatprep.subr.mxu0 0.0
    %1002 = vmatpush2.msra.mxu0 0.0
    %1003 = vmatprep.subr.mxu0 0.0
    %1004 = vmatpush2.msra.mxu0 0.0
    %1005 = vmatprep.subr.mxu0 0.0
    %1006 = vmatpush2.msra.mxu0 0.0
    %1007 = vmatprep.subr.mxu0 0.0
    %1008 = vmatpush2.msra.mxu0 0.0
    %1009 = vmatprep.subr.mxu0 0.0
    %1010 = vmatpush2.msra.mxu0 0.0
    %1011 = vmatprep.subr.mxu0 0.0
    %1012 = vmatpush2.msra.mxu0 0.0
    %1013 = vmatprep.subr.mxu0 0.0
    %1014 = vmatpush2.msra.mxu0 0.0
    %1015 = vmatprep.subr.mxu0 0.0
    %1016 = vmatpush2.msra.mxu0 0.0
    %1017 = vmatprep.subr.mxu0 0.0
    %1018 = vmatpush2.msra.mxu0 0.0
    %1019 = vmatprep.subr.mxu0 0.0
    %1020 = vmatpush2.msra.mxu0 0.0
    %1021 = vmatprep.subr.mxu0 0.0
    %1022 = vmatpush2.msra.mxu0 0.0
    %1023 = vmatprep.subr.mxu0 0.0
    %1024 = vmatpush2.msra.mxu0 0.0
    %1025 = vmatprep.mubr.f32.mxu0 0.0
    %1026 = vmatmul.mubr.f32.gmra.mxu0 %v956
    %v1027 = vpop.f32.mrf.mxu0
    %v1028 = vadd.f32 0.0, %v1027
    %v1029 = vpop.f32.mrf.mxu0
    %1030 = vmatprep.mubr.f32.mxu0 0.0
    %1031 = vmatmul.mubr.f32.gmra.mxu0 %v959
    %v1032 = vpop.f32.mrf.mxu0
    %v1033 = vadd.f32 0.0, %v1032
    %v1034 = vpop.f32.mrf.mxu0
    %1035 = vdwg.mxu0
    %1036 = vrot.lane.b32.xlu0 %v164, 56
    %v1037 = vpop.permute.xlu0 %1036
    %1038 = vrot.lane.b32.xlu0 %v169, 56
    %v1039 = vpop.permute.xlu0 %1038
    %v1043 = vsel %vm359, %v947, 0
    %v1046 = vsel %vm359, %v948, 0
    %1048 = vmatprep.subr.mxu0 0.0
    %1049 = vmatpush1.msra.mxu0 0.0
    %1050 = vmatprep.subr.mxu0 0.0
    %1051 = vmatpush1.msra.mxu0 0.0
    %1052 = vmatprep.subr.mxu0 0.0
    %1053 = vmatpush1.msra.mxu0 0.0
    %1054 = vmatprep.subr.mxu0 0.0
    %1055 = vmatpush1.msra.mxu0 0.0
    %1056 = vmatprep.subr.mxu0 0.0
    %1057 = vmatpush1.msra.mxu0 0.0
    %1058 = vmatprep.subr.mxu0 0.0
    %1059 = vmatpush1.msra.mxu0 0.0
    %1060 = vmatprep.subr.mxu0 0.0
    %1061 = vmatpush1.msra.mxu0 0.0
    %1062 = vmatprep.subr.mxu0 0.0
    %1063 = vmatpush1.msra.mxu0 0.0
    %1064 = vmatprep.subr.mxu0 0.0
    %1065 = vmatpush1.msra.mxu0 0.0
    %1066 = vmatprep.subr.mxu0 0.0
    %1067 = vmatpush1.msra.mxu0 0.0
    %1068 = vmatprep.subr.mxu0 0.0
    %1069 = vmatpush1.msra.mxu0 0.0
    %1070 = vmatprep.subr.mxu0 0.0
    %1071 = vmatpush1.msra.mxu0 0.0
    %1072 = vmatprep.subr.mxu0 0.0
    %1073 = vmatpush1.msra.mxu0 0.0
    %1074 = vmatprep.subr.mxu0 0.0
    %1075 = vmatpush1.msra.mxu0 0.0
    %1076 = vmatprep.subr.mxu0 0.0
    %1077 = vmatpush1.msra.mxu0 %v1039
    %1078 = vmatprep.subr.mxu0 0.0
    %1079 = vmatpush1.msra.mxu0 %v1037
    %1080 = vmatprep.subr.mxu0 0.0
    %1081 = vmatpush2.msra.mxu0 0.0
    %1082 = vmatprep.subr.mxu0 0.0
    %1083 = vmatpush2.msra.mxu0 0.0
    %1084 = vmatprep.subr.mxu0 0.0
    %1085 = vmatpush2.msra.mxu0 0.0
    %1086 = vmatprep.subr.mxu0 0.0
    %1087 = vmatpush2.msra.mxu0 0.0
    %1088 = vmatprep.subr.mxu0 0.0
    %1089 = vmatpush2.msra.mxu0 0.0
    %1090 = vmatprep.subr.mxu0 0.0
    %1091 = vmatpush2.msra.mxu0 0.0
    %1092 = vmatprep.subr.mxu0 0.0
    %1093 = vmatpush2.msra.mxu0 0.0
    %1094 = vmatprep.subr.mxu0 0.0
    %1095 = vmatpush2.msra.mxu0 0.0
    %1096 = vmatprep.subr.mxu0 0.0
    %1097 = vmatpush2.msra.mxu0 0.0
    %1098 = vmatprep.subr.mxu0 0.0
    %1099 = vmatpush2.msra.mxu0 0.0
    %1100 = vmatprep.subr.mxu0 0.0
    %1101 = vmatpush2.msra.mxu0 0.0
    %1102 = vmatprep.subr.mxu0 0.0
    %1103 = vmatpush2.msra.mxu0 0.0
    %1104 = vmatprep.subr.mxu0 0.0
    %1105 = vmatpush2.msra.mxu0 0.0
    %1106 = vmatprep.subr.mxu0 0.0
    %1107 = vmatpush2.msra.mxu0 0.0
    %1108 = vmatprep.subr.mxu0 0.0
    %1109 = vmatpush2.msra.mxu0 0.0
    %1110 = vmatprep.subr.mxu0 0.0
    %1111 = vmatpush2.msra.mxu0 0.0
    %1112 = vmatprep.mubr.f32.mxu0 0.0
    %1113 = vmatmul.mubr.f32.gmra.mxu0 %v1043
    %v1114 = vpop.f32.mrf.mxu0
    %v1115 = vadd.f32 0.0, %v1114
    %v1116 = vpop.f32.mrf.mxu0
    %1117 = vmatprep.mubr.f32.mxu0 0.0
    %1118 = vmatmul.mubr.f32.gmra.mxu0 %v1046
    %v1119 = vpop.f32.mrf.mxu0
    %v1120 = vadd.f32 0.0, %v1119
    %v1121 = vpop.f32.mrf.mxu0
    %1122 = vdwg.mxu0
    %v1123 = vld [vmem:[%s3 + $0x8] sm:$0xff]
    %v1125 = vsel %vm182, %v1028, 0
    %v1128 = vsel %vm182, %v1033, 0
    %v1131 = vsel %vm182, %v1115, 0
    %v1134 = vsel %vm182, %v1120, 0
    %1136 = vmatprep.subr.mxu0 0.0
    %1137 = vmatpush1.msra.mxu0 0.0
    %1138 = vmatprep.subr.mxu0 0.0
    %1139 = vmatpush1.msra.mxu0 0.0
    %1140 = vmatprep.subr.mxu0 0.0
    %1141 = vmatpush1.msra.mxu0 0.0
    %1142 = vmatprep.subr.mxu0 0.0
    %1143 = vmatpush1.msra.mxu0 0.0
    %1144 = vmatprep.subr.mxu0 0.0
    %1145 = vmatpush1.msra.mxu0 0.0
    %1146 = vmatprep.subr.mxu0 0.0
    %1147 = vmatpush1.msra.mxu0 0.0
    %1148 = vmatprep.subr.mxu0 0.0
    %1149 = vmatpush1.msra.mxu0 0.0
    %1150 = vmatprep.subr.mxu0 0.0
    %1151 = vmatpush1.msra.mxu0 0.0
    %1152 = vmatprep.subr.mxu0 0.0
    %1153 = vmatpush1.msra.mxu0 0.0
    %1154 = vmatprep.subr.mxu0 0.0
    %1155 = vmatpush1.msra.mxu0 0.0
    %1156 = vmatprep.subr.mxu0 0.0
    %1157 = vmatpush1.msra.mxu0 0.0
    %1158 = vmatprep.subr.mxu0 0.0
    %1159 = vmatpush1.msra.mxu0 0.0
    %1160 = vmatprep.subr.mxu0 0.0
    %1161 = vmatpush1.msra.mxu0 0.0
    %1162 = vmatprep.subr.mxu0 0.0
    %1163 = vmatpush1.msra.mxu0 0.0
    %1164 = vmatprep.subr.mxu0 0.0
    %1165 = vmatpush1.msra.mxu0 0.0
    %1166 = vmatprep.subr.mxu0 0.0
    %1167 = vmatpush1.msra.mxu0 %v1123
    %1168 = vmatprep.subr.mxu0 0.0
    %1169 = vmatpush2.msra.mxu0 0.0
    %1170 = vmatprep.subr.mxu0 0.0
    %1171 = vmatpush2.msra.mxu0 0.0
    %1172 = vmatprep.subr.mxu0 0.0
    %1173 = vmatpush2.msra.mxu0 0.0
    %1174 = vmatprep.subr.mxu0 0.0
    %1175 = vmatpush2.msra.mxu0 0.0
    %1176 = vmatprep.subr.mxu0 0.0
    %1177 = vmatpush2.msra.mxu0 0.0
    %1178 = vmatprep.subr.mxu0 0.0
    %1179 = vmatpush2.msra.mxu0 0.0
    %1180 = vmatprep.subr.mxu0 0.0
    %1181 = vmatpush2.msra.mxu0 0.0
    %1182 = vmatprep.subr.mxu0 0.0
    %1183 = vmatpush2.msra.mxu0 0.0
    %1184 = vmatprep.subr.mxu0 0.0
    %1185 = vmatpush2.msra.mxu0 0.0
    %1186 = vmatprep.subr.mxu0 0.0
    %1187 = vmatpush2.msra.mxu0 0.0
    %1188 = vmatprep.subr.mxu0 0.0
    %1189 = vmatpush2.msra.mxu0 0.0
    %1190 = vmatprep.subr.mxu0 0.0
    %1191 = vmatpush2.msra.mxu0 0.0
    %1192 = vmatprep.subr.mxu0 0.0
    %1193 = vmatpush2.msra.mxu0 0.0
    %1194 = vmatprep.subr.mxu0 0.0
    %1195 = vmatpush2.msra.mxu0 0.0
    %1196 = vmatprep.subr.mxu0 0.0
    %1197 = vmatpush2.msra.mxu0 0.0
    %1198 = vmatprep.subr.mxu0 0.0
    %1199 = vmatpush2.msra.mxu0 0.0
    %1200 = vmatprep.mubr.f32.mxu0 0.0
    %1201 = vmatmul.mubr.f32.gmra.mxu0 %v1125
    %v1202 = vpop.f32.mrf.mxu0
    %v1203 = vadd.f32 0.0, %v1202
    %v1204 = vpop.f32.mrf.mxu0
    %1205 = vmatprep.mubr.f32.mxu0 0.0
    %1206 = vmatmul.mubr.f32.gmra.mxu0 %v1128
    %v1207 = vpop.f32.mrf.mxu0
    %v1208 = vadd.f32 0.0, %v1207
    %v1209 = vpop.f32.mrf.mxu0
    %1210 = vmatprep.mubr.f32.mxu0 0.0
    %1211 = vmatmul.mubr.f32.gmra.mxu0 %v1131
    %v1212 = vpop.f32.mrf.mxu0
    %v1213 = vadd.f32 0.0, %v1212
    %v1214 = vpop.f32.mrf.mxu0
    %1215 = vmatprep.mubr.f32.mxu0 0.0
    %1216 = vmatmul.mubr.f32.gmra.mxu0 %v1134
    %v1217 = vpop.f32.mrf.mxu0
    %v1218 = vadd.f32 0.0, %v1217
    %v1219 = vpop.f32.mrf.mxu0
    %1220 = vdwg.mxu0
    %v1222 = vsel %vm182, %v555, 0
    %v1225 = vsel %vm182, %v560, 0
    %v1228 = vsel %vm182, %v642, 0
    %v1231 = vsel %vm182, %v647, 0
    %1233 = vmatprep.subr.mxu0 0.0
    %1234 = vmatpush1.msra.mxu0 0.0
    %1235 = vmatprep.subr.mxu0 0.0
    %1236 = vmatpush1.msra.mxu0 0.0
    %1237 = vmatprep.subr.mxu0 0.0
    %1238 = vmatpush1.msra.mxu0 0.0
    %1239 = vmatprep.subr.mxu0 0.0
    %1240 = vmatpush1.msra.mxu0 0.0
    %1241 = vmatprep.subr.mxu0 0.0
    %1242 = vmatpush1.msra.mxu0 0.0
    %1243 = vmatprep.subr.mxu0 0.0
    %1244 = vmatpush1.msra.mxu0 0.0
    %1245 = vmatprep.subr.mxu0 0.0
    %1246 = vmatpush1.msra.mxu0 0.0
    %1247 = vmatprep.subr.mxu0 0.0
    %1248 = vmatpush1.msra.mxu0 0.0
    %1249 = vmatprep.subr.mxu0 0.0
    %1250 = vmatpush1.msra.mxu0 0.0
    %1251 = vmatprep.subr.mxu0 0.0
    %1252 = vmatpush1.msra.mxu0 0.0
    %1253 = vmatprep.subr.mxu0 0.0
    %1254 = vmatpush1.msra.mxu0 0.0
    %1255 = vmatprep.subr.mxu0 0.0
    %1256 = vmatpush1.msra.mxu0 0.0
    %1257 = vmatprep.subr.mxu0 0.0
    %1258 = vmatpush1.msra.mxu0 0.0
    %1259 = vmatprep.subr.mxu0 0.0
    %1260 = vmatpush1.msra.mxu0 0.0
    %1261 = vmatprep.subr.mxu0 0.0
    %1262 = vmatpush1.msra.mxu0 0.0
    %1263 = vmatprep.subr.mxu0 0.0
    %1264 = vmatpush1.msra.mxu0 %v650
    %1265 = vmatprep.subr.mxu0 0.0
    %1266 = vmatpush2.msra.mxu0 0.0
    %1267 = vmatprep.subr.mxu0 0.0
    %1268 = vmatpush2.msra.mxu0 0.0
    %1269 = vmatprep.subr.mxu0 0.0
    %1270 = vmatpush2.msra.mxu0 0.0
    %1271 = vmatprep.subr.mxu0 0.0
    %1272 = vmatpush2.msra.mxu0 0.0
    %1273 = vmatprep.subr.mxu0 0.0
    %1274 = vmatpush2.msra.mxu0 0.0
    %1275 = vmatprep.subr.mxu0 0.0
    %1276 = vmatpush2.msra.mxu0 0.0
    %1277 = vmatprep.subr.mxu0 0.0
    %1278 = vmatpush2.msra.mxu0 0.0
    %1279 = vmatprep.subr.mxu0 0.0
    %1280 = vmatpush2.msra.mxu0 0.0
    %1281 = vmatprep.subr.mxu0 0.0
    %1282 = vmatpush2.msra.mxu0 0.0
    %1283 = vmatprep.subr.mxu0 0.0
    %1284 = vmatpush2.msra.mxu0 0.0
    %1285 = vmatprep.subr.mxu0 0.0
    %1286 = vmatpush2.msra.mxu0 0.0
    %1287 = vmatprep.subr.mxu0 0.0
    %1288 = vmatpush2.msra.mxu0 0.0
    %1289 = vmatprep.subr.mxu0 0.0
    %1290 = vmatpush2.msra.mxu0 0.0
    %1291 = vmatprep.subr.mxu0 0.0
    %1292 = vmatpush2.msra.mxu0 0.0
    %1293 = vmatprep.subr.mxu0 0.0
    %1294 = vmatpush2.msra.mxu0 0.0
    %1295 = vmatprep.subr.mxu0 0.0
    %1296 = vmatpush2.msra.mxu0 0.0
    %1297 = vmatprep.mubr.f32.mxu0 0.0
    %1298 = vmatmul.mubr.f32.gmra.mxu0 %v1222
    %v1299 = vpop.f32.mrf.mxu0
    %v1300 = vadd.f32 %v1203, %v1299
    %v1301 = vpop.f32.mrf.mxu0
    %1302 = vmatprep.mubr.f32.mxu0 0.0
    %1303 = vmatmul.mubr.f32.gmra.mxu0 %v1225
    %v1304 = vpop.f32.mrf.mxu0
    %v1305 = vadd.f32 %v1208, %v1304
    %v1306 = vpop.f32.mrf.mxu0
    %1307 = vmatprep.mubr.f32.mxu0 0.0
    %1308 = vmatmul.mubr.f32.gmra.mxu0 %v1228
    %v1309 = vpop.f32.mrf.mxu0
    %v1310 = vadd.f32 %v1213, %v1309
    %v1311 = vpop.f32.mrf.mxu0
    %1312 = vmatprep.mubr.f32.mxu0 0.0
    %1313 = vmatmul.mubr.f32.gmra.mxu0 %v1231
    %v1314 = vpop.f32.mrf.mxu0
    %v1315 = vadd.f32 %v1218, %v1314
    %v1316 = vpop.f32.mrf.mxu0
    %1317 = vdwg.mxu0
    %1318 = vrot.lane.b32.xlu0 %v172, 112
    %v1319 = vpop.permute.xlu0 %1318
    %1320 = vrot.lane.b32.xlu0 %v173, 112
    %v1321 = vpop.permute.xlu0 %1320
    %1322 = vrot.lane.b32.xlu0 %v154, 80
    %v1323 = vpop.permute.xlu0 %1322
    %1324 = vrot.lane.b32.xlu0 %v159, 80
    %v1325 = vpop.permute.xlu0 %1324
    %v1326 = vsel %vm182, %v1319, 0
    %v1328 = vsel %vm182, %v1321, 0
    %v1330 = vsel %vm182, %v1323, 0
    %v1332 = vsel %vm182, %v1325, 0
    %1334 = vmatprep.subr.mxu0 0.0
    %1335 = vmatpush1.xpose.msra.mxu0 0.0
    %1336 = vmatprep.subr.mxu0 0.0
    %1337 = vmatpush1.xpose.msra.mxu0 0.0
    %1338 = vmatprep.subr.mxu0 0.0
    %1339 = vmatpush1.xpose.msra.mxu0 0.0
    %1340 = vmatprep.subr.mxu0 0.0
    %1341 = vmatpush1.xpose.msra.mxu0 0.0
    %1342 = vmatprep.subr.mxu0 0.0
    %1343 = vmatpush1.xpose.msra.mxu0 0.0
    %1344 = vmatprep.subr.mxu0 0.0
    %1345 = vmatpush1.xpose.msra.mxu0 0.0
    %1346 = vmatprep.subr.mxu0 0.0
    %1347 = vmatpush1.xpose.msra.mxu0 0.0
    %1348 = vmatprep.subr.mxu0 0.0
    %1349 = vmatpush1.xpose.msra.mxu0 0.0
    %1350 = vmatprep.subr.mxu0 0.0
    %1351 = vmatpush1.xpose.msra.mxu0 0.0
    %1352 = vmatprep.subr.mxu0 0.0
    %1353 = vmatpush1.xpose.msra.mxu0 0.0
    %1354 = vmatprep.subr.mxu0 0.0
    %1355 = vmatpush1.xpose.msra.mxu0 0.0
    %1356 = vmatprep.subr.mxu0 0.0
    %1357 = vmatpush1.xpose.msra.mxu0 0.0
    %1358 = vmatprep.subr.mxu0 0.0
    %1359 = vmatpush1.xpose.msra.mxu0 0.0
    %1360 = vmatprep.subr.mxu0 0.0
    %1361 = vmatpush1.xpose.msra.mxu0 0.0
    %1362 = vmatprep.subr.mxu0 0.0
    %1363 = vmatpush1.xpose.msra.mxu0 %v1332
    %1364 = vmatprep.subr.mxu0 0.0
    %1365 = vmatpush1.xpose.msra.mxu0 %v1330
    %1366 = vmatprep.subr.mxu0 0.0
    %1367 = vmatpush2.xpose.msra.mxu0 0.0
    %1368 = vmatprep.subr.mxu0 0.0
    %1369 = vmatpush2.xpose.msra.mxu0 0.0
    %1370 = vmatprep.subr.mxu0 0.0
    %1371 = vmatpush2.xpose.msra.mxu0 0.0
    %1372 = vmatprep.subr.mxu0 0.0
    %1373 = vmatpush2.xpose.msra.mxu0 0.0
    %1374 = vmatprep.subr.mxu0 0.0
    %1375 = vmatpush2.xpose.msra.mxu0 0.0
    %1376 = vmatprep.subr.mxu0 0.0
    %1377 = vmatpush2.xpose.msra.mxu0 0.0
    %1378 = vmatprep.subr.mxu0 0.0
    %1379 = vmatpush2.xpose.msra.mxu0 0.0
    %1380 = vmatprep.subr.mxu0 0.0
    %1381 = vmatpush2.xpose.msra.mxu0 0.0
    %1382 = vmatprep.subr.mxu0 0.0
    %1383 = vmatpush2.xpose.msra.mxu0 0.0
    %1384 = vmatprep.subr.mxu0 0.0
    %1385 = vmatpush2.xpose.msra.mxu0 0.0
    %1386 = vmatprep.subr.mxu0 0.0
    %1387 = vmatpush2.xpose.msra.mxu0 0.0
    %1388 = vmatprep.subr.mxu0 0.0
    %1389 = vmatpush2.xpose.msra.mxu0 0.0
    %1390 = vmatprep.subr.mxu0 0.0
    %1391 = vmatpush2.xpose.msra.mxu0 0.0
    %1392 = vmatprep.subr.mxu0 0.0
    %1393 = vmatpush2.xpose.msra.mxu0 0.0
    %1394 = vmatprep.subr.mxu0 0.0
    %1395 = vmatpush2.xpose.msra.mxu0 0.0
    %1396 = vmatprep.subr.mxu0 0.0
    %1397 = vmatpush2.xpose.msra.mxu0 0.0
    %1398 = vmatprep.mubr.f32.mxu0 0.0
    %1399 = vmatmul.mubr.f32.gmra.mxu0 %v1326
    %v1400 = vpop.f32.mrf.mxu0
    %v1401 = vadd.f32 0.0, %v1400
    %v1402 = vpop.f32.mrf.mxu0
    %1403 = vmatprep.mubr.f32.mxu0 0.0
    %1404 = vmatmul.mubr.f32.gmra.mxu0 %v1328
    %v1405 = vpop.f32.mrf.mxu0
    %v1406 = vadd.f32 0.0, %v1405
    %v1407 = vpop.f32.mrf.mxu0
    %1408 = vdwg.mxu0
    %1409 = vrot.lane.b32.xlu0 %v174, 112
    %v1410 = vpop.permute.xlu0 %1409
    %1411 = vrot.lane.b32.xlu0 %v175, 112
    %v1412 = vpop.permute.xlu0 %1411
    %1413 = vrot.lane.b32.xlu0 %v164, 80
    %v1414 = vpop.permute.xlu0 %1413
    %1415 = vrot.lane.b32.xlu0 %v169, 80
    %v1416 = vpop.permute.xlu0 %1415
    %v1417 = vsel %vm182, %v1410, 0
    %v1419 = vsel %vm182, %v1412, 0
    %v1421 = vsel %vm182, %v1414, 0
    %v1423 = vsel %vm182, %v1416, 0
    %1425 = vmatprep.subr.mxu0 0.0
    %1426 = vmatpush1.xpose.msra.mxu0 0.0
    %1427 = vmatprep.subr.mxu0 0.0
    %1428 = vmatpush1.xpose.msra.mxu0 0.0
    %1429 = vmatprep.subr.mxu0 0.0
    %1430 = vmatpush1.xpose.msra.mxu0 0.0
    %1431 = vmatprep.subr.mxu0 0.0
    %1432 = vmatpush1.xpose.msra.mxu0 0.0
    %1433 = vmatprep.subr.mxu0 0.0
    %1434 = vmatpush1.xpose.msra.mxu0 0.0
    %1435 = vmatprep.subr.mxu0 0.0
    %1436 = vmatpush1.xpose.msra.mxu0 0.0
    %1437 = vmatprep.subr.mxu0 0.0
    %1438 = vmatpush1.xpose.msra.mxu0 0.0
    %1439 = vmatprep.subr.mxu0 0.0
    %1440 = vmatpush1.xpose.msra.mxu0 0.0
    %1441 = vmatprep.subr.mxu0 0.0
    %1442 = vmatpush1.xpose.msra.mxu0 0.0
    %1443 = vmatprep.subr.mxu0 0.0
    %1444 = vmatpush1.xpose.msra.mxu0 0.0
    %1445 = vmatprep.subr.mxu0 0.0
    %1446 = vmatpush1.xpose.msra.mxu0 0.0
    %1447 = vmatprep.subr.mxu0 0.0
    %1448 = vmatpush1.xpose.msra.mxu0 0.0
    %1449 = vmatprep.subr.mxu0 0.0
    %1450 = vmatpush1.xpose.msra.mxu0 0.0
    %1451 = vmatprep.subr.mxu0 0.0
    %1452 = vmatpush1.xpose.msra.mxu0 0.0
    %1453 = vmatprep.subr.mxu0 0.0
    %1454 = vmatpush1.xpose.msra.mxu0 %v1423
    %1455 = vmatprep.subr.mxu0 0.0
    %1456 = vmatpush1.xpose.msra.mxu0 %v1421
    %1457 = vmatprep.subr.mxu0 0.0
    %1458 = vmatpush2.xpose.msra.mxu0 0.0
    %1459 = vmatprep.subr.mxu0 0.0
    %1460 = vmatpush2.xpose.msra.mxu0 0.0
    %1461 = vmatprep.subr.mxu0 0.0
    %1462 = vmatpush2.xpose.msra.mxu0 0.0
    %1463 = vmatprep.subr.mxu0 0.0
    %1464 = vmatpush2.xpose.msra.mxu0 0.0
    %1465 = vmatprep.subr.mxu0 0.0
    %1466 = vmatpush2.xpose.msra.mxu0 0.0
    %1467 = vmatprep.subr.mxu0 0.0
    %1468 = vmatpush2.xpose.msra.mxu0 0.0
    %1469 = vmatprep.subr.mxu0 0.0
    %1470 = vmatpush2.xpose.msra.mxu0 0.0
    %1471 = vmatprep.subr.mxu0 0.0
    %1472 = vmatpush2.xpose.msra.mxu0 0.0
    %1473 = vmatprep.subr.mxu0 0.0
    %1474 = vmatpush2.xpose.msra.mxu0 0.0
    %1475 = vmatprep.subr.mxu0 0.0
    %1476 = vmatpush2.xpose.msra.mxu0 0.0
    %1477 = vmatprep.subr.mxu0 0.0
    %1478 = vmatpush2.xpose.msra.mxu0 0.0
    %1479 = vmatprep.subr.mxu0 0.0
    %1480 = vmatpush2.xpose.msra.mxu0 0.0
    %1481 = vmatprep.subr.mxu0 0.0
    %1482 = vmatpush2.xpose.msra.mxu0 0.0
    %1483 = vmatprep.subr.mxu0 0.0
    %1484 = vmatpush2.xpose.msra.mxu0 0.0
    %1485 = vmatprep.subr.mxu0 0.0
    %1486 = vmatpush2.xpose.msra.mxu0 0.0
    %1487 = vmatprep.subr.mxu0 0.0
    %1488 = vmatpush2.xpose.msra.mxu0 0.0
    %1489 = vmatprep.mubr.f32.mxu0 0.0
    %1490 = vmatmul.mubr.f32.gmra.mxu0 %v1417
    %v1491 = vpop.f32.mrf.mxu0
    %v1492 = vadd.f32 0.0, %v1491
    %v1493 = vpop.f32.mrf.mxu0
    %1494 = vmatprep.mubr.f32.mxu0 0.0
    %1495 = vmatmul.mubr.f32.gmra.mxu0 %v1419
    %v1496 = vpop.f32.mrf.mxu0
    %v1497 = vadd.f32 0.0, %v1496
    %v1498 = vpop.f32.mrf.mxu0
    %1499 = vdwg.mxu0
    %v1500 = vsel %vm359, %v1401, -inf
    %1501 = vmax.xlane.f32.xlu0 %v1500
    %v1502 = vpop.xlane.xlu0 %1501
    %v1503 = vsel %vm359, %v1406, -inf
    %1504 = vmax.xlane.f32.xlu0 %v1503
    %v1505 = vpop.xlane.xlu0 %1504
    %v1506 = vsel %vm359, %v1492, -inf
    %1507 = vmax.xlane.f32.xlu0 %v1506
    %v1508 = vpop.xlane.xlu0 %1507
    %v1509 = vsel %vm359, %v1497, -inf
    %1510 = vmax.xlane.f32.xlu0 %v1509
    %v1511 = vpop.xlane.xlu0 %1510
    %vm1512 = vcmp.ge.f32.partialorder %v1401, %v1502
    %vm1513 = vcmp.ge.f32.partialorder %v1406, %v1505
    %vm1514 = vcmp.ge.f32.partialorder %v1492, %v1508
    %vm1515 = vcmp.ge.f32.partialorder %v1497, %v1511
    %v1516 = vsel %vm1512, 1, 0
    %v1517 = vsel %vm1513, 1, 0
    %v1518 = vsel %vm1514, 1, 0
    %v1519 = vsel %vm1515, 1, 0
    %v1520 = vcvt.s32.f32 %v1516
    %v1521 = vcvt.s32.f32 %v1517
    %v1522 = vcvt.s32.f32 %v1518
    %v1523 = vcvt.s32.f32 %v1519
    %v1524 = vsel %vm359, %v1520, 0.0
    %1525 = vadd.xlane.f32.xlu0 %v1524
    %v1526 = vpop.xlane.xlu0 %1525
    %v1527 = vsel %vm359, %v1521, 0.0
    %1528 = vadd.xlane.f32.xlu0 %v1527
    %v1529 = vpop.xlane.xlu0 %1528
    %v1530 = vsel %vm359, %v1522, 0.0
    %1531 = vadd.xlane.f32.xlu0 %v1530
    %v1532 = vpop.xlane.xlu0 %1531
    %v1533 = vsel %vm359, %v1523, 0.0
    %1534 = vadd.xlane.f32.xlu0 %v1533
    %v1535 = vpop.xlane.xlu0 %1534
    %vm1536 = vcmp.lt.f32.partialorder %v1401, %v1502
    %vm1537 = vcmp.lt.f32.partialorder %v1406, %v1505
    %vm1538 = vcmp.lt.f32.partialorder %v1492, %v1508
    %vm1539 = vcmp.lt.f32.partialorder %v1497, %v1511
    %v1540 = vsel %vm1536, %v1401, -1e+30
    %v1541 = vsel %vm1537, %v1406, -1e+30
    %v1542 = vsel %vm1538, %v1492, -1e+30
    %v1543 = vsel %vm1539, %v1497, -1e+30
    %v1544 = vsel %vm359, %v1540, -inf
    %1545 = vmax.xlane.f32.xlu0 %v1544
    %v1546 = vpop.xlane.xlu0 %1545
    %v1547 = vsel %vm359, %v1541, -inf
    %1548 = vmax.xlane.f32.xlu0 %v1547
    %v1549 = vpop.xlane.xlu0 %1548
    %v1550 = vsel %vm359, %v1542, -inf
    %1551 = vmax.xlane.f32.xlu0 %v1550
    %v1552 = vpop.xlane.xlu0 %1551
    %v1553 = vsel %vm359, %v1543, -inf
    %1554 = vmax.xlane.f32.xlu0 %v1553
    %v1555 = vpop.xlane.xlu0 %1554
    %vm1556 = vcmp.ge.f32.partialorder %v1526, 2.0
    %vm1557 = vcmp.ge.f32.partialorder %v1529, 2.0
    %vm1558 = vcmp.ge.f32.partialorder %v1532, 2.0
    %vm1559 = vcmp.ge.f32.partialorder %v1535, 2.0
    %v1560 = vsel %vm1556, %v1502, %v1546
    %v1561 = vsel %vm1557, %v1505, %v1549
    %v1562 = vsel %vm1558, %v1508, %v1552
    %v1563 = vsel %vm1559, %v1511, %v1555
    %vm1564 = vcmp.ge.f32.partialorder %v1401, %v1560
    %vm1565 = vcmp.ge.f32.partialorder %v1406, %v1561
    %vm1566 = vcmp.ge.f32.partialorder %v1492, %v1562
    %vm1567 = vcmp.ge.f32.partialorder %v1497, %v1563
    %v1568 = vsel %vm1564, %v1401, -1e+30
    %v1569 = vsel %vm1565, %v1406, -1e+30
    %v1570 = vsel %vm1566, %v1492, -1e+30
    %v1571 = vsel %vm1567, %v1497, -1e+30
    %v1572 = vsel %vm359, %v1568, -inf
    %1573 = vmax.xlane.f32.xlu0 %v1572
    %v1574 = vpop.xlane.xlu0 %1573
    %v1575 = vsel %vm359, %v1569, -inf
    %1576 = vmax.xlane.f32.xlu0 %v1575
    %v1577 = vpop.xlane.xlu0 %1576
    %v1578 = vsel %vm359, %v1570, -inf
    %1579 = vmax.xlane.f32.xlu0 %v1578
    %v1580 = vpop.xlane.xlu0 %1579
    %v1581 = vsel %vm359, %v1571, -inf
    %1582 = vmax.xlane.f32.xlu0 %v1581
    %v1583 = vpop.xlane.xlu0 %1582
    %v1584 = vsub.f32 %v1568, %v1574
    %v1585 = vsub.f32 %v1569, %v1577
    %v1586 = vsub.f32 %v1570, %v1580
    %v1587 = vsub.f32 %v1571, %v1583
    %v1588 = vmul.f32 %v1584, 1.442695
    %v1589 = vpow.pop %v1588
    %v1590 = vmul.f32 %v1585, 1.442695
    %v1591 = vpow.pop %v1590
    %v1592 = vmul.f32 %v1586, 1.442695
    %v1593 = vpow.pop %v1592
    %v1594 = vmul.f32 %v1587, 1.442695
    %v1595 = vpow.pop %v1594
    %v1596 = vsel %vm359, %v1589, 0.0
    %1597 = vadd.xlane.f32.xlu0 %v1596
    %v1598 = vpop.xlane.xlu0 %1597
    %v1599 = vsel %vm359, %v1591, 0.0
    %1600 = vadd.xlane.f32.xlu0 %v1599
    %v1601 = vpop.xlane.xlu0 %1600
    %v1602 = vsel %vm359, %v1593, 0.0
    %1603 = vadd.xlane.f32.xlu0 %v1602
    %v1604 = vpop.xlane.xlu0 %1603
    %v1605 = vsel %vm359, %v1595, 0.0
    %1606 = vadd.xlane.f32.xlu0 %v1605
    %v1607 = vpop.xlane.xlu0 %1606
    %v1608 = vrcp.pop %v1598
    %v1609 = vrcp.pop %v1601
    %v1610 = vrcp.pop %v1604
    %v1611 = vrcp.pop %v1607
    %v1612 = vmul.f32 %v1589, %v1608
    %v1613 = vmul.f32 %v1591, %v1609
    %v1614 = vmul.f32 %v1593, %v1610
    %v1615 = vmul.f32 %v1595, %v1611
    %1616 = vrot.lane.b32.xlu0 %v154, 48
    %v1617 = vpop.permute.xlu0 %1616
    %1618 = vrot.lane.b32.xlu0 %v159, 48
    %v1619 = vpop.permute.xlu0 %1618
    %v1623 = vsel %vm359, %v1612, 0
    %v1626 = vsel %vm359, %v1613, 0
    %1628 = vmatprep.subr.mxu0 0.0
    %1629 = vmatpush1.msra.mxu0 0.0
    %1630 = vmatprep.subr.mxu0 0.0
    %1631 = vmatpush1.msra.mxu0 0.0
    %1632 = vmatprep.subr.mxu0 0.0
    %1633 = vmatpush1.msra.mxu0 0.0
    %1634 = vmatprep.subr.mxu0 0.0
    %1635 = vmatpush1.msra.mxu0 0.0
    %1636 = vmatprep.subr.mxu0 0.0
    %1637 = vmatpush1.msra.mxu0 0.0
    %1638 = vmatprep.subr.mxu0 0.0
    %1639 = vmatpush1.msra.mxu0 0.0
    %1640 = vmatprep.subr.mxu0 0.0
    %1641 = vmatpush1.msra.mxu0 0.0
    %1642 = vmatprep.subr.mxu0 0.0
    %1643 = vmatpush1.msra.mxu0 0.0
    %1644 = vmatprep.subr.mxu0 0.0
    %1645 = vmatpush1.msra.mxu0 0.0
    %1646 = vmatprep.subr.mxu0 0.0
    %1647 = vmatpush1.msra.mxu0 0.0
    %1648 = vmatprep.subr.mxu0 0.0
    %1649 = vmatpush1.msra.mxu0 0.0
    %1650 = vmatprep.subr.mxu0 0.0
    %1651 = vmatpush1.msra.mxu0 0.0
    %1652 = vmatprep.subr.mxu0 0.0
    %1653 = vmatpush1.msra.mxu0 0.0
    %1654 = vmatprep.subr.mxu0 0.0
    %1655 = vmatpush1.msra.mxu0 0.0
    %1656 = vmatprep.subr.mxu0 0.0
    %1657 = vmatpush1.msra.mxu0 %v1619
    %1658 = vmatprep.subr.mxu0 0.0
    %1659 = vmatpush1.msra.mxu0 %v1617
    %1660 = vmatprep.subr.mxu0 0.0
    %1661 = vmatpush2.msra.mxu0 0.0
    %1662 = vmatprep.subr.mxu0 0.0
    %1663 = vmatpush2.msra.mxu0 0.0
    %1664 = vmatprep.subr.mxu0 0.0
    %1665 = vmatpush2.msra.mxu0 0.0
    %1666 = vmatprep.subr.mxu0 0.0
    %1667 = vmatpush2.msra.mxu0 0.0
    %1668 = vmatprep.subr.mxu0 0.0
    %1669 = vmatpush2.msra.mxu0 0.0
    %1670 = vmatprep.subr.mxu0 0.0
    %1671 = vmatpush2.msra.mxu0 0.0
    %1672 = vmatprep.subr.mxu0 0.0
    %1673 = vmatpush2.msra.mxu0 0.0
    %1674 = vmatprep.subr.mxu0 0.0
    %1675 = vmatpush2.msra.mxu0 0.0
    %1676 = vmatprep.subr.mxu0 0.0
    %1677 = vmatpush2.msra.mxu0 0.0
    %1678 = vmatprep.subr.mxu0 0.0
    %1679 = vmatpush2.msra.mxu0 0.0
    %1680 = vmatprep.subr.mxu0 0.0
    %1681 = vmatpush2.msra.mxu0 0.0
    %1682 = vmatprep.subr.mxu0 0.0
    %1683 = vmatpush2.msra.mxu0 0.0
    %1684 = vmatprep.subr.mxu0 0.0
    %1685 = vmatpush2.msra.mxu0 0.0
    %1686 = vmatprep.subr.mxu0 0.0
    %1687 = vmatpush2.msra.mxu0 0.0
    %1688 = vmatprep.subr.mxu0 0.0
    %1689 = vmatpush2.msra.mxu0 0.0
    %1690 = vmatprep.subr.mxu0 0.0
    %1691 = vmatpush2.msra.mxu0 0.0
    %1692 = vmatprep.mubr.f32.mxu0 0.0
    %1693 = vmatmul.mubr.f32.gmra.mxu0 %v1623
    %v1694 = vpop.f32.mrf.mxu0
    %v1695 = vadd.f32 0.0, %v1694
    %v1696 = vpop.f32.mrf.mxu0
    %1697 = vmatprep.mubr.f32.mxu0 0.0
    %1698 = vmatmul.mubr.f32.gmra.mxu0 %v1626
    %v1699 = vpop.f32.mrf.mxu0
    %v1700 = vadd.f32 0.0, %v1699
    %v1701 = vpop.f32.mrf.mxu0
    %1702 = vdwg.mxu0
    %1703 = vrot.lane.b32.xlu0 %v164, 48
    %v1704 = vpop.permute.xlu0 %1703
    %1705 = vrot.lane.b32.xlu0 %v169, 48
    %v1706 = vpop.permute.xlu0 %1705
    %v1710 = vsel %vm359, %v1614, 0
    %v1713 = vsel %vm359, %v1615, 0
    %1715 = vmatprep.subr.mxu0 0.0
    %1716 = vmatpush1.msra.mxu0 0.0
    %1717 = vmatprep.subr.mxu0 0.0
    %1718 = vmatpush1.msra.mxu0 0.0
    %1719 = vmatprep.subr.mxu0 0.0
    %1720 = vmatpush1.msra.mxu0 0.0
    %1721 = vmatprep.subr.mxu0 0.0
    %1722 = vmatpush1.msra.mxu0 0.0
    %1723 = vmatprep.subr.mxu0 0.0
    %1724 = vmatpush1.msra.mxu0 0.0
    %1725 = vmatprep.subr.mxu0 0.0
    %1726 = vmatpush1.msra.mxu0 0.0
    %1727 = vmatprep.subr.mxu0 0.0
    %1728 = vmatpush1.msra.mxu0 0.0
    %1729 = vmatprep.subr.mxu0 0.0
    %1730 = vmatpush1.msra.mxu0 0.0
    %1731 = vmatprep.subr.mxu0 0.0
    %1732 = vmatpush1.msra.mxu0 0.0
    %1733 = vmatprep.subr.mxu0 0.0
    %1734 = vmatpush1.msra.mxu0 0.0
    %1735 = vmatprep.subr.mxu0 0.0
    %1736 = vmatpush1.msra.mxu0 0.0
    %1737 = vmatprep.subr.mxu0 0.0
    %1738 = vmatpush1.msra.mxu0 0.0
    %1739 = vmatprep.subr.mxu0 0.0
    %1740 = vmatpush1.msra.mxu0 0.0
    %1741 = vmatprep.subr.mxu0 0.0
    %1742 = vmatpush1.msra.mxu0 0.0
    %1743 = vmatprep.subr.mxu0 0.0
    %1744 = vmatpush1.msra.mxu0 %v1706
    %1745 = vmatprep.subr.mxu0 0.0
    %1746 = vmatpush1.msra.mxu0 %v1704
    %1747 = vmatprep.subr.mxu0 0.0
    %1748 = vmatpush2.msra.mxu0 0.0
    %1749 = vmatprep.subr.mxu0 0.0
    %1750 = vmatpush2.msra.mxu0 0.0
    %1751 = vmatprep.subr.mxu0 0.0
    %1752 = vmatpush2.msra.mxu0 0.0
    %1753 = vmatprep.subr.mxu0 0.0
    %1754 = vmatpush2.msra.mxu0 0.0
    %1755 = vmatprep.subr.mxu0 0.0
    %1756 = vmatpush2.msra.mxu0 0.0
    %1757 = vmatprep.subr.mxu0 0.0
    %1758 = vmatpush2.msra.mxu0 0.0
    %1759 = vmatprep.subr.mxu0 0.0
    %1760 = vmatpush2.msra.mxu0 0.0
    %1761 = vmatprep.subr.mxu0 0.0
    %1762 = vmatpush2.msra.mxu0 0.0
    %1763 = vmatprep.subr.mxu0 0.0
    %1764 = vmatpush2.msra.mxu0 0.0
    %1765 = vmatprep.subr.mxu0 0.0
    %1766 = vmatpush2.msra.mxu0 0.0
    %1767 = vmatprep.subr.mxu0 0.0
    %1768 = vmatpush2.msra.mxu0 0.0
    %1769 = vmatprep.subr.mxu0 0.0
    %1770 = vmatpush2.msra.mxu0 0.0
    %1771 = vmatprep.subr.mxu0 0.0
    %1772 = vmatpush2.msra.mxu0 0.0
    %1773 = vmatprep.subr.mxu0 0.0
    %1774 = vmatpush2.msra.mxu0 0.0
    %1775 = vmatprep.subr.mxu0 0.0
    %1776 = vmatpush2.msra.mxu0 0.0
    %1777 = vmatprep.subr.mxu0 0.0
    %1778 = vmatpush2.msra.mxu0 0.0
    %1779 = vmatprep.mubr.f32.mxu0 0.0
    %1780 = vmatmul.mubr.f32.gmra.mxu0 %v1710
    %v1781 = vpop.f32.mrf.mxu0
    %v1782 = vadd.f32 0.0, %v1781
    %v1783 = vpop.f32.mrf.mxu0
    %1784 = vmatprep.mubr.f32.mxu0 0.0
    %1785 = vmatmul.mubr.f32.gmra.mxu0 %v1713
    %v1786 = vpop.f32.mrf.mxu0
    %v1787 = vadd.f32 0.0, %v1786
    %v1788 = vpop.f32.mrf.mxu0
    %1789 = vdwg.mxu0
    %v1790 = vld [vmem:[%s3 + $0x10] sm:$0xff]
    %v1792 = vsel %vm182, %v1695, 0
    %v1795 = vsel %vm182, %v1700, 0
    %v1798 = vsel %vm182, %v1782, 0
    %v1801 = vsel %vm182, %v1787, 0
    %1803 = vmatprep.subr.mxu0 0.0
    %1804 = vmatpush1.msra.mxu0 0.0
    %1805 = vmatprep.subr.mxu0 0.0
    %1806 = vmatpush1.msra.mxu0 0.0
    %1807 = vmatprep.subr.mxu0 0.0
    %1808 = vmatpush1.msra.mxu0 0.0
    %1809 = vmatprep.subr.mxu0 0.0
    %1810 = vmatpush1.msra.mxu0 0.0
    %1811 = vmatprep.subr.mxu0 0.0
    %1812 = vmatpush1.msra.mxu0 0.0
    %1813 = vmatprep.subr.mxu0 0.0
    %1814 = vmatpush1.msra.mxu0 0.0
    %1815 = vmatprep.subr.mxu0 0.0
    %1816 = vmatpush1.msra.mxu0 0.0
    %1817 = vmatprep.subr.mxu0 0.0
    %1818 = vmatpush1.msra.mxu0 0.0
    %1819 = vmatprep.subr.mxu0 0.0
    %1820 = vmatpush1.msra.mxu0 0.0
    %1821 = vmatprep.subr.mxu0 0.0
    %1822 = vmatpush1.msra.mxu0 0.0
    %1823 = vmatprep.subr.mxu0 0.0
    %1824 = vmatpush1.msra.mxu0 0.0
    %1825 = vmatprep.subr.mxu0 0.0
    %1826 = vmatpush1.msra.mxu0 0.0
    %1827 = vmatprep.subr.mxu0 0.0
    %1828 = vmatpush1.msra.mxu0 0.0
    %1829 = vmatprep.subr.mxu0 0.0
    %1830 = vmatpush1.msra.mxu0 0.0
    %1831 = vmatprep.subr.mxu0 0.0
    %1832 = vmatpush1.msra.mxu0 0.0
    %1833 = vmatprep.subr.mxu0 0.0
    %1834 = vmatpush1.msra.mxu0 %v1790
    %1835 = vmatprep.subr.mxu0 0.0
    %1836 = vmatpush2.msra.mxu0 0.0
    %1837 = vmatprep.subr.mxu0 0.0
    %1838 = vmatpush2.msra.mxu0 0.0
    %1839 = vmatprep.subr.mxu0 0.0
    %1840 = vmatpush2.msra.mxu0 0.0
    %1841 = vmatprep.subr.mxu0 0.0
    %1842 = vmatpush2.msra.mxu0 0.0
    %1843 = vmatprep.subr.mxu0 0.0
    %1844 = vmatpush2.msra.mxu0 0.0
    %1845 = vmatprep.subr.mxu0 0.0
    %1846 = vmatpush2.msra.mxu0 0.0
    %1847 = vmatprep.subr.mxu0 0.0
    %1848 = vmatpush2.msra.mxu0 0.0
    %1849 = vmatprep.subr.mxu0 0.0
    %1850 = vmatpush2.msra.mxu0 0.0
    %1851 = vmatprep.subr.mxu0 0.0
    %1852 = vmatpush2.msra.mxu0 0.0
    %1853 = vmatprep.subr.mxu0 0.0
    %1854 = vmatpush2.msra.mxu0 0.0
    %1855 = vmatprep.subr.mxu0 0.0
    %1856 = vmatpush2.msra.mxu0 0.0
    %1857 = vmatprep.subr.mxu0 0.0
    %1858 = vmatpush2.msra.mxu0 0.0
    %1859 = vmatprep.subr.mxu0 0.0
    %1860 = vmatpush2.msra.mxu0 0.0
    %1861 = vmatprep.subr.mxu0 0.0
    %1862 = vmatpush2.msra.mxu0 0.0
    %1863 = vmatprep.subr.mxu0 0.0
    %1864 = vmatpush2.msra.mxu0 0.0
    %1865 = vmatprep.subr.mxu0 0.0
    %1866 = vmatpush2.msra.mxu0 0.0
    %1867 = vmatprep.mubr.f32.mxu0 0.0
    %1868 = vmatmul.mubr.f32.gmra.mxu0 %v1792
    %v1869 = vpop.f32.mrf.mxu0
    %v1870 = vadd.f32 0.0, %v1869
    %v1871 = vpop.f32.mrf.mxu0
    %1872 = vmatprep.mubr.f32.mxu0 0.0
    %1873 = vmatmul.mubr.f32.gmra.mxu0 %v1795
    %v1874 = vpop.f32.mrf.mxu0
    %v1875 = vadd.f32 0.0, %v1874
    %v1876 = vpop.f32.mrf.mxu0
    %1877 = vmatprep.mubr.f32.mxu0 0.0
    %1878 = vmatmul.mubr.f32.gmra.mxu0 %v1798
    %v1879 = vpop.f32.mrf.mxu0
    %v1880 = vadd.f32 0.0, %v1879
    %v1881 = vpop.f32.mrf.mxu0
    %1882 = vmatprep.mubr.f32.mxu0 0.0
    %1883 = vmatmul.mubr.f32.gmra.mxu0 %v1801
    %v1884 = vpop.f32.mrf.mxu0
    %v1885 = vadd.f32 0.0, %v1884
    %v1886 = vpop.f32.mrf.mxu0
    %1887 = vdwg.mxu0
    %v1888 = vadd.f32 %v1300, %v1870
    %v1889 = vadd.f32 %v1305, %v1875
    %v1890 = vadd.f32 %v1310, %v1880
    %v1891 = vadd.f32 %v1315, %v1885
    %1892 = vrot.lane.b32.xlu0 %v172, 104
    %v1893 = vpop.permute.xlu0 %1892
    %1894 = vrot.lane.b32.xlu0 %v173, 104
    %v1895 = vpop.permute.xlu0 %1894
    %1896 = vrot.lane.b32.xlu0 %v154, 72
    %v1897 = vpop.permute.xlu0 %1896
    %1898 = vrot.lane.b32.xlu0 %v159, 72
    %v1899 = vpop.permute.xlu0 %1898
    %v1900 = vsel %vm182, %v1893, 0
    %v1902 = vsel %vm182, %v1895, 0
    %v1904 = vsel %vm182, %v1897, 0
    %v1906 = vsel %vm182, %v1899, 0
    %1908 = vmatprep.subr.mxu0 0.0
    %1909 = vmatpush1.xpose.msra.mxu0 0.0
    %1910 = vmatprep.subr.mxu0 0.0
    %1911 = vmatpush1.xpose.msra.mxu0 0.0
    %1912 = vmatprep.subr.mxu0 0.0
    %1913 = vmatpush1.xpose.msra.mxu0 0.0
    %1914 = vmatprep.subr.mxu0 0.0
    %1915 = vmatpush1.xpose.msra.mxu0 0.0
    %1916 = vmatprep.subr.mxu0 0.0
    %1917 = vmatpush1.xpose.msra.mxu0 0.0
    %1918 = vmatprep.subr.mxu0 0.0
    %1919 = vmatpush1.xpose.msra.mxu0 0.0
    %1920 = vmatprep.subr.mxu0 0.0
    %1921 = vmatpush1.xpose.msra.mxu0 0.0
    %1922 = vmatprep.subr.mxu0 0.0
    %1923 = vmatpush1.xpose.msra.mxu0 0.0
    %1924 = vmatprep.subr.mxu0 0.0
    %1925 = vmatpush1.xpose.msra.mxu0 0.0
    %1926 = vmatprep.subr.mxu0 0.0
    %1927 = vmatpush1.xpose.msra.mxu0 0.0
    %1928 = vmatprep.subr.mxu0 0.0
    %1929 = vmatpush1.xpose.msra.mxu0 0.0
    %1930 = vmatprep.subr.mxu0 0.0
    %1931 = vmatpush1.xpose.msra.mxu0 0.0
    %1932 = vmatprep.subr.mxu0 0.0
    %1933 = vmatpush1.xpose.msra.mxu0 0.0
    %1934 = vmatprep.subr.mxu0 0.0
    %1935 = vmatpush1.xpose.msra.mxu0 0.0
    %1936 = vmatprep.subr.mxu0 0.0
    %1937 = vmatpush1.xpose.msra.mxu0 %v1906
    %1938 = vmatprep.subr.mxu0 0.0
    %1939 = vmatpush1.xpose.msra.mxu0 %v1904
    %1940 = vmatprep.subr.mxu0 0.0
    %1941 = vmatpush2.xpose.msra.mxu0 0.0
    %1942 = vmatprep.subr.mxu0 0.0
    %1943 = vmatpush2.xpose.msra.mxu0 0.0
    %1944 = vmatprep.subr.mxu0 0.0
    %1945 = vmatpush2.xpose.msra.mxu0 0.0
    %1946 = vmatprep.subr.mxu0 0.0
    %1947 = vmatpush2.xpose.msra.mxu0 0.0
    %1948 = vmatprep.subr.mxu0 0.0
    %1949 = vmatpush2.xpose.msra.mxu0 0.0
    %1950 = vmatprep.subr.mxu0 0.0
    %1951 = vmatpush2.xpose.msra.mxu0 0.0
    %1952 = vmatprep.subr.mxu0 0.0
    %1953 = vmatpush2.xpose.msra.mxu0 0.0
    %1954 = vmatprep.subr.mxu0 0.0
    %1955 = vmatpush2.xpose.msra.mxu0 0.0
    %1956 = vmatprep.subr.mxu0 0.0
    %1957 = vmatpush2.xpose.msra.mxu0 0.0
    %1958 = vmatprep.subr.mxu0 0.0
    %1959 = vmatpush2.xpose.msra.mxu0 0.0
    %1960 = vmatprep.subr.mxu0 0.0
    %1961 = vmatpush2.xpose.msra.mxu0 0.0
    %1962 = vmatprep.subr.mxu0 0.0
    %1963 = vmatpush2.xpose.msra.mxu0 0.0
    %1964 = vmatprep.subr.mxu0 0.0
    %1965 = vmatpush2.xpose.msra.mxu0 0.0
    %1966 = vmatprep.subr.mxu0 0.0
    %1967 = vmatpush2.xpose.msra.mxu0 0.0
    %1968 = vmatprep.subr.mxu0 0.0
    %1969 = vmatpush2.xpose.msra.mxu0 0.0
    %1970 = vmatprep.subr.mxu0 0.0
    %1971 = vmatpush2.xpose.msra.mxu0 0.0
    %1972 = vmatprep.mubr.f32.mxu0 0.0
    %1973 = vmatmul.mubr.f32.gmra.mxu0 %v1900
    %v1974 = vpop.f32.mrf.mxu0
    %v1975 = vadd.f32 0.0, %v1974
    %v1976 = vpop.f32.mrf.mxu0
    %1977 = vmatprep.mubr.f32.mxu0 0.0
    %1978 = vmatmul.mubr.f32.gmra.mxu0 %v1902
    %v1979 = vpop.f32.mrf.mxu0
    %v1980 = vadd.f32 0.0, %v1979
    %v1981 = vpop.f32.mrf.mxu0
    %1982 = vdwg.mxu0
    %1983 = vrot.lane.b32.xlu0 %v174, 104
    %v1984 = vpop.permute.xlu0 %1983
    %1985 = vrot.lane.b32.xlu0 %v175, 104
    %v1986 = vpop.permute.xlu0 %1985
    %1987 = vrot.lane.b32.xlu0 %v164, 72
    %v1988 = vpop.permute.xlu0 %1987
    %1989 = vrot.lane.b32.xlu0 %v169, 72
    %v1990 = vpop.permute.xlu0 %1989
    %v1991 = vsel %vm182, %v1984, 0
    %v1993 = vsel %vm182, %v1986, 0
    %v1995 = vsel %vm182, %v1988, 0
    %v1997 = vsel %vm182, %v1990, 0
    %1999 = vmatprep.subr.mxu0 0.0
    %2000 = vmatpush1.xpose.msra.mxu0 0.0
    %2001 = vmatprep.subr.mxu0 0.0
    %2002 = vmatpush1.xpose.msra.mxu0 0.0
    %2003 = vmatprep.subr.mxu0 0.0
    %2004 = vmatpush1.xpose.msra.mxu0 0.0
    %2005 = vmatprep.subr.mxu0 0.0
    %2006 = vmatpush1.xpose.msra.mxu0 0.0
    %2007 = vmatprep.subr.mxu0 0.0
    %2008 = vmatpush1.xpose.msra.mxu0 0.0
    %2009 = vmatprep.subr.mxu0 0.0
    %2010 = vmatpush1.xpose.msra.mxu0 0.0
    %2011 = vmatprep.subr.mxu0 0.0
    %2012 = vmatpush1.xpose.msra.mxu0 0.0
    %2013 = vmatprep.subr.mxu0 0.0
    %2014 = vmatpush1.xpose.msra.mxu0 0.0
    %2015 = vmatprep.subr.mxu0 0.0
    %2016 = vmatpush1.xpose.msra.mxu0 0.0
    %2017 = vmatprep.subr.mxu0 0.0
    %2018 = vmatpush1.xpose.msra.mxu0 0.0
    %2019 = vmatprep.subr.mxu0 0.0
    %2020 = vmatpush1.xpose.msra.mxu0 0.0
    %2021 = vmatprep.subr.mxu0 0.0
    %2022 = vmatpush1.xpose.msra.mxu0 0.0
    %2023 = vmatprep.subr.mxu0 0.0
    %2024 = vmatpush1.xpose.msra.mxu0 0.0
    %2025 = vmatprep.subr.mxu0 0.0
    %2026 = vmatpush1.xpose.msra.mxu0 0.0
    %2027 = vmatprep.subr.mxu0 0.0
    %2028 = vmatpush1.xpose.msra.mxu0 %v1997
    %2029 = vmatprep.subr.mxu0 0.0
    %2030 = vmatpush1.xpose.msra.mxu0 %v1995
    %2031 = vmatprep.subr.mxu0 0.0
    %2032 = vmatpush2.xpose.msra.mxu0 0.0
    %2033 = vmatprep.subr.mxu0 0.0
    %2034 = vmatpush2.xpose.msra.mxu0 0.0
    %2035 = vmatprep.subr.mxu0 0.0
    %2036 = vmatpush2.xpose.msra.mxu0 0.0
    %2037 = vmatprep.subr.mxu0 0.0
    %2038 = vmatpush2.xpose.msra.mxu0 0.0
    %2039 = vmatprep.subr.mxu0 0.0
    %2040 = vmatpush2.xpose.msra.mxu0 0.0
    %2041 = vmatprep.subr.mxu0 0.0
    %2042 = vmatpush2.xpose.msra.mxu0 0.0
    %2043 = vmatprep.subr.mxu0 0.0
    %2044 = vmatpush2.xpose.msra.mxu0 0.0
    %2045 = vmatprep.subr.mxu0 0.0
    %2046 = vmatpush2.xpose.msra.mxu0 0.0
    %2047 = vmatprep.subr.mxu0 0.0
    %2048 = vmatpush2.xpose.msra.mxu0 0.0
    %2049 = vmatprep.subr.mxu0 0.0
    %2050 = vmatpush2.xpose.msra.mxu0 0.0
    %2051 = vmatprep.subr.mxu0 0.0
    %2052 = vmatpush2.xpose.msra.mxu0 0.0
    %2053 = vmatprep.subr.mxu0 0.0
    %2054 = vmatpush2.xpose.msra.mxu0 0.0
    %2055 = vmatprep.subr.mxu0 0.0
    %2056 = vmatpush2.xpose.msra.mxu0 0.0
    %2057 = vmatprep.subr.mxu0 0.0
    %2058 = vmatpush2.xpose.msra.mxu0 0.0
    %2059 = vmatprep.subr.mxu0 0.0
    %2060 = vmatpush2.xpose.msra.mxu0 0.0
    %2061 = vmatprep.subr.mxu0 0.0
    %2062 = vmatpush2.xpose.msra.mxu0 0.0
    %2063 = vmatprep.mubr.f32.mxu0 0.0
    %2064 = vmatmul.mubr.f32.gmra.mxu0 %v1991
    %v2065 = vpop.f32.mrf.mxu0
    %v2066 = vadd.f32 0.0, %v2065
    %v2067 = vpop.f32.mrf.mxu0
    %2068 = vmatprep.mubr.f32.mxu0 0.0
    %2069 = vmatmul.mubr.f32.gmra.mxu0 %v1993
    %v2070 = vpop.f32.mrf.mxu0
    %v2071 = vadd.f32 0.0, %v2070
    %v2072 = vpop.f32.mrf.mxu0
    %2073 = vdwg.mxu0
    %v2074 = vsel %vm359, %v1975, -inf
    %2075 = vmax.xlane.f32.xlu0 %v2074
    %v2076 = vpop.xlane.xlu0 %2075
    %v2077 = vsel %vm359, %v1980, -inf
    %2078 = vmax.xlane.f32.xlu0 %v2077
    %v2079 = vpop.xlane.xlu0 %2078
    %v2080 = vsel %vm359, %v2066, -inf
    %2081 = vmax.xlane.f32.xlu0 %v2080
    %v2082 = vpop.xlane.xlu0 %2081
    %v2083 = vsel %vm359, %v2071, -inf
    %2084 = vmax.xlane.f32.xlu0 %v2083
    %v2085 = vpop.xlane.xlu0 %2084
    %vm2086 = vcmp.ge.f32.partialorder %v1975, %v2076
    %vm2087 = vcmp.ge.f32.partialorder %v1980, %v2079
    %vm2088 = vcmp.ge.f32.partialorder %v2066, %v2082
    %vm2089 = vcmp.ge.f32.partialorder %v2071, %v2085
    %v2090 = vsel %vm2086, 1, 0
    %v2091 = vsel %vm2087, 1, 0
    %v2092 = vsel %vm2088, 1, 0
    %v2093 = vsel %vm2089, 1, 0
    %v2094 = vcvt.s32.f32 %v2090
    %v2095 = vcvt.s32.f32 %v2091
    %v2096 = vcvt.s32.f32 %v2092
    %v2097 = vcvt.s32.f32 %v2093
    %v2098 = vsel %vm359, %v2094, 0.0
    %2099 = vadd.xlane.f32.xlu0 %v2098
    %v2100 = vpop.xlane.xlu0 %2099
    %v2101 = vsel %vm359, %v2095, 0.0
    %2102 = vadd.xlane.f32.xlu0 %v2101
    %v2103 = vpop.xlane.xlu0 %2102
    %v2104 = vsel %vm359, %v2096, 0.0
    %2105 = vadd.xlane.f32.xlu0 %v2104
    %v2106 = vpop.xlane.xlu0 %2105
    %v2107 = vsel %vm359, %v2097, 0.0
    %2108 = vadd.xlane.f32.xlu0 %v2107
    %v2109 = vpop.xlane.xlu0 %2108
    %vm2110 = vcmp.lt.f32.partialorder %v1975, %v2076
    %vm2111 = vcmp.lt.f32.partialorder %v1980, %v2079
    %vm2112 = vcmp.lt.f32.partialorder %v2066, %v2082
    %vm2113 = vcmp.lt.f32.partialorder %v2071, %v2085
    %v2114 = vsel %vm2110, %v1975, -1e+30
    %v2115 = vsel %vm2111, %v1980, -1e+30
    %v2116 = vsel %vm2112, %v2066, -1e+30
    %v2117 = vsel %vm2113, %v2071, -1e+30
    %v2118 = vsel %vm359, %v2114, -inf
    %2119 = vmax.xlane.f32.xlu0 %v2118
    %v2120 = vpop.xlane.xlu0 %2119
    %v2121 = vsel %vm359, %v2115, -inf
    %2122 = vmax.xlane.f32.xlu0 %v2121
    %v2123 = vpop.xlane.xlu0 %2122
    %v2124 = vsel %vm359, %v2116, -inf
    %2125 = vmax.xlane.f32.xlu0 %v2124
    %v2126 = vpop.xlane.xlu0 %2125
    %v2127 = vsel %vm359, %v2117, -inf
    %2128 = vmax.xlane.f32.xlu0 %v2127
    %v2129 = vpop.xlane.xlu0 %2128
    %vm2130 = vcmp.ge.f32.partialorder %v2100, 2.0
    %vm2131 = vcmp.ge.f32.partialorder %v2103, 2.0
    %vm2132 = vcmp.ge.f32.partialorder %v2106, 2.0
    %vm2133 = vcmp.ge.f32.partialorder %v2109, 2.0
    %v2134 = vsel %vm2130, %v2076, %v2120
    %v2135 = vsel %vm2131, %v2079, %v2123
    %v2136 = vsel %vm2132, %v2082, %v2126
    %v2137 = vsel %vm2133, %v2085, %v2129
    %vm2138 = vcmp.ge.f32.partialorder %v1975, %v2134
    %vm2139 = vcmp.ge.f32.partialorder %v1980, %v2135
    %vm2140 = vcmp.ge.f32.partialorder %v2066, %v2136
    %vm2141 = vcmp.ge.f32.partialorder %v2071, %v2137
    %v2142 = vsel %vm2138, %v1975, -1e+30
    %v2143 = vsel %vm2139, %v1980, -1e+30
    %v2144 = vsel %vm2140, %v2066, -1e+30
    %v2145 = vsel %vm2141, %v2071, -1e+30
    %v2146 = vsel %vm359, %v2142, -inf
    %2147 = vmax.xlane.f32.xlu0 %v2146
    %v2148 = vpop.xlane.xlu0 %2147
    %v2149 = vsel %vm359, %v2143, -inf
    %2150 = vmax.xlane.f32.xlu0 %v2149
    %v2151 = vpop.xlane.xlu0 %2150
    %v2152 = vsel %vm359, %v2144, -inf
    %2153 = vmax.xlane.f32.xlu0 %v2152
    %v2154 = vpop.xlane.xlu0 %2153
    %v2155 = vsel %vm359, %v2145, -inf
    %2156 = vmax.xlane.f32.xlu0 %v2155
    %v2157 = vpop.xlane.xlu0 %2156
    %v2158 = vsub.f32 %v2142, %v2148
    %v2159 = vsub.f32 %v2143, %v2151
    %v2160 = vsub.f32 %v2144, %v2154
    %v2161 = vsub.f32 %v2145, %v2157
    %v2162 = vmul.f32 %v2158, 1.442695
    %v2163 = vpow.pop %v2162
    %v2164 = vmul.f32 %v2159, 1.442695
    %v2165 = vpow.pop %v2164
    %v2166 = vmul.f32 %v2160, 1.442695
    %v2167 = vpow.pop %v2166
    %v2168 = vmul.f32 %v2161, 1.442695
    %v2169 = vpow.pop %v2168
    %v2170 = vsel %vm359, %v2163, 0.0
    %2171 = vadd.xlane.f32.xlu0 %v2170
    %v2172 = vpop.xlane.xlu0 %2171
    %v2173 = vsel %vm359, %v2165, 0.0
    %2174 = vadd.xlane.f32.xlu0 %v2173
    %v2175 = vpop.xlane.xlu0 %2174
    %v2176 = vsel %vm359, %v2167, 0.0
    %2177 = vadd.xlane.f32.xlu0 %v2176
    %v2178 = vpop.xlane.xlu0 %2177
    %v2179 = vsel %vm359, %v2169, 0.0
    %2180 = vadd.xlane.f32.xlu0 %v2179
    %v2181 = vpop.xlane.xlu0 %2180
    %v2182 = vrcp.pop %v2172
    %v2183 = vrcp.pop %v2175
    %v2184 = vrcp.pop %v2178
    %v2185 = vrcp.pop %v2181
    %v2186 = vmul.f32 %v2163, %v2182
    %v2187 = vmul.f32 %v2165, %v2183
    %v2188 = vmul.f32 %v2167, %v2184
    %v2189 = vmul.f32 %v2169, %v2185
    %2190 = vrot.lane.b32.xlu0 %v154, 40
    %v2191 = vpop.permute.xlu0 %2190
    %2192 = vrot.lane.b32.xlu0 %v159, 40
    %v2193 = vpop.permute.xlu0 %2192
    %v2197 = vsel %vm359, %v2186, 0
    %v2200 = vsel %vm359, %v2187, 0
    %2202 = vmatprep.subr.mxu0 0.0
    %2203 = vmatpush1.msra.mxu0 0.0
    %2204 = vmatprep.subr.mxu0 0.0
    %2205 = vmatpush1.msra.mxu0 0.0
    %2206 = vmatprep.subr.mxu0 0.0
    %2207 = vmatpush1.msra.mxu0 0.0
    %2208 = vmatprep.subr.mxu0 0.0
    %2209 = vmatpush1.msra.mxu0 0.0
    %2210 = vmatprep.subr.mxu0 0.0
    %2211 = vmatpush1.msra.mxu0 0.0
    %2212 = vmatprep.subr.mxu0 0.0
    %2213 = vmatpush1.msra.mxu0 0.0
    %2214 = vmatprep.subr.mxu0 0.0
    %2215 = vmatpush1.msra.mxu0 0.0
    %2216 = vmatprep.subr.mxu0 0.0
    %2217 = vmatpush1.msra.mxu0 0.0
    %2218 = vmatprep.subr.mxu0 0.0
    %2219 = vmatpush1.msra.mxu0 0.0
    %2220 = vmatprep.subr.mxu0 0.0
    %2221 = vmatpush1.msra.mxu0 0.0
    %2222 = vmatprep.subr.mxu0 0.0
    %2223 = vmatpush1.msra.mxu0 0.0
    %2224 = vmatprep.subr.mxu0 0.0
    %2225 = vmatpush1.msra.mxu0 0.0
    %2226 = vmatprep.subr.mxu0 0.0
    %2227 = vmatpush1.msra.mxu0 0.0
    %2228 = vmatprep.subr.mxu0 0.0
    %2229 = vmatpush1.msra.mxu0 0.0
    %2230 = vmatprep.subr.mxu0 0.0
    %2231 = vmatpush1.msra.mxu0 %v2193
    %2232 = vmatprep.subr.mxu0 0.0
    %2233 = vmatpush1.msra.mxu0 %v2191
    %2234 = vmatprep.subr.mxu0 0.0
    %2235 = vmatpush2.msra.mxu0 0.0
    %2236 = vmatprep.subr.mxu0 0.0
    %2237 = vmatpush2.msra.mxu0 0.0
    %2238 = vmatprep.subr.mxu0 0.0
    %2239 = vmatpush2.msra.mxu0 0.0
    %2240 = vmatprep.subr.mxu0 0.0
    %2241 = vmatpush2.msra.mxu0 0.0
    %2242 = vmatprep.subr.mxu0 0.0
    %2243 = vmatpush2.msra.mxu0 0.0
    %2244 = vmatprep.subr.mxu0 0.0
    %2245 = vmatpush2.msra.mxu0 0.0
    %2246 = vmatprep.subr.mxu0 0.0
    %2247 = vmatpush2.msra.mxu0 0.0
    %2248 = vmatprep.subr.mxu0 0.0
    %2249 = vmatpush2.msra.mxu0 0.0
    %2250 = vmatprep.subr.mxu0 0.0
    %2251 = vmatpush2.msra.mxu0 0.0
    %2252 = vmatprep.subr.mxu0 0.0
    %2253 = vmatpush2.msra.mxu0 0.0
    %2254 = vmatprep.subr.mxu0 0.0
    %2255 = vmatpush2.msra.mxu0 0.0
    %2256 = vmatprep.subr.mxu0 0.0
    %2257 = vmatpush2.msra.mxu0 0.0
    %2258 = vmatprep.subr.mxu0 0.0
    %2259 = vmatpush2.msra.mxu0 0.0
    %2260 = vmatprep.subr.mxu0 0.0
    %2261 = vmatpush2.msra.mxu0 0.0
    %2262 = vmatprep.subr.mxu0 0.0
    %2263 = vmatpush2.msra.mxu0 0.0
    %2264 = vmatprep.subr.mxu0 0.0
    %2265 = vmatpush2.msra.mxu0 0.0
    %2266 = vmatprep.mubr.f32.mxu0 0.0
    %2267 = vmatmul.mubr.f32.gmra.mxu0 %v2197
    %v2268 = vpop.f32.mrf.mxu0
    %v2269 = vadd.f32 0.0, %v2268
    %v2270 = vpop.f32.mrf.mxu0
    %2271 = vmatprep.mubr.f32.mxu0 0.0
    %2272 = vmatmul.mubr.f32.gmra.mxu0 %v2200
    %v2273 = vpop.f32.mrf.mxu0
    %v2274 = vadd.f32 0.0, %v2273
    %v2275 = vpop.f32.mrf.mxu0
    %2276 = vdwg.mxu0
    %2277 = vrot.lane.b32.xlu0 %v164, 40
    %v2278 = vpop.permute.xlu0 %2277
    %2279 = vrot.lane.b32.xlu0 %v169, 40
    %v2280 = vpop.permute.xlu0 %2279
    %v2284 = vsel %vm359, %v2188, 0
    %v2287 = vsel %vm359, %v2189, 0
    %2289 = vmatprep.subr.mxu0 0.0
    %2290 = vmatpush1.msra.mxu0 0.0
    %2291 = vmatprep.subr.mxu0 0.0
    %2292 = vmatpush1.msra.mxu0 0.0
    %2293 = vmatprep.subr.mxu0 0.0
    %2294 = vmatpush1.msra.mxu0 0.0
    %2295 = vmatprep.subr.mxu0 0.0
    %2296 = vmatpush1.msra.mxu0 0.0
    %2297 = vmatprep.subr.mxu0 0.0
    %2298 = vmatpush1.msra.mxu0 0.0
    %2299 = vmatprep.subr.mxu0 0.0
    %2300 = vmatpush1.msra.mxu0 0.0
    %2301 = vmatprep.subr.mxu0 0.0
    %2302 = vmatpush1.msra.mxu0 0.0
    %2303 = vmatprep.subr.mxu0 0.0
    %2304 = vmatpush1.msra.mxu0 0.0
    %2305 = vmatprep.subr.mxu0 0.0
    %2306 = vmatpush1.msra.mxu0 0.0
    %2307 = vmatprep.subr.mxu0 0.0
    %2308 = vmatpush1.msra.mxu0 0.0
    %2309 = vmatprep.subr.mxu0 0.0
    %2310 = vmatpush1.msra.mxu0 0.0
    %2311 = vmatprep.subr.mxu0 0.0
    %2312 = vmatpush1.msra.mxu0 0.0
    %2313 = vmatprep.subr.mxu0 0.0
    %2314 = vmatpush1.msra.mxu0 0.0
    %2315 = vmatprep.subr.mxu0 0.0
    %2316 = vmatpush1.msra.mxu0 0.0
    %2317 = vmatprep.subr.mxu0 0.0
    %2318 = vmatpush1.msra.mxu0 %v2280
    %2319 = vmatprep.subr.mxu0 0.0
    %2320 = vmatpush1.msra.mxu0 %v2278
    %2321 = vmatprep.subr.mxu0 0.0
    %2322 = vmatpush2.msra.mxu0 0.0
    %2323 = vmatprep.subr.mxu0 0.0
    %2324 = vmatpush2.msra.mxu0 0.0
    %2325 = vmatprep.subr.mxu0 0.0
    %2326 = vmatpush2.msra.mxu0 0.0
    %2327 = vmatprep.subr.mxu0 0.0
    %2328 = vmatpush2.msra.mxu0 0.0
    %2329 = vmatprep.subr.mxu0 0.0
    %2330 = vmatpush2.msra.mxu0 0.0
    %2331 = vmatprep.subr.mxu0 0.0
    %2332 = vmatpush2.msra.mxu0 0.0
    %2333 = vmatprep.subr.mxu0 0.0
    %2334 = vmatpush2.msra.mxu0 0.0
    %2335 = vmatprep.subr.mxu0 0.0
    %2336 = vmatpush2.msra.mxu0 0.0
    %2337 = vmatprep.subr.mxu0 0.0
    %2338 = vmatpush2.msra.mxu0 0.0
    %2339 = vmatprep.subr.mxu0 0.0
    %2340 = vmatpush2.msra.mxu0 0.0
    %2341 = vmatprep.subr.mxu0 0.0
    %2342 = vmatpush2.msra.mxu0 0.0
    %2343 = vmatprep.subr.mxu0 0.0
    %2344 = vmatpush2.msra.mxu0 0.0
    %2345 = vmatprep.subr.mxu0 0.0
    %2346 = vmatpush2.msra.mxu0 0.0
    %2347 = vmatprep.subr.mxu0 0.0
    %2348 = vmatpush2.msra.mxu0 0.0
    %2349 = vmatprep.subr.mxu0 0.0
    %2350 = vmatpush2.msra.mxu0 0.0
    %2351 = vmatprep.subr.mxu0 0.0
    %2352 = vmatpush2.msra.mxu0 0.0
    %2353 = vmatprep.mubr.f32.mxu0 0.0
    %2354 = vmatmul.mubr.f32.gmra.mxu0 %v2284
    %v2355 = vpop.f32.mrf.mxu0
    %v2356 = vadd.f32 0.0, %v2355
    %v2357 = vpop.f32.mrf.mxu0
    %2358 = vmatprep.mubr.f32.mxu0 0.0
    %2359 = vmatmul.mubr.f32.gmra.mxu0 %v2287
    %v2360 = vpop.f32.mrf.mxu0
    %v2361 = vadd.f32 0.0, %v2360
    %v2362 = vpop.f32.mrf.mxu0
    %2363 = vdwg.mxu0
    %v2364 = vld [vmem:[%s3 + $0x18] sm:$0xff]
    %v2366 = vsel %vm182, %v2269, 0
    %v2369 = vsel %vm182, %v2274, 0
    %v2372 = vsel %vm182, %v2356, 0
    %v2375 = vsel %vm182, %v2361, 0
    %2377 = vmatprep.subr.mxu0 0.0
    %2378 = vmatpush1.msra.mxu0 0.0
    %2379 = vmatprep.subr.mxu0 0.0
    %2380 = vmatpush1.msra.mxu0 0.0
    %2381 = vmatprep.subr.mxu0 0.0
    %2382 = vmatpush1.msra.mxu0 0.0
    %2383 = vmatprep.subr.mxu0 0.0
    %2384 = vmatpush1.msra.mxu0 0.0
    %2385 = vmatprep.subr.mxu0 0.0
    %2386 = vmatpush1.msra.mxu0 0.0
    %2387 = vmatprep.subr.mxu0 0.0
    %2388 = vmatpush1.msra.mxu0 0.0
    %2389 = vmatprep.subr.mxu0 0.0
    %2390 = vmatpush1.msra.mxu0 0.0
    %2391 = vmatprep.subr.mxu0 0.0
    %2392 = vmatpush1.msra.mxu0 0.0
    %2393 = vmatprep.subr.mxu0 0.0
    %2394 = vmatpush1.msra.mxu0 0.0
    %2395 = vmatprep.subr.mxu0 0.0
    %2396 = vmatpush1.msra.mxu0 0.0
    %2397 = vmatprep.subr.mxu0 0.0
    %2398 = vmatpush1.msra.mxu0 0.0
    %2399 = vmatprep.subr.mxu0 0.0
    %2400 = vmatpush1.msra.mxu0 0.0
    %2401 = vmatprep.subr.mxu0 0.0
    %2402 = vmatpush1.msra.mxu0 0.0
    %2403 = vmatprep.subr.mxu0 0.0
    %2404 = vmatpush1.msra.mxu0 0.0
    %2405 = vmatprep.subr.mxu0 0.0
    %2406 = vmatpush1.msra.mxu0 0.0
    %2407 = vmatprep.subr.mxu0 0.0
    %2408 = vmatpush1.msra.mxu0 %v2364
    %2409 = vmatprep.subr.mxu0 0.0
    %2410 = vmatpush2.msra.mxu0 0.0
    %2411 = vmatprep.subr.mxu0 0.0
    %2412 = vmatpush2.msra.mxu0 0.0
    %2413 = vmatprep.subr.mxu0 0.0
    %2414 = vmatpush2.msra.mxu0 0.0
    %2415 = vmatprep.subr.mxu0 0.0
    %2416 = vmatpush2.msra.mxu0 0.0
    %2417 = vmatprep.subr.mxu0 0.0
    %2418 = vmatpush2.msra.mxu0 0.0
    %2419 = vmatprep.subr.mxu0 0.0
    %2420 = vmatpush2.msra.mxu0 0.0
    %2421 = vmatprep.subr.mxu0 0.0
    %2422 = vmatpush2.msra.mxu0 0.0
    %2423 = vmatprep.subr.mxu0 0.0
    %2424 = vmatpush2.msra.mxu0 0.0
    %2425 = vmatprep.subr.mxu0 0.0
    %2426 = vmatpush2.msra.mxu0 0.0
    %2427 = vmatprep.subr.mxu0 0.0
    %2428 = vmatpush2.msra.mxu0 0.0
    %2429 = vmatprep.subr.mxu0 0.0
    %2430 = vmatpush2.msra.mxu0 0.0
    %2431 = vmatprep.subr.mxu0 0.0
    %2432 = vmatpush2.msra.mxu0 0.0
    %2433 = vmatprep.subr.mxu0 0.0
    %2434 = vmatpush2.msra.mxu0 0.0
    %2435 = vmatprep.subr.mxu0 0.0
    %2436 = vmatpush2.msra.mxu0 0.0
    %2437 = vmatprep.subr.mxu0 0.0
    %2438 = vmatpush2.msra.mxu0 0.0
    %2439 = vmatprep.subr.mxu0 0.0
    %2440 = vmatpush2.msra.mxu0 0.0
    %2441 = vmatprep.mubr.f32.mxu0 0.0
    %2442 = vmatmul.mubr.f32.gmra.mxu0 %v2366
    %v2443 = vpop.f32.mrf.mxu0
    %v2444 = vadd.f32 0.0, %v2443
    %v2445 = vpop.f32.mrf.mxu0
    %2446 = vmatprep.mubr.f32.mxu0 0.0
    %2447 = vmatmul.mubr.f32.gmra.mxu0 %v2369
    %v2448 = vpop.f32.mrf.mxu0
    %v2449 = vadd.f32 0.0, %v2448
    %v2450 = vpop.f32.mrf.mxu0
    %2451 = vmatprep.mubr.f32.mxu0 0.0
    %2452 = vmatmul.mubr.f32.gmra.mxu0 %v2372
    %v2453 = vpop.f32.mrf.mxu0
    %v2454 = vadd.f32 0.0, %v2453
    %v2455 = vpop.f32.mrf.mxu0
    %2456 = vmatprep.mubr.f32.mxu0 0.0
    %2457 = vmatmul.mubr.f32.gmra.mxu0 %v2375
    %v2458 = vpop.f32.mrf.mxu0
    %v2459 = vadd.f32 0.0, %v2458
    %v2460 = vpop.f32.mrf.mxu0
    %2461 = vdwg.mxu0
    %v2462 = vadd.f32 %v1888, %v2444
    %v2463 = vadd.f32 %v1889, %v2449
    %v2464 = vadd.f32 %v1890, %v2454
    %v2465 = vadd.f32 %v1891, %v2459
    %v2466 = vld [vmem:[%s4] sm:$0x1]
    %v2468 = vlaneseq
    %v2469 = vshrl.u32 %v2468, 7
    %v2470 = vsub.s32 0, %v2469
    %v2471 = vrot.slane %v2466, %v2470
    %v2473 = vadd.f32 %v2462, %v2471
    %v2474 = vadd.f32 %v2463, %v2471
    %v2475 = vadd.f32 %v2464, %v2471
    %v2476 = vadd.f32 %v2465, %v2471
    %v2477 = vadd.f32 %v59, %v2473
    %v2478 = vadd.f32 %v60, %v2474
    %v2479 = vadd.f32 %v61, %v2475
    %v2480 = vadd.f32 %v62, %v2476
    %v2481 = vld [vmem:[%s5] sm:$0x1]
    %v2482 = vld [vmem:[%s6] sm:$0x1]
    %v2483 = vsel %vm74, %v2477, 0.0
    %2484 = vadd.xlane.f32.xlu0 %v2483
    %v2485 = vpop.xlane.xlu0 %2484
    %v2486 = vsel %vm74, %v2478, 0.0
    %2487 = vadd.xlane.f32.xlu0 %v2486
    %v2488 = vpop.xlane.xlu0 %2487
    %v2489 = vsel %vm74, %v2479, 0.0
    %2490 = vadd.xlane.f32.xlu0 %v2489
    %v2491 = vpop.xlane.xlu0 %2490
    %v2492 = vsel %vm74, %v2480, 0.0
    %2493 = vadd.xlane.f32.xlu0 %v2492
    %v2494 = vpop.xlane.xlu0 %2493
    %v2495 = vrcp.pop 32.0
    %v2496 = vmul.f32 %v2485, %v2495
    %v2497 = vmul.f32 %v2488, %v2495
    %v2498 = vmul.f32 %v2491, %v2495
    %v2499 = vmul.f32 %v2494, %v2495
    %v2500 = vsub.f32 %v2477, %v2496
    %v2501 = vsub.f32 %v2478, %v2497
    %v2502 = vsub.f32 %v2479, %v2498
    %v2503 = vsub.f32 %v2480, %v2499
    %v2504 = vmul.f32 %v2500, %v2500
    %v2505 = vmul.f32 %v2501, %v2501
    %v2506 = vmul.f32 %v2502, %v2502
    %v2507 = vmul.f32 %v2503, %v2503
    %v2508 = vsel %vm74, %v2504, 0.0
    %2509 = vadd.xlane.f32.xlu0 %v2508
    %v2510 = vpop.xlane.xlu0 %2509
    %v2511 = vsel %vm74, %v2505, 0.0
    %2512 = vadd.xlane.f32.xlu0 %v2511
    %v2513 = vpop.xlane.xlu0 %2512
    %v2514 = vsel %vm74, %v2506, 0.0
    %2515 = vadd.xlane.f32.xlu0 %v2514
    %v2516 = vpop.xlane.xlu0 %2515
    %v2517 = vsel %vm74, %v2507, 0.0
    %2518 = vadd.xlane.f32.xlu0 %v2517
    %v2519 = vpop.xlane.xlu0 %2518
    %v2520 = vmul.f32 %v2510, %v2495
    %v2521 = vmul.f32 %v2513, %v2495
    %v2522 = vmul.f32 %v2516, %v2495
    %v2523 = vmul.f32 %v2519, %v2495
    %v2524 = vadd.f32 %v2520, 1e-05
    %v2525 = vadd.f32 %v2521, 1e-05
    %v2526 = vadd.f32 %v2522, 1e-05
    %v2527 = vadd.f32 %v2523, 1e-05
    %v2528 = vrsqrt.pop %v2524
    %v2529 = vrsqrt.pop %v2525
    %v2530 = vrsqrt.pop %v2526
    %v2531 = vrsqrt.pop %v2527
    %v2532 = vmul.f32 %v2500, %v2528
    %v2533 = vmul.f32 %v2501, %v2529
    %v2534 = vmul.f32 %v2502, %v2530
    %v2535 = vmul.f32 %v2503, %v2531
    %v2537 = vlaneseq
    %v2538 = vshrl.u32 %v2537, 7
    %v2539 = vsub.s32 0, %v2538
    %v2540 = vrot.slane %v2481, %v2539
    %v2542 = vmul.f32 %v2532, %v2540
    %v2543 = vmul.f32 %v2533, %v2540
    %v2544 = vmul.f32 %v2534, %v2540
    %v2545 = vmul.f32 %v2535, %v2540
    %v2547 = vlaneseq
    %v2548 = vshrl.u32 %v2547, 7
    %v2549 = vsub.s32 0, %v2548
    %v2550 = vrot.slane %v2482, %v2549
    %v2552 = vadd.f32 %v2542, %v2550
    %v2553 = vadd.f32 %v2543, %v2550
    %v2554 = vadd.f32 %v2544, %v2550
    %v2555 = vadd.f32 %v2545, %v2550
    %v2556 = vld [vmem:[#allocation2] sm:$0xff]
    %v2557 = vld [vmem:[#allocation2 + $0x8] sm:$0xff]
    %v2558 = vld [vmem:[#allocation2 + $0x10] sm:$0xff]
    %v2559 = vld [vmem:[#allocation2 + $0x18] sm:$0xff]
    %v2560 = vld [vmem:[%s8] sm:$0x1]
    %v2562 = vlaneseq
    %v2563 = vshrl.u32 %v2562, 7
    %v2564 = vsub.s32 0, %v2563
    %v2565 = vrot.slane %v2560, %v2564
    %v2568 = vsel %vm74, %v2552, 0
    %v2571 = vsel %vm74, %v2553, 0
    %v2574 = vsel %vm74, %v2554, 0
    %v2577 = vsel %vm74, %v2555, 0
    %2579 = vmatprep.subr.mxu0 0.0
    %2580 = vmatpush1.msra.mxu0 0.0
    %2581 = vmatprep.subr.mxu0 0.0
    %2582 = vmatpush1.msra.mxu0 0.0
    %2583 = vmatprep.subr.mxu0 0.0
    %2584 = vmatpush1.msra.mxu0 0.0
    %2585 = vmatprep.subr.mxu0 0.0
    %2586 = vmatpush1.msra.mxu0 0.0
    %2587 = vmatprep.subr.mxu0 0.0
    %2588 = vmatpush1.msra.mxu0 0.0
    %2589 = vmatprep.subr.mxu0 0.0
    %2590 = vmatpush1.msra.mxu0 0.0
    %2591 = vmatprep.subr.mxu0 0.0
    %2592 = vmatpush1.msra.mxu0 0.0
    %2593 = vmatprep.subr.mxu0 0.0
    %2594 = vmatpush1.msra.mxu0 0.0
    %2595 = vmatprep.subr.mxu0 0.0
    %2596 = vmatpush1.msra.mxu0 0.0
    %2597 = vmatprep.subr.mxu0 0.0
    %2598 = vmatpush1.msra.mxu0 0.0
    %2599 = vmatprep.subr.mxu0 0.0
    %2600 = vmatpush1.msra.mxu0 0.0
    %2601 = vmatprep.subr.mxu0 0.0
    %2602 = vmatpush1.msra.mxu0 0.0
    %2603 = vmatprep.subr.mxu0 0.0
    %2604 = vmatpush1.msra.mxu0 %v2559
    %2605 = vmatprep.subr.mxu0 0.0
    %2606 = vmatpush1.msra.mxu0 %v2558
    %2607 = vmatprep.subr.mxu0 0.0
    %2608 = vmatpush1.msra.mxu0 %v2557
    %2609 = vmatprep.subr.mxu0 0.0
    %2610 = vmatpush1.msra.mxu0 %v2556
    %2611 = vmatprep.subr.mxu0 0.0
    %2612 = vmatpush2.msra.mxu0 0.0
    %2613 = vmatprep.subr.mxu0 0.0
    %2614 = vmatpush2.msra.mxu0 0.0
    %2615 = vmatprep.subr.mxu0 0.0
    %2616 = vmatpush2.msra.mxu0 0.0
    %2617 = vmatprep.subr.mxu0 0.0
    %2618 = vmatpush2.msra.mxu0 0.0
    %2619 = vmatprep.subr.mxu0 0.0
    %2620 = vmatpush2.msra.mxu0 0.0
    %2621 = vmatprep.subr.mxu0 0.0
    %2622 = vmatpush2.msra.mxu0 0.0
    %2623 = vmatprep.subr.mxu0 0.0
    %2624 = vmatpush2.msra.mxu0 0.0
    %2625 = vmatprep.subr.mxu0 0.0
    %2626 = vmatpush2.msra.mxu0 0.0
    %2627 = vmatprep.subr.mxu0 0.0
    %2628 = vmatpush2.msra.mxu0 0.0
    %2629 = vmatprep.subr.mxu0 0.0
    %2630 = vmatpush2.msra.mxu0 0.0
    %2631 = vmatprep.subr.mxu0 0.0
    %2632 = vmatpush2.msra.mxu0 0.0
    %2633 = vmatprep.subr.mxu0 0.0
    %2634 = vmatpush2.msra.mxu0 0.0
    %2635 = vmatprep.subr.mxu0 0.0
    %2636 = vmatpush2.msra.mxu0 0.0
    %2637 = vmatprep.subr.mxu0 0.0
    %2638 = vmatpush2.msra.mxu0 0.0
    %2639 = vmatprep.subr.mxu0 0.0
    %2640 = vmatpush2.msra.mxu0 0.0
    %2641 = vmatprep.subr.mxu0 0.0
    %2642 = vmatpush2.msra.mxu0 0.0
    %2643 = vmatprep.mubr.f32.mxu0 0.0
    %2644 = vmatmul.mubr.f32.gmra.mxu0 %v2568
    %v2645 = vpop.f32.mrf.mxu0
    %v2646 = vadd.f32 %v2565, %v2645
    %v2647 = vpop.f32.mrf.mxu0
    %2648 = vmatprep.mubr.f32.mxu0 0.0
    %2649 = vmatmul.mubr.f32.gmra.mxu0 %v2571
    %v2650 = vpop.f32.mrf.mxu0
    %v2651 = vadd.f32 %v2565, %v2650
    %v2652 = vpop.f32.mrf.mxu0
    %2653 = vmatprep.mubr.f32.mxu0 0.0
    %2654 = vmatmul.mubr.f32.gmra.mxu0 %v2574
    %v2655 = vpop.f32.mrf.mxu0
    %v2656 = vadd.f32 %v2565, %v2655
    %v2657 = vpop.f32.mrf.mxu0
    %2658 = vmatprep.mubr.f32.mxu0 0.0
    %2659 = vmatmul.mubr.f32.gmra.mxu0 %v2577
    %v2660 = vpop.f32.mrf.mxu0
    %v2661 = vadd.f32 %v2565, %v2660
    %v2662 = vpop.f32.mrf.mxu0
    %2663 = vdwg.mxu0
    %v2664 = vmax.f32 %v2646, 0.0
    %v2665 = vmax.f32 %v2651, 0.0
    %v2666 = vmax.f32 %v2656, 0.0
    %v2667 = vmax.f32 %v2661, 0.0
    %v2668 = vld [vmem:[%s9] sm:$0xff]
    %v2669 = vld [vmem:[%s9 + $0x8] sm:$0xff]
    %v2670 = vld [vmem:[%s9 + $0x10] sm:$0xff]
    %v2671 = vld [vmem:[%s9 + $0x18] sm:$0xff]
    %v2672 = vld [vmem:[%s9 + $0x20] sm:$0xff]
    %v2673 = vld [vmem:[%s9 + $0x28] sm:$0xff]
    %v2674 = vld [vmem:[%s9 + $0x30] sm:$0xff]
    %v2675 = vld [vmem:[%s9 + $0x38] sm:$0xff]
    %v2676 = vld [vmem:[%s10] sm:$0x1]
    %v2678 = vlaneseq
    %v2679 = vshrl.u32 %v2678, 7
    %v2680 = vsub.s32 0, %v2679
    %v2681 = vrot.slane %v2676, %v2680
    %vm2683 = vcmask 523264
    %v2685 = vsel %vm2683, %v2664, 0
    %v2688 = vsel %vm2683, %v2665, 0
    %v2691 = vsel %vm2683, %v2666, 0
    %v2694 = vsel %vm2683, %v2667, 0
    %2696 = vmatprep.subr.mxu0 0.0
    %2697 = vmatpush1.msra.mxu0 0.0
    %2698 = vmatprep.subr.mxu0 0.0
    %2699 = vmatpush1.msra.mxu0 0.0
    %2700 = vmatprep.subr.mxu0 0.0
    %2701 = vmatpush1.msra.mxu0 0.0
    %2702 = vmatprep.subr.mxu0 0.0
    %2703 = vmatpush1.msra.mxu0 0.0
    %2704 = vmatprep.subr.mxu0 0.0
    %2705 = vmatpush1.msra.mxu0 0.0
    %2706 = vmatprep.subr.mxu0 0.0
    %2707 = vmatpush1.msra.mxu0 0.0
    %2708 = vmatprep.subr.mxu0 0.0
    %2709 = vmatpush1.msra.mxu0 0.0
    %2710 = vmatprep.subr.mxu0 0.0
    %2711 = vmatpush1.msra.mxu0 0.0
    %2712 = vmatprep.subr.mxu0 0.0
    %2713 = vmatpush1.msra.mxu0 %v2675
    %2714 = vmatprep.subr.mxu0 0.0
    %2715 = vmatpush1.msra.mxu0 %v2674
    %2716 = vmatprep.subr.mxu0 0.0
    %2717 = vmatpush1.msra.mxu0 %v2673
    %2718 = vmatprep.subr.mxu0 0.0
    %2719 = vmatpush1.msra.mxu0 %v2672
    %2720 = vmatprep.subr.mxu0 0.0
    %2721 = vmatpush1.msra.mxu0 %v2671
    %2722 = vmatprep.subr.mxu0 0.0
    %2723 = vmatpush1.msra.mxu0 %v2670
    %2724 = vmatprep.subr.mxu0 0.0
    %2725 = vmatpush1.msra.mxu0 %v2669
    %2726 = vmatprep.subr.mxu0 0.0
    %2727 = vmatpush1.msra.mxu0 %v2668
    %2728 = vmatprep.subr.mxu0 0.0
    %2729 = vmatpush2.msra.mxu0 0.0
    %2730 = vmatprep.subr.mxu0 0.0
    %2731 = vmatpush2.msra.mxu0 0.0
    %2732 = vmatprep.subr.mxu0 0.0
    %2733 = vmatpush2.msra.mxu0 0.0
    %2734 = vmatprep.subr.mxu0 0.0
    %2735 = vmatpush2.msra.mxu0 0.0
    %2736 = vmatprep.subr.mxu0 0.0
    %2737 = vmatpush2.msra.mxu0 0.0
    %2738 = vmatprep.subr.mxu0 0.0
    %2739 = vmatpush2.msra.mxu0 0.0
    %2740 = vmatprep.subr.mxu0 0.0
    %2741 = vmatpush2.msra.mxu0 0.0
    %2742 = vmatprep.subr.mxu0 0.0
    %2743 = vmatpush2.msra.mxu0 0.0
    %2744 = vmatprep.subr.mxu0 0.0
    %2745 = vmatpush2.msra.mxu0 0.0
    %2746 = vmatprep.subr.mxu0 0.0
    %2747 = vmatpush2.msra.mxu0 0.0
    %2748 = vmatprep.subr.mxu0 0.0
    %2749 = vmatpush2.msra.mxu0 0.0
    %2750 = vmatprep.subr.mxu0 0.0
    %2751 = vmatpush2.msra.mxu0 0.0
    %2752 = vmatprep.subr.mxu0 0.0
    %2753 = vmatpush2.msra.mxu0 0.0
    %2754 = vmatprep.subr.mxu0 0.0
    %2755 = vmatpush2.msra.mxu0 0.0
    %2756 = vmatprep.subr.mxu0 0.0
    %2757 = vmatpush2.msra.mxu0 0.0
    %2758 = vmatprep.subr.mxu0 0.0
    %2759 = vmatpush2.msra.mxu0 0.0
    %2760 = vmatprep.mubr.f32.mxu0 0.0
    %2761 = vmatmul.mubr.f32.gmra.mxu0 %v2685
    %v2762 = vpop.f32.mrf.mxu0
    %v2763 = vadd.f32 %v2681, %v2762
    %v2764 = vpop.f32.mrf.mxu0
    %2765 = vmatprep.mubr.f32.mxu0 0.0
    %2766 = vmatmul.mubr.f32.gmra.mxu0 %v2688
    %v2767 = vpop.f32.mrf.mxu0
    %v2768 = vadd.f32 %v2681, %v2767
    %v2769 = vpop.f32.mrf.mxu0
    %2770 = vmatprep.mubr.f32.mxu0 0.0
    %2771 = vmatmul.mubr.f32.gmra.mxu0 %v2691
    %v2772 = vpop.f32.mrf.mxu0
    %v2773 = vadd.f32 %v2681, %v2772
    %v2774 = vpop.f32.mrf.mxu0
    %2775 = vmatprep.mubr.f32.mxu0 0.0
    %2776 = vmatmul.mubr.f32.gmra.mxu0 %v2694
    %v2777 = vpop.f32.mrf.mxu0
    %v2778 = vadd.f32 %v2681, %v2777
    %v2779 = vpop.f32.mrf.mxu0
    %2780 = vdwg.mxu0
    %v2781 = vadd.f32 %v2552, %v2763
    %v2782 = vadd.f32 %v2553, %v2768
    %v2783 = vadd.f32 %v2554, %v2773
    %v2784 = vadd.f32 %v2555, %v2778
    %v2785 = vld [vmem:[%s11] sm:$0x1]
    %v2786 = vld [vmem:[%s12] sm:$0x1]
    %v2787 = vsel %vm74, %v2781, 0.0
    %2788 = vadd.xlane.f32.xlu0 %v2787
    %v2789 = vpop.xlane.xlu0 %2788
    %v2790 = vsel %vm74, %v2782, 0.0
    %2791 = vadd.xlane.f32.xlu0 %v2790
    %v2792 = vpop.xlane.xlu0 %2791
    %v2793 = vsel %vm74, %v2783, 0.0
    %2794 = vadd.xlane.f32.xlu0 %v2793
    %v2795 = vpop.xlane.xlu0 %2794
    %v2796 = vsel %vm74, %v2784, 0.0
    %2797 = vadd.xlane.f32.xlu0 %v2796
    %v2798 = vpop.xlane.xlu0 %2797
    %v2799 = vmul.f32 %v2789, %v2495
    %v2800 = vmul.f32 %v2792, %v2495
    %v2801 = vmul.f32 %v2795, %v2495
    %v2802 = vmul.f32 %v2798, %v2495
    %v2803 = vsub.f32 %v2781, %v2799
    %v2804 = vsub.f32 %v2782, %v2800
    %v2805 = vsub.f32 %v2783, %v2801
    %v2806 = vsub.f32 %v2784, %v2802
    %v2807 = vmul.f32 %v2803, %v2803
    %v2808 = vmul.f32 %v2804, %v2804
    %v2809 = vmul.f32 %v2805, %v2805
    %v2810 = vmul.f32 %v2806, %v2806
    %v2811 = vsel %vm74, %v2807, 0.0
    %2812 = vadd.xlane.f32.xlu0 %v2811
    %v2813 = vpop.xlane.xlu0 %2812
    %v2814 = vsel %vm74, %v2808, 0.0
    %2815 = vadd.xlane.f32.xlu0 %v2814
    %v2816 = vpop.xlane.xlu0 %2815
    %v2817 = vsel %vm74, %v2809, 0.0
    %2818 = vadd.xlane.f32.xlu0 %v2817
    %v2819 = vpop.xlane.xlu0 %2818
    %v2820 = vsel %vm74, %v2810, 0.0
    %2821 = vadd.xlane.f32.xlu0 %v2820
    %v2822 = vpop.xlane.xlu0 %2821
    %v2823 = vmul.f32 %v2813, %v2495
    %v2824 = vmul.f32 %v2816, %v2495
    %v2825 = vmul.f32 %v2819, %v2495
    %v2826 = vmul.f32 %v2822, %v2495
    %v2827 = vadd.f32 %v2823, 1e-05
    %v2828 = vadd.f32 %v2824, 1e-05
    %v2829 = vadd.f32 %v2825, 1e-05
    %v2830 = vadd.f32 %v2826, 1e-05
    %v2831 = vrsqrt.pop %v2827
    %v2832 = vrsqrt.pop %v2828
    %v2833 = vrsqrt.pop %v2829
    %v2834 = vrsqrt.pop %v2830
    %v2835 = vmul.f32 %v2803, %v2831
    %v2836 = vmul.f32 %v2804, %v2832
    %v2837 = vmul.f32 %v2805, %v2833
    %v2838 = vmul.f32 %v2806, %v2834
    %v2840 = vlaneseq
    %v2841 = vshrl.u32 %v2840, 7
    %v2842 = vsub.s32 0, %v2841
    %v2843 = vrot.slane %v2785, %v2842
    %v2845 = vmul.f32 %v2835, %v2843
    %v2846 = vmul.f32 %v2836, %v2843
    %v2847 = vmul.f32 %v2837, %v2843
    %v2848 = vmul.f32 %v2838, %v2843
    %v2850 = vlaneseq
    %v2851 = vshrl.u32 %v2850, 7
    %v2852 = vsub.s32 0, %v2851
    %v2853 = vrot.slane %v2786, %v2852
    %v2855 = vadd.f32 %v2845, %v2853
    %v2856 = vadd.f32 %v2846, %v2853
    %v2857 = vadd.f32 %v2847, %v2853
    %v2858 = vadd.f32 %v2848, %v2853
    %2859 = vst.msk [vmem:[#allocation5] sm:$0xff] %vm74, %v2855
    %2860 = vst.msk [vmem:[#allocation5 + $0x8] sm:$0xff] %vm74, %v2856
    %2861 = vst.msk [vmem:[#allocation5 + $0x10] sm:$0xff] %vm74, %v2857
    %2862 = vst.msk [vmem:[#allocation5 + $0x18] sm:$0xff] %vm74, %v2858
    // Predicated region
    $region58: #{tpu_custom_call.1} parent=1 // pred_check
      _
    $region59: #{tpu_custom_call.1} parent=1 // pred_check_branch
      %2864 = sbr.rel (0) target = $region61
    $region60: #{tpu_custom_call.1} parent=1 // pred_region
      %s2866 = ssub.s32 512, 512
      %2867 = vsyncadd [#allocation4], %s2866
      %s2868 = sshll.u32 [#allocation5], 4
      %s2869 = int_to_ptr.vmem [resolvable:$true] %s2868
      %2874 = dma.vmem_to_hbm [thread:$0]  %s2869, 512, %s13, [#allocation4], 128, 128, 8
    $region61: #{tpu_custom_call.1} parent=1 // pred_fallthru
      _
    // Predicated region
    $region62: #{tpu_custom_call.1} parent=1 // pred_check
      _
    $region63: #{tpu_custom_call.1} parent=1 // pred_check_branch
      %2876 = sbr.rel (0) target = $region65
    $region64: #{tpu_custom_call.1} parent=1 // pred_region
      %2877 = dma.done [#allocation4], 512
    $region65: #{tpu_custom_call.1} parent=1 // pred_fallthru
      _
    %2878 = vsyncpa [#allocation3], 1
    %2879 = vsyncpa [#allocation4], 1

</llo_original>
